<compile_context>
chip_gen: v7x
topology: tpu7x:2x2x1
jax: 0.10.0
libtpu: 0.0.40
codegen_flags: <defaults>
</compile_context>

<pallas_src>
import functools

import jax
import jax.numpy as jnp
from jax.experimental import pallas as pl
from jax.experimental.pallas import tpu as pltpu


def _dwconv3x3(y, w_dw, b_dw):
    """Depthwise 3x3, stride 1, pad 1, on a register value.

    y: (H, W, Ch) f32; w_dw: (9, Ch) f32 (row 3*i+j multiplies y[h+i-1, w+j-1]);
    b_dw: (1, Ch) f32. Returns (H, W, Ch) f32.
    """
    H, W, Ch = y.shape
    zcol = jnp.zeros((H, 1, Ch), y.dtype)
    zrow = jnp.zeros((1, W, Ch), y.dtype)

    # W-shifted views (built once, reused by all 3 kernel rows).
    ym = jnp.concatenate([zcol, y[:, :W - 1, :]], axis=1)   # y[h, w-1]
    yp = jnp.concatenate([y[:, 1:, :], zcol], axis=1)       # y[h, w+1]

    k = [w_dw[i:i + 1, :].reshape(1, 1, Ch) for i in range(9)]

    # Per-kernel-row combinations: c_i[h, w] = sum_j y[h, w+j-1] * k[i, j]
    c0 = ym * k[0] + y * k[1] + yp * k[2]
    c1 = ym * k[3] + y * k[4] + yp * k[5]
    c2 = ym * k[6] + y * k[7] + yp * k[8]

    # z[h] = c0[h-1] + c1[h] + c2[h+1]  (H-shifts are major-dim slices: cheap)
    z = c1 + b_dw.reshape(1, 1, Ch)
    z = z + jnp.concatenate([zrow, c0[:H - 1]], axis=0)
    z = z + jnp.concatenate([c2[1:], zrow], axis=0)
    return z


def ffn_kernel(x_ref, w_in1_ref, w_in2_ref, b_in1_ref, b_in2_ref,
               w_dw1_ref, w_dw2_ref, b_dw1_ref, b_dw2_ref,
               w_out_ref, b_out_ref, o_ref, *, H, W):
    HW, Cp = x_ref.shape[1], x_ref.shape[2]
    Hp = w_in1_ref.shape[1]

    x = x_ref[0]                                                   # (HW, Cp) bf16

    # ---- project_in (1x1 conv == channel matmul), split into the two chunk halves ----
    y1 = jnp.dot(x, w_in1_ref[...], preferred_element_type=jnp.float32) + b_in1_ref[...]
    y2 = jnp.dot(x, w_in2_ref[...], preferred_element_type=jnp.float32) + b_in2_ref[...]

    # ---- depthwise 3x3 conv, per half (lane-dense) ----
    z1 = _dwconv3x3(y1.reshape(H, W, Hp), w_dw1_ref[...], b_dw1_ref[...])
    z2 = _dwconv3x3(y2.reshape(H, W, Hp), w_dw2_ref[...], b_dw2_ref[...])

    # ---- gate: SiLU(z1) * z2 ----
    g = (jax.nn.silu(z1) * z2).reshape(HW, Hp).astype(jnp.bfloat16)

    # ---- project_out (C//2 -> C) ----
    out = jnp.dot(g, w_out_ref[...], preferred_element_type=jnp.float32) + b_out_ref[...]
    o_ref[0] = out.astype(o_ref.dtype)


def _round_up(n, m):
    return ((n + m - 1) // m) * m


def feed_forward(x_nchw, params):
    """x_nchw: (B, C, H, W) float32.

    params (kernel-friendly layouts of the PyTorch conv params):
      w_in  (C, C)     = project_in.weight[:, :, 0, 0].T     (Cin, Cout)
      b_in  (1, C)     = project_in.bias[None]
      w_dw  (9, C)     = dwconv.weight.reshape(C, 9).T        (tap 3*i+j, channel)
      b_dw  (1, C)     = dwconv.bias[None]
      w_out (C//2, C)  = project_out.weight[:, :, 0, 0].T
      b_out (1, C)     = project_out.bias[None]
    """
    w_in, b_in, w_dw, b_dw, w_out, b_out = params
    B, C, H, W = x_nchw.shape
    half = C // 2
    Cp = _round_up(C, 128)
    Hp = _round_up(half, 128)
    HW = H * W

    # NCHW -> lane-dense (B, H*W, Cp), bf16 (halves input DMA; kernel computes in f32 acc anyway).
    x = jnp.transpose(x_nchw, (0, 2, 3, 1)).reshape(B, HW, C)
    x = jnp.pad(x, ((0, 0), (0, 0), (0, Cp - C))).astype(jnp.bfloat16)

    def padto(a, target, axis):
        pad = [(0, 0)] * a.ndim
        pad[axis] = (0, target - a.shape[axis])
        return jnp.pad(a, pad)

    # Split project_in / dwconv params into the two chunk halves; pad to lane width.
    w_in1 = padto(padto(w_in[:, :half], Hp, 1), Cp, 0).astype(jnp.bfloat16)
    w_in2 = padto(padto(w_in[:, half:], Hp, 1), Cp, 0).astype(jnp.bfloat16)
    b_in1 = padto(b_in[:, :half], Hp, 1)
    b_in2 = padto(b_in[:, half:], Hp, 1)
    w_dw1 = padto(w_dw[:, :half], Hp, 1)
    w_dw2 = padto(w_dw[:, half:], Hp, 1)
    b_dw1 = padto(b_dw[:, :half], Hp, 1)
    b_dw2 = padto(b_dw[:, half:], Hp, 1)
    w_out_p = padto(padto(w_out, Cp, 1), Hp, 0).astype(jnp.bfloat16)
    b_out_p = padto(b_out, Cp, 1)

    kernel = functools.partial(ffn_kernel, H=H, W=W)
    rep = lambda b: (0, 0)   # replicated (weight/bias) blocks

    out = pl.pallas_call(
        kernel,
        out_shape=jax.ShapeDtypeStruct((B, HW, Cp), x_nchw.dtype),
        grid_spec=pltpu.PrefetchScalarGridSpec(
            num_scalar_prefetch=0,
            grid=(B,),
            in_specs=[
                pl.BlockSpec((1, HW, Cp), lambda b: (b, 0, 0)),   # x
                pl.BlockSpec((Cp, Hp), rep),                      # w_in half 1
                pl.BlockSpec((Cp, Hp), rep),                      # w_in half 2
                pl.BlockSpec((1, Hp), rep),                       # b_in half 1
                pl.BlockSpec((1, Hp), rep),                       # b_in half 2
                pl.BlockSpec((9, Hp), rep),                       # w_dw half 1
                pl.BlockSpec((9, Hp), rep),                       # w_dw half 2
                pl.BlockSpec((1, Hp), rep),                       # b_dw half 1
                pl.BlockSpec((1, Hp), rep),                       # b_dw half 2
                pl.BlockSpec((Hp, Cp), rep),                      # w_out
                pl.BlockSpec((1, Cp), rep),                       # b_out
            ],
            out_specs=pl.BlockSpec((1, HW, Cp), lambda b: (b, 0, 0)),
        ),
        compiler_params=pltpu.CompilerParams(
            dimension_semantics=("parallel",)),
    )(x, w_in1, w_in2, b_in1, b_in2, w_dw1, w_dw2, b_dw1, b_dw2, w_out_p, b_out_p)

    out = out[:, :, :C].reshape(B, H, W, C)
    return jnp.transpose(out, (0, 3, 1, 2))                       # back to NCHW


def reference(x_nchw, params):
    """Pure-JAX f32 reference of the PyTorch forward (same math, NHWC internally)."""
    w_in, b_in, w_dw, b_dw, w_out, b_out = params
    B, C, H, W = x_nchw.shape
    half = C // 2
    x = jnp.transpose(x_nchw, (0, 2, 3, 1))
    y = jnp.matmul(x, w_in) + b_in[0]
    yp = jnp.pad(y, ((0, 0), (1, 1), (1, 1), (0, 0)))
    z = jnp.zeros_like(y)
    for dh in range(3):
        for dw in range(3):
            z = z + yp[:, dh:dh + H, dw:dw + W, :] * w_dw[dh * 3 + dw]
    z = z + b_dw[0]
    x1, x2 = z[..., :half], z[..., half:]
    g = jax.nn.silu(x1) * x2
    out = jnp.matmul(g, w_out) + b_out[0]
    return jnp.transpose(out, (0, 3, 1, 2))


if __name__ == "__main__":
    B, C, H, W = 2, 4, 16, 16
    key = jax.random.PRNGKey(0)
    kx, k1, k2, k3, k4, k5, k6 = jax.random.split(key, 7)

    x = jax.random.normal(kx, (B, C, H, W), dtype=jnp.float32)

    params = (
        jax.random.normal(k1, (C, C), dtype=jnp.float32) * 0.1,       # w_in  (Cin, Cout)
        jax.random.normal(k2, (1, C), dtype=jnp.float32) * 0.1,       # b_in
        jax.random.normal(k3, (9, C), dtype=jnp.float32) * 0.1,       # w_dw  (tap, channel)
        jax.random.normal(k4, (1, C), dtype=jnp.float32) * 0.1,       # b_dw
        jax.random.normal(k5, (C // 2, C), dtype=jnp.float32) * 0.1,  # w_out (C//2, C)
        jax.random.normal(k6, (1, C), dtype=jnp.float32) * 0.1,       # b_out
    )

    out = feed_forward(x, params)
    jax.block_until_ready(out)

    ref = reference(x, params)
    assert out.shape == (B, C, H, W), out.shape
    # bf16 MXU operands (f32 accumulate) -> small numerical difference vs the f32 reference.
    assert jnp.allclose(out, ref, atol=1e-2, rtol=1e-2), float(jnp.max(jnp.abs(out - ref)))
    print("KERNEL_OK")
</pallas_src>

<mosaic_0001>
module attributes {stable_mosaic.version = 11 : i64} {
  func.func @ffn_kernel(%arg0: i32, %arg1: memref<1x256x128xbf16, #tpu.memory_space<vmem>>, %arg2: memref<128x128xbf16, #tpu.memory_space<vmem>>, %arg3: memref<128x128xbf16, #tpu.memory_space<vmem>>, %arg4: memref<1x128xf32, #tpu.memory_space<vmem>>, %arg5: memref<1x128xf32, #tpu.memory_space<vmem>>, %arg6: memref<9x128xf32, #tpu.memory_space<vmem>>, %arg7: memref<9x128xf32, #tpu.memory_space<vmem>>, %arg8: memref<1x128xf32, #tpu.memory_space<vmem>>, %arg9: memref<1x128xf32, #tpu.memory_space<vmem>>, %arg10: memref<128x128xbf16, #tpu.memory_space<vmem>>, %arg11: memref<1x128xf32, #tpu.memory_space<vmem>>, %arg12: memref<1x256x128xf32, #tpu.memory_space<vmem>>) attributes {dimension_semantics = [#tpu.dimension_semantics<parallel>], iteration_bounds = array<i64: 2>, scalar_prefetch = 0 : i64, scratch_operands = 0 : i64, tpu.core_type = #tpu.core_type<tc>, window_params = [{transform_indices = @transform_0, window_bounds = array<i64: 1, 256, 128>}, {pipeline_mode = #tpu.pipeline_mode<synchronous>, transform_indices = @transform_1, window_bounds = array<i64: 128, 128>}, {pipeline_mode = #tpu.pipeline_mode<synchronous>, transform_indices = @transform_2, window_bounds = array<i64: 128, 128>}, {pipeline_mode = #tpu.pipeline_mode<synchronous>, transform_indices = @transform_3, window_bounds = array<i64: 1, 128>}, {pipeline_mode = #tpu.pipeline_mode<synchronous>, transform_indices = @transform_4, window_bounds = array<i64: 1, 128>}, {pipeline_mode = #tpu.pipeline_mode<synchronous>, transform_indices = @transform_5, window_bounds = array<i64: 9, 128>}, {pipeline_mode = #tpu.pipeline_mode<synchronous>, transform_indices = @transform_6, window_bounds = array<i64: 9, 128>}, {pipeline_mode = #tpu.pipeline_mode<synchronous>, transform_indices = @transform_7, window_bounds = array<i64: 1, 128>}, {pipeline_mode = #tpu.pipeline_mode<synchronous>, transform_indices = @transform_8, window_bounds = array<i64: 1, 128>}, {pipeline_mode = #tpu.pipeline_mode<synchronous>, transform_indices = @transform_9, window_bounds = array<i64: 128, 128>}, {pipeline_mode = #tpu.pipeline_mode<synchronous>, transform_indices = @transform_10, window_bounds = array<i64: 1, 128>}, {transform_indices = @transform_11, window_bounds = array<i64: 1, 256, 128>}]} {
    %c0 = arith.constant 0 : index
    %c0_0 = arith.constant 0 : index
    %c0_1 = arith.constant 0 : index
    %0 = vector.load %arg1[%c0, %c0_0, %c0_1] : memref<1x256x128xbf16, #tpu.memory_space<vmem>>, vector<1x256x128xbf16>
    %1 = vector.shape_cast %0 : vector<1x256x128xbf16> to vector<256x128xbf16>
    %c0_2 = arith.constant 0 : index
    %c0_3 = arith.constant 0 : index
    %2 = vector.load %arg2[%c0_2, %c0_3] : memref<128x128xbf16, #tpu.memory_space<vmem>>, vector<128x128xbf16>
    %cst = arith.constant dense<0.000000e+00> : vector<256x128xf32>
    %3 = tpu.matmul %1, %2, %cst {dimension_numbers = #tpu.dot_dimension_numbers<[1], [0], [0], [1], [0, 0, 1, 1], [], []>} : vector<256x128xbf16>, vector<128x128xbf16>, vector<256x128xf32> -> vector<256x128xf32>
    %c0_4 = arith.constant 0 : index
    %c0_5 = arith.constant 0 : index
    %4 = vector.load %arg4[%c0_4, %c0_5] : memref<1x128xf32, #tpu.memory_space<vmem>>, vector<1x128xf32>
    %5 = vector.broadcast %4 : vector<1x128xf32> to vector<256x128xf32>
    %6 = arith.addf %3, %5 : vector<256x128xf32>
    %c0_6 = arith.constant 0 : index
    %c0_7 = arith.constant 0 : index
    %7 = vector.load %arg3[%c0_6, %c0_7] : memref<128x128xbf16, #tpu.memory_space<vmem>>, vector<128x128xbf16>
    %cst_8 = arith.constant dense<0.000000e+00> : vector<256x128xf32>
    %8 = tpu.matmul %1, %7, %cst_8 {dimension_numbers = #tpu.dot_dimension_numbers<[1], [0], [0], [1], [0, 0, 1, 1], [], []>} : vector<256x128xbf16>, vector<128x128xbf16>, vector<256x128xf32> -> vector<256x128xf32>
    %c0_9 = arith.constant 0 : index
    %c0_10 = arith.constant 0 : index
    %9 = vector.load %arg5[%c0_9, %c0_10] : memref<1x128xf32, #tpu.memory_space<vmem>>, vector<1x128xf32>
    %10 = vector.broadcast %9 : vector<1x128xf32> to vector<256x128xf32>
    %11 = arith.addf %8, %10 : vector<256x128xf32>
    %12 = vector.shape_cast %6 : vector<256x128xf32> to vector<16x16x128xf32>
    %c0_11 = arith.constant 0 : index
    %c0_12 = arith.constant 0 : index
    %13 = vector.load %arg6[%c0_11, %c0_12] : memref<9x128xf32, #tpu.memory_space<vmem>>, vector<9x128xf32>
    %c0_13 = arith.constant 0 : index
    %c0_14 = arith.constant 0 : index
    %14 = vector.load %arg8[%c0_13, %c0_14] : memref<1x128xf32, #tpu.memory_space<vmem>>, vector<1x128xf32>
    %cst_15 = arith.constant 0.000000e+00 : f32
    %15 = vector.broadcast %cst_15 : f32 to vector<16x1x128xf32>
    %cst_16 = arith.constant 0.000000e+00 : f32
    %16 = vector.broadcast %cst_16 : f32 to vector<1x16x128xf32>
    %17 = vector.extract_strided_slice %12 {offsets = [0, 0, 0], sizes = [16, 15, 128], strides = [1, 1, 1]} : vector<16x16x128xf32> to vector<16x15x128xf32>
    %18 = tpu.concatenate %15, %17 in 1 : vector<16x1x128xf32>, vector<16x15x128xf32> -> vector<16x16x128xf32>
    %19 = vector.extract_strided_slice %12 {offsets = [0, 1, 0], sizes = [16, 15, 128], strides = [1, 1, 1]} : vector<16x16x128xf32> to vector<16x15x128xf32>
    %20 = tpu.concatenate %19, %15 in 1 : vector<16x15x128xf32>, vector<16x1x128xf32> -> vector<16x16x128xf32>
    %21 = vector.extract_strided_slice %13 {offsets = [0, 0], sizes = [1, 128], strides = [1, 1]} : vector<9x128xf32> to vector<1x128xf32>
    %22 = vector.shape_cast %21 : vector<1x128xf32> to vector<1x1x128xf32>
    %23 = vector.extract_strided_slice %13 {offsets = [1, 0], sizes = [1, 128], strides = [1, 1]} : vector<9x128xf32> to vector<1x128xf32>
    %24 = vector.shape_cast %23 : vector<1x128xf32> to vector<1x1x128xf32>
    %25 = vector.extract_strided_slice %13 {offsets = [2, 0], sizes = [1, 128], strides = [1, 1]} : vector<9x128xf32> to vector<1x128xf32>
    %26 = vector.shape_cast %25 : vector<1x128xf32> to vector<1x1x128xf32>
    %27 = vector.extract_strided_slice %13 {offsets = [3, 0], sizes = [1, 128], strides = [1, 1]} : vector<9x128xf32> to vector<1x128xf32>
    %28 = vector.shape_cast %27 : vector<1x128xf32> to vector<1x1x128xf32>
    %29 = vector.extract_strided_slice %13 {offsets = [4, 0], sizes = [1, 128], strides = [1, 1]} : vector<9x128xf32> to vector<1x128xf32>
    %30 = vector.shape_cast %29 : vector<1x128xf32> to vector<1x1x128xf32>
    %31 = vector.extract_strided_slice %13 {offsets = [5, 0], sizes = [1, 128], strides = [1, 1]} : vector<9x128xf32> to vector<1x128xf32>
    %32 = vector.shape_cast %31 : vector<1x128xf32> to vector<1x1x128xf32>
    %33 = vector.extract_strided_slice %13 {offsets = [6, 0], sizes = [1, 128], strides = [1, 1]} : vector<9x128xf32> to vector<1x128xf32>
    %34 = vector.shape_cast %33 : vector<1x128xf32> to vector<1x1x128xf32>
    %35 = vector.extract_strided_slice %13 {offsets = [7, 0], sizes = [1, 128], strides = [1, 1]} : vector<9x128xf32> to vector<1x128xf32>
    %36 = vector.shape_cast %35 : vector<1x128xf32> to vector<1x1x128xf32>
    %37 = vector.extract_strided_slice %13 {offsets = [8, 0], sizes = [1, 128], strides = [1, 1]} : vector<9x128xf32> to vector<1x128xf32>
    %38 = vector.shape_cast %37 : vector<1x128xf32> to vector<1x1x128xf32>
    %39 = vector.broadcast %22 : vector<1x1x128xf32> to vector<16x16x128xf32>
    %40 = arith.mulf %18, %39 : vector<16x16x128xf32>
    %41 = vector.broadcast %24 : vector<1x1x128xf32> to vector<16x16x128xf32>
    %42 = arith.mulf %12, %41 : vector<16x16x128xf32>
    %43 = arith.addf %40, %42 : vector<16x16x128xf32>
    %44 = vector.broadcast %26 : vector<1x1x128xf32> to vector<16x16x128xf32>
    %45 = arith.mulf %20, %44 : vector<16x16x128xf32>
    %46 = arith.addf %43, %45 : vector<16x16x128xf32>
    %47 = vector.broadcast %28 : vector<1x1x128xf32> to vector<16x16x128xf32>
    %48 = arith.mulf %18, %47 : vector<16x16x128xf32>
    %49 = vector.broadcast %30 : vector<1x1x128xf32> to vector<16x16x128xf32>
    %50 = arith.mulf %12, %49 : vector<16x16x128xf32>
    %51 = arith.addf %48, %50 : vector<16x16x128xf32>
    %52 = vector.broadcast %32 : vector<1x1x128xf32> to vector<16x16x128xf32>
    %53 = arith.mulf %20, %52 : vector<16x16x128xf32>
    %54 = arith.addf %51, %53 : vector<16x16x128xf32>
    %55 = vector.broadcast %34 : vector<1x1x128xf32> to vector<16x16x128xf32>
    %56 = arith.mulf %18, %55 : vector<16x16x128xf32>
    %57 = vector.broadcast %36 : vector<1x1x128xf32> to vector<16x16x128xf32>
    %58 = arith.mulf %12, %57 : vector<16x16x128xf32>
    %59 = arith.addf %56, %58 : vector<16x16x128xf32>
    %60 = vector.broadcast %38 : vector<1x1x128xf32> to vector<16x16x128xf32>
    %61 = arith.mulf %20, %60 : vector<16x16x128xf32>
    %62 = arith.addf %59, %61 : vector<16x16x128xf32>
    %63 = vector.shape_cast %14 : vector<1x128xf32> to vector<1x1x128xf32>
    %64 = vector.broadcast %63 : vector<1x1x128xf32> to vector<16x16x128xf32>
    %65 = arith.addf %54, %64 : vector<16x16x128xf32>
    %66 = vector.extract_strided_slice %46 {offsets = [0, 0, 0], sizes = [15, 16, 128], strides = [1, 1, 1]} : vector<16x16x128xf32> to vector<15x16x128xf32>
    %67 = tpu.concatenate %16, %66 in 0 : vector<1x16x128xf32>, vector<15x16x128xf32> -> vector<16x16x128xf32>
    %68 = arith.addf %65, %67 : vector<16x16x128xf32>
    %69 = vector.extract_strided_slice %62 {offsets = [1, 0, 0], sizes = [15, 16, 128], strides = [1, 1, 1]} : vector<16x16x128xf32> to vector<15x16x128xf32>
    %70 = tpu.concatenate %69, %16 in 0 : vector<15x16x128xf32>, vector<1x16x128xf32> -> vector<16x16x128xf32>
    %71 = arith.addf %68, %70 : vector<16x16x128xf32>
    %72 = vector.shape_cast %11 : vector<256x128xf32> to vector<16x16x128xf32>
    %c0_17 = arith.constant 0 : index
    %c0_18 = arith.constant 0 : index
    %73 = vector.load %arg7[%c0_17, %c0_18] : memref<9x128xf32, #tpu.memory_space<vmem>>, vector<9x128xf32>
    %c0_19 = arith.constant 0 : index
    %c0_20 = arith.constant 0 : index
    %74 = vector.load %arg9[%c0_19, %c0_20] : memref<1x128xf32, #tpu.memory_space<vmem>>, vector<1x128xf32>
    %cst_21 = arith.constant 0.000000e+00 : f32
    %75 = vector.broadcast %cst_21 : f32 to vector<16x1x128xf32>
    %cst_22 = arith.constant 0.000000e+00 : f32
    %76 = vector.broadcast %cst_22 : f32 to vector<1x16x128xf32>
    %77 = vector.extract_strided_slice %72 {offsets = [0, 0, 0], sizes = [16, 15, 128], strides = [1, 1, 1]} : vector<16x16x128xf32> to vector<16x15x128xf32>
    %78 = tpu.concatenate %75, %77 in 1 : vector<16x1x128xf32>, vector<16x15x128xf32> -> vector<16x16x128xf32>
    %79 = vector.extract_strided_slice %72 {offsets = [0, 1, 0], sizes = [16, 15, 128], strides = [1, 1, 1]} : vector<16x16x128xf32> to vector<16x15x128xf32>
    %80 = tpu.concatenate %79, %75 in 1 : vector<16x15x128xf32>, vector<16x1x128xf32> -> vector<16x16x128xf32>
    %81 = vector.extract_strided_slice %73 {offsets = [0, 0], sizes = [1, 128], strides = [1, 1]} : vector<9x128xf32> to vector<1x128xf32>
    %82 = vector.shape_cast %81 : vector<1x128xf32> to vector<1x1x128xf32>
    %83 = vector.extract_strided_slice %73 {offsets = [1, 0], sizes = [1, 128], strides = [1, 1]} : vector<9x128xf32> to vector<1x128xf32>
    %84 = vector.shape_cast %83 : vector<1x128xf32> to vector<1x1x128xf32>
    %85 = vector.extract_strided_slice %73 {offsets = [2, 0], sizes = [1, 128], strides = [1, 1]} : vector<9x128xf32> to vector<1x128xf32>
    %86 = vector.shape_cast %85 : vector<1x128xf32> to vector<1x1x128xf32>
    %87 = vector.extract_strided_slice %73 {offsets = [3, 0], sizes = [1, 128], strides = [1, 1]} : vector<9x128xf32> to vector<1x128xf32>
    %88 = vector.shape_cast %87 : vector<1x128xf32> to vector<1x1x128xf32>
    %89 = vector.extract_strided_slice %73 {offsets = [4, 0], sizes = [1, 128], strides = [1, 1]} : vector<9x128xf32> to vector<1x128xf32>
    %90 = vector.shape_cast %89 : vector<1x128xf32> to vector<1x1x128xf32>
    %91 = vector.extract_strided_slice %73 {offsets = [5, 0], sizes = [1, 128], strides = [1, 1]} : vector<9x128xf32> to vector<1x128xf32>
    %92 = vector.shape_cast %91 : vector<1x128xf32> to vector<1x1x128xf32>
    %93 = vector.extract_strided_slice %73 {offsets = [6, 0], sizes = [1, 128], strides = [1, 1]} : vector<9x128xf32> to vector<1x128xf32>
    %94 = vector.shape_cast %93 : vector<1x128xf32> to vector<1x1x128xf32>
    %95 = vector.extract_strided_slice %73 {offsets = [7, 0], sizes = [1, 128], strides = [1, 1]} : vector<9x128xf32> to vector<1x128xf32>
    %96 = vector.shape_cast %95 : vector<1x128xf32> to vector<1x1x128xf32>
    %97 = vector.extract_strided_slice %73 {offsets = [8, 0], sizes = [1, 128], strides = [1, 1]} : vector<9x128xf32> to vector<1x128xf32>
    %98 = vector.shape_cast %97 : vector<1x128xf32> to vector<1x1x128xf32>
    %99 = vector.broadcast %82 : vector<1x1x128xf32> to vector<16x16x128xf32>
    %100 = arith.mulf %78, %99 : vector<16x16x128xf32>
    %101 = vector.broadcast %84 : vector<1x1x128xf32> to vector<16x16x128xf32>
    %102 = arith.mulf %72, %101 : vector<16x16x128xf32>
    %103 = arith.addf %100, %102 : vector<16x16x128xf32>
    %104 = vector.broadcast %86 : vector<1x1x128xf32> to vector<16x16x128xf32>
    %105 = arith.mulf %80, %104 : vector<16x16x128xf32>
    %106 = arith.addf %103, %105 : vector<16x16x128xf32>
    %107 = vector.broadcast %88 : vector<1x1x128xf32> to vector<16x16x128xf32>
    %108 = arith.mulf %78, %107 : vector<16x16x128xf32>
    %109 = vector.broadcast %90 : vector<1x1x128xf32> to vector<16x16x128xf32>
    %110 = arith.mulf %72, %109 : vector<16x16x128xf32>
    %111 = arith.addf %108, %110 : vector<16x16x128xf32>
    %112 = vector.broadcast %92 : vector<1x1x128xf32> to vector<16x16x128xf32>
    %113 = arith.mulf %80, %112 : vector<16x16x128xf32>
    %114 = arith.addf %111, %113 : vector<16x16x128xf32>
    %115 = vector.broadcast %94 : vector<1x1x128xf32> to vector<16x16x128xf32>
    %116 = arith.mulf %78, %115 : vector<16x16x128xf32>
    %117 = vector.broadcast %96 : vector<1x1x128xf32> to vector<16x16x128xf32>
    %118 = arith.mulf %72, %117 : vector<16x16x128xf32>
    %119 = arith.addf %116, %118 : vector<16x16x128xf32>
    %120 = vector.broadcast %98 : vector<1x1x128xf32> to vector<16x16x128xf32>
    %121 = arith.mulf %80, %120 : vector<16x16x128xf32>
    %122 = arith.addf %119, %121 : vector<16x16x128xf32>
    %123 = vector.shape_cast %74 : vector<1x128xf32> to vector<1x1x128xf32>
    %124 = vector.broadcast %123 : vector<1x1x128xf32> to vector<16x16x128xf32>
    %125 = arith.addf %114, %124 : vector<16x16x128xf32>
    %126 = vector.extract_strided_slice %106 {offsets = [0, 0, 0], sizes = [15, 16, 128], strides = [1, 1, 1]} : vector<16x16x128xf32> to vector<15x16x128xf32>
    %127 = tpu.concatenate %76, %126 in 0 : vector<1x16x128xf32>, vector<15x16x128xf32> -> vector<16x16x128xf32>
    %128 = arith.addf %125, %127 : vector<16x16x128xf32>
    %129 = vector.extract_strided_slice %122 {offsets = [1, 0, 0], sizes = [15, 16, 128], strides = [1, 1, 1]} : vector<16x16x128xf32> to vector<15x16x128xf32>
    %130 = tpu.concatenate %129, %76 in 0 : vector<15x16x128xf32>, vector<1x16x128xf32> -> vector<16x16x128xf32>
    %131 = arith.addf %128, %130 : vector<16x16x128xf32>
    %132 = arith.negf %71 : vector<16x16x128xf32>
    %133 = math.exp %132 : vector<16x16x128xf32>
    %cst_23 = arith.constant 1.000000e+00 : f32
    %134 = vector.broadcast %cst_23 : f32 to vector<16x16x128xf32>
    %135 = arith.addf %134, %133 : vector<16x16x128xf32>
    %136 = arith.divf %134, %135 : vector<16x16x128xf32>
    %137 = arith.mulf %71, %136 : vector<16x16x128xf32>
    %138 = arith.mulf %137, %131 : vector<16x16x128xf32>
    %139 = vector.shape_cast %138 : vector<16x16x128xf32> to vector<256x128xf32>
    %140 = arith.truncf %139 : vector<256x128xf32> to vector<256x128xbf16>
    %c0_24 = arith.constant 0 : index
    %c0_25 = arith.constant 0 : index
    %141 = vector.load %arg10[%c0_24, %c0_25] : memref<128x128xbf16, #tpu.memory_space<vmem>>, vector<128x128xbf16>
    %cst_26 = arith.constant dense<0.000000e+00> : vector<256x128xf32>
    %142 = tpu.matmul %140, %141, %cst_26 {dimension_numbers = #tpu.dot_dimension_numbers<[1], [0], [0], [1], [0, 0, 1, 1], [], []>} : vector<256x128xbf16>, vector<128x128xbf16>, vector<256x128xf32> -> vector<256x128xf32>
    %c0_27 = arith.constant 0 : index
    %c0_28 = arith.constant 0 : index
    %143 = vector.load %arg11[%c0_27, %c0_28] : memref<1x128xf32, #tpu.memory_space<vmem>>, vector<1x128xf32>
    %144 = vector.broadcast %143 : vector<1x128xf32> to vector<256x128xf32>
    %145 = arith.addf %142, %144 : vector<256x128xf32>
    %c0_29 = arith.constant 0 : index
    %c0_30 = arith.constant 0 : index
    %c0_31 = arith.constant 0 : index
    %146 = vector.load %arg12[%c0_29, %c0_30, %c0_31] : memref<1x256x128xf32, #tpu.memory_space<vmem>>, vector<1x256x128xf32>
    %147 = vector.shape_cast %146 : vector<1x256x128xf32> to vector<256x128xf32>
    %148 = vector.shape_cast %145 : vector<256x128xf32> to vector<1x256x128xf32>
    tpu.vector_store %arg12[%c0_29, %c0_30, %c0_31], %148 {strides = array<i32>} : memref<1x256x128xf32, #tpu.memory_space<vmem>>, vector<1x256x128xf32>,
    return
  }
  func.func @transform_0(%arg0: i32) -> (i32, i32, i32) {
    %c0_i32 = arith.constant 0 : i32
    %c0_i32_0 = arith.constant 0 : i32
    %c0_i32_1 = arith.constant 0 : i32
    return %arg0, %c0_i32, %c0_i32_0 : i32, i32, i32
  }
  func.func @transform_1(%arg0: i32) -> (i32, i32) {
    %c0_i32 = arith.constant 0 : i32
    %c0_i32_0 = arith.constant 0 : i32
    %c0_i32_1 = arith.constant 0 : i32
    return %c0_i32, %c0_i32_0 : i32, i32
  }
  func.func @transform_2(%arg0: i32) -> (i32, i32) {
    %c0_i32 = arith.constant 0 : i32
    %c0_i32_0 = arith.constant 0 : i32
    %c0_i32_1 = arith.constant 0 : i32
    return %c0_i32, %c0_i32_0 : i32, i32
  }
  func.func @transform_3(%arg0: i32) -> (i32, i32) {
    %c0_i32 = arith.constant 0 : i32
    %c0_i32_0 = arith.constant 0 : i32
    %c0_i32_1 = arith.constant 0 : i32
    return %c0_i32, %c0_i32_0 : i32, i32
  }
  func.func @transform_4(%arg0: i32) -> (i32, i32) {
    %c0_i32 = arith.constant 0 : i32
    %c0_i32_0 = arith.constant 0 : i32
    %c0_i32_1 = arith.constant 0 : i32
    return %c0_i32, %c0_i32_0 : i32, i32
  }
  func.func @transform_5(%arg0: i32) -> (i32, i32) {
    %c0_i32 = arith.constant 0 : i32
    %c0_i32_0 = arith.constant 0 : i32
    %c0_i32_1 = arith.constant 0 : i32
    return %c0_i32, %c0_i32_0 : i32, i32
  }
  func.func @transform_6(%arg0: i32) -> (i32, i32) {
    %c0_i32 = arith.constant 0 : i32
    %c0_i32_0 = arith.constant 0 : i32
    %c0_i32_1 = arith.constant 0 : i32
    return %c0_i32, %c0_i32_0 : i32, i32
  }
  func.func @transform_7(%arg0: i32) -> (i32, i32) {
    %c0_i32 = arith.constant 0 : i32
    %c0_i32_0 = arith.constant 0 : i32
    %c0_i32_1 = arith.constant 0 : i32
    return %c0_i32, %c0_i32_0 : i32, i32
  }
  func.func @transform_8(%arg0: i32) -> (i32, i32) {
    %c0_i32 = arith.constant 0 : i32
    %c0_i32_0 = arith.constant 0 : i32
    %c0_i32_1 = arith.constant 0 : i32
    return %c0_i32, %c0_i32_0 : i32, i32
  }
  func.func @transform_9(%arg0: i32) -> (i32, i32) {
    %c0_i32 = arith.constant 0 : i32
    %c0_i32_0 = arith.constant 0 : i32
    %c0_i32_1 = arith.constant 0 : i32
    return %c0_i32, %c0_i32_0 : i32, i32
  }
  func.func @transform_10(%arg0: i32) -> (i32, i32) {
    %c0_i32 = arith.constant 0 : i32
    %c0_i32_0 = arith.constant 0 : i32
    %c0_i32_1 = arith.constant 0 : i32
    return %c0_i32, %c0_i32_0 : i32, i32
  }
  func.func @transform_11(%arg0: i32) -> (i32, i32, i32) {
    %c0_i32 = arith.constant 0 : i32
    %c0_i32_0 = arith.constant 0 : i32
    %c0_i32_1 = arith.constant 0 : i32
    return %arg0, %c0_i32, %c0_i32_0 : i32, i32, i32
  }
}

</mosaic_0001>

<llo_original>
// kernel: tpu_custom_call.1
$region0: #{tpu_custom_call.1}
  #allocation0 [shape = 'u32[]', space=smem, size = 0x4, offset = 0x4, fixed_abs, tag = 'smem constant byte address 0x4 - core index']
  #allocation1 [shape = 'u32[144,128]{1,0:T(1,128)}', space=vmem, size = 0x12000, scoped, tag = 'internal scratch']
  %s0 = inlined_call_operand.hbm [shape: bf16[2,256,128], index: 0, kind: input, shape index: {}]
  %s1 = inlined_call_operand.hbm [shape: bf16[128,128], index: 1, kind: input, shape index: {}]
  %s2 = inlined_call_operand.hbm [shape: bf16[128,128], index: 2, kind: input, shape index: {}]
  %s3 = inlined_call_operand.vmem [shape: f32[1,128], index: 3, kind: input, shape index: {}]
  %s4 = inlined_call_operand.vmem [shape: f32[1,128], index: 4, kind: input, shape index: {}]
  %s5 = inlined_call_operand.vmem [shape: f32[9,128], index: 5, kind: input, shape index: {}]
  %s6 = inlined_call_operand.hbm [shape: f32[9,128], index: 6, kind: input, shape index: {}]
  %s7 = inlined_call_operand.vmem [shape: f32[1,128], index: 7, kind: input, shape index: {}]
  %s8 = inlined_call_operand.vmem [shape: f32[1,128], index: 8, kind: input, shape index: {}]
  %s9 = inlined_call_operand.hbm [shape: bf16[128,128], index: 9, kind: input, shape index: {}]
  %s10 = inlined_call_operand.vmem [shape: f32[1,128], index: 10, kind: input, shape index: {}]
  %s11 = inlined_call_operand.hbm [shape: f32[2,256,128], index: 11, kind: output, shape index: {}]
  %s12 = sld [smem:[#allocation0]]
  $region97: #{tpu_custom_call.1} parent=0
    _
  %s14 = ssub.s32 1, %s12
  %s15 = scalar_select 0, %s14, %s12
  $region1: #{tpu_custom_call.1} parent=0
    #allocation2 [shape = 'u8[131072]{0}', space=vmem, size = 0x20000, scoped, tag = 'input window, operand 0']
    #allocation3 [shape = 's32[2]{0}', space=sflag, size = 0x8, scoped, tag = 'scoped memory for tpu_custom_call.1']
    #allocation4 [shape = 's32[2]{0}', space=sflag, size = 0x8, scoped, tag = 'scoped memory for tpu_custom_call.1']
    #allocation5 [shape = 'u8[32768]{0}', space=vmem, size = 0x8000, scoped, tag = 'input window, operand 1, single buffered']
    #allocation6 [shape = 's32[1]{0}', space=sflag, size = 0x4, scoped, tag = 'scoped memory for tpu_custom_call.1']
    #allocation7 [shape = 'u8[32768]{0}', space=vmem, size = 0x8000, scoped, tag = 'input window, operand 2, single buffered']
    #allocation8 [shape = 'u8[8192]{0}', space=vmem, size = 0x2000, scoped, tag = 'input window, operand 6, single buffered']
    #allocation9 [shape = 's32[1]{0}', space=sflag, size = 0x4, scoped, tag = 'scoped memory for tpu_custom_call.1']
    #allocation10 [shape = 'u8[32768]{0}', space=vmem, size = 0x8000, scoped, tag = 'input window, operand 9, single buffered']
    #allocation11 [shape = 'u8[262144]{0}', space=vmem, size = 0x40000, scoped, tag = 'output window, operand 0']
    %16 = vsyncpa [#allocation3], 0
    %s17 = scalar_lea.sflag [#allocation3], 1
    %18 = vsyncpa %s17, 0
    %19 = vsyncpa [#allocation6], 0
    %20 = vsyncpa [#allocation9], 0
    %21 = vsyncpa [#allocation4], 0
    %s22 = scalar_lea.sflag [#allocation4], 1
    %23 = vsyncpa %s22, 0
    loop: start=0, step=1, limit=4
    $region2: #{tpu_custom_call.1} parent=1 // loop_pre_header
      _
    $region3: #{tpu_custom_call.1} parent=1 // loop_header
      %s25 = sphi 0, %s29
      %p26 = scmp.ge.s32.totalorder %s25, 4
      %s35 = sphi 0, %s37
      %s38 = sphi 0, %s35
      %s39 = sphi 0, %s38
      %s55 = sphi 0, %s39
      %s59 = sphi 0, %s59
      %s61 = sphi 0, %s59
      %s62 = sphi 0, %s61
      %s76 = sphi 0, %s62
      %s80 = sphi 0, %s80
      %s82 = sphi 0, %s80
      %s83 = sphi 0, %s82
      %s97 = sphi 0, %s83
      %s101 = sphi 0, %s101
      %s103 = sphi 0, %s101
      %s104 = sphi 0, %s103
      %s118 = sphi 0, %s104
      %s122 = sphi 0, %s122
      %s124 = sphi 0, %s122
      %s125 = sphi 0, %s124
      %s139 = sphi 0, %s125
      %s143 = sphi 0, %s143
      %s145 = sphi 0, %s143
      %s146 = sphi 0, %s145
      %s160 = sphi 0, %s146
      %s164 = sphi 0, %s164
      %s166 = sphi 0, %s164
      %s167 = sphi 0, %s166
      %s181 = sphi 0, %s167
      %s185 = sphi 0, %s185
      %s187 = sphi 0, %s185
      %s188 = sphi 0, %s187
      %s202 = sphi 0, %s188
      %s206 = sphi 0, %s206
      %s208 = sphi 0, %s206
      %s209 = sphi 0, %s208
      %s223 = sphi 0, %s209
      %s227 = sphi 0, %s227
      %s229 = sphi 0, %s227
      %s230 = sphi 0, %s229
      %s244 = sphi 0, %s230
      %s248 = sphi 0, %s248
      %s250 = sphi 0, %s248
      %s251 = sphi 0, %s250
      %s265 = sphi 0, %s251
      %s271 = sphi 0, %s273
      %s274 = sphi 0, %s271
      %s275 = sphi 0, %s274
      %s291 = sphi 0, %s275
    $region4: #{tpu_custom_call.1} parent=1 // loop_header_branch
      %28 = sbr.rel (%p26) target = $region8
    $region5: #{tpu_custom_call.1} parent=1 // loop_body
      %s30 = ssub.s32 %s25, 1
      %s31 = ssub.s32 %s25, 2
      %s32 = sadd.s32 %s25, 1
      %s33 = ssub.s32 %s25, %s32
      %p34 = scmp.eq.s32.totalorder %s33, 0
      %s36 = sadd.s32 %s35, 1
      %s37 = scalar_select %p34, %s35, %s36
      %p40 = pneg %p34
      %p41 = scmp.eq.s32.totalorder %s25, 1
      %p42 = por %p40, %p41
      %p43 = scmp.ne.s32.totalorder %s35, %s38
      %p44 = scmp.eq.s32.totalorder %s25, 0
      %p45 = por %p43, %p44
      %p46 = scmp.ne.s32.totalorder %s35, %s38
      %p47 = scmp.eq.s32.totalorder %s30, 1
      %p48 = por %p46, %p47
      %p49 = scmp.ne.s32.totalorder %s38, %s39
      %p50 = scmp.eq.s32.totalorder %s30, 0
      %p51 = por %p49, %p50
      %p52 = scmp.ne.s32.totalorder %s38, %s39
      %p53 = scmp.eq.s32.totalorder %s31, 1
      %p54 = por %p52, %p53
      %p56 = scmp.ne.s32.totalorder %s39, %s55
      %p57 = scmp.eq.s32.totalorder %s31, 0
      %p58 = por %p56, %p57
      %s60 = sadd.s32 %s59, 1
      %p63 = scmp.eq.s32.totalorder %s25, 1
      %p64 = scmp.ne.s32.totalorder %s59, %s61
      %p65 = scmp.eq.s32.totalorder %s25, 0
      %p66 = por %p64, %p65
      %p67 = scmp.ne.s32.totalorder %s59, %s61
      %p68 = scmp.eq.s32.totalorder %s30, 1
      %p69 = por %p67, %p68
      %p70 = scmp.ne.s32.totalorder %s61, %s62
      %p71 = scmp.eq.s32.totalorder %s30, 0
      %p72 = por %p70, %p71
      %p73 = scmp.ne.s32.totalorder %s61, %s62
      %p74 = scmp.eq.s32.totalorder %s31, 1
      %p75 = por %p73, %p74
      %p77 = scmp.ne.s32.totalorder %s62, %s76
      %p78 = scmp.eq.s32.totalorder %s31, 0
      %p79 = por %p77, %p78
      %s81 = sadd.s32 %s80, 1
      %p84 = scmp.eq.s32.totalorder %s25, 1
      %p85 = scmp.ne.s32.totalorder %s80, %s82
      %p86 = scmp.eq.s32.totalorder %s25, 0
      %p87 = por %p85, %p86
      %p88 = scmp.ne.s32.totalorder %s80, %s82
      %p89 = scmp.eq.s32.totalorder %s30, 1
      %p90 = por %p88, %p89
      %p91 = scmp.ne.s32.totalorder %s82, %s83
      %p92 = scmp.eq.s32.totalorder %s30, 0
      %p93 = por %p91, %p92
      %p94 = scmp.ne.s32.totalorder %s82, %s83
      %p95 = scmp.eq.s32.totalorder %s31, 1
      %p96 = por %p94, %p95
      %p98 = scmp.ne.s32.totalorder %s83, %s97
      %p99 = scmp.eq.s32.totalorder %s31, 0
      %p100 = por %p98, %p99
      %s102 = sadd.s32 %s101, 1
      %p105 = scmp.eq.s32.totalorder %s25, 1
      %p106 = scmp.ne.s32.totalorder %s101, %s103
      %p107 = scmp.eq.s32.totalorder %s25, 0
      %p108 = por %p106, %p107
      %p109 = scmp.ne.s32.totalorder %s101, %s103
      %p110 = scmp.eq.s32.totalorder %s30, 1
      %p111 = por %p109, %p110
      %p112 = scmp.ne.s32.totalorder %s103, %s104
      %p113 = scmp.eq.s32.totalorder %s30, 0
      %p114 = por %p112, %p113
      %p115 = scmp.ne.s32.totalorder %s103, %s104
      %p116 = scmp.eq.s32.totalorder %s31, 1
      %p117 = por %p115, %p116
      %p119 = scmp.ne.s32.totalorder %s104, %s118
      %p120 = scmp.eq.s32.totalorder %s31, 0
      %p121 = por %p119, %p120
      %s123 = sadd.s32 %s122, 1
      %p126 = scmp.eq.s32.totalorder %s25, 1
      %p127 = scmp.ne.s32.totalorder %s122, %s124
      %p128 = scmp.eq.s32.totalorder %s25, 0
      %p129 = por %p127, %p128
      %p130 = scmp.ne.s32.totalorder %s122, %s124
      %p131 = scmp.eq.s32.totalorder %s30, 1
      %p132 = por %p130, %p131
      %p133 = scmp.ne.s32.totalorder %s124, %s125
      %p134 = scmp.eq.s32.totalorder %s30, 0
      %p135 = por %p133, %p134
      %p136 = scmp.ne.s32.totalorder %s124, %s125
      %p137 = scmp.eq.s32.totalorder %s31, 1
      %p138 = por %p136, %p137
      %p140 = scmp.ne.s32.totalorder %s125, %s139
      %p141 = scmp.eq.s32.totalorder %s31, 0
      %p142 = por %p140, %p141
      %s144 = sadd.s32 %s143, 1
      %p147 = scmp.eq.s32.totalorder %s25, 1
      %p148 = scmp.ne.s32.totalorder %s143, %s145
      %p149 = scmp.eq.s32.totalorder %s25, 0
      %p150 = por %p148, %p149
      %p151 = scmp.ne.s32.totalorder %s143, %s145
      %p152 = scmp.eq.s32.totalorder %s30, 1
      %p153 = por %p151, %p152
      %p154 = scmp.ne.s32.totalorder %s145, %s146
      %p155 = scmp.eq.s32.totalorder %s30, 0
      %p156 = por %p154, %p155
      %p157 = scmp.ne.s32.totalorder %s145, %s146
      %p158 = scmp.eq.s32.totalorder %s31, 1
      %p159 = por %p157, %p158
      %p161 = scmp.ne.s32.totalorder %s146, %s160
      %p162 = scmp.eq.s32.totalorder %s31, 0
      %p163 = por %p161, %p162
      %s165 = sadd.s32 %s164, 1
      %p168 = scmp.eq.s32.totalorder %s25, 1
      %p169 = scmp.ne.s32.totalorder %s164, %s166
      %p170 = scmp.eq.s32.totalorder %s25, 0
      %p171 = por %p169, %p170
      %p172 = scmp.ne.s32.totalorder %s164, %s166
      %p173 = scmp.eq.s32.totalorder %s30, 1
      %p174 = por %p172, %p173
      %p175 = scmp.ne.s32.totalorder %s166, %s167
      %p176 = scmp.eq.s32.totalorder %s30, 0
      %p177 = por %p175, %p176
      %p178 = scmp.ne.s32.totalorder %s166, %s167
      %p179 = scmp.eq.s32.totalorder %s31, 1
      %p180 = por %p178, %p179
      %p182 = scmp.ne.s32.totalorder %s167, %s181
      %p183 = scmp.eq.s32.totalorder %s31, 0
      %p184 = por %p182, %p183
      %s186 = sadd.s32 %s185, 1
      %p189 = scmp.eq.s32.totalorder %s25, 1
      %p190 = scmp.ne.s32.totalorder %s185, %s187
      %p191 = scmp.eq.s32.totalorder %s25, 0
      %p192 = por %p190, %p191
      %p193 = scmp.ne.s32.totalorder %s185, %s187
      %p194 = scmp.eq.s32.totalorder %s30, 1
      %p195 = por %p193, %p194
      %p196 = scmp.ne.s32.totalorder %s187, %s188
      %p197 = scmp.eq.s32.totalorder %s30, 0
      %p198 = por %p196, %p197
      %p199 = scmp.ne.s32.totalorder %s187, %s188
      %p200 = scmp.eq.s32.totalorder %s31, 1
      %p201 = por %p199, %p200
      %p203 = scmp.ne.s32.totalorder %s188, %s202
      %p204 = scmp.eq.s32.totalorder %s31, 0
      %p205 = por %p203, %p204
      %s207 = sadd.s32 %s206, 1
      %p210 = scmp.eq.s32.totalorder %s25, 1
      %p211 = scmp.ne.s32.totalorder %s206, %s208
      %p212 = scmp.eq.s32.totalorder %s25, 0
      %p213 = por %p211, %p212
      %p214 = scmp.ne.s32.totalorder %s206, %s208
      %p215 = scmp.eq.s32.totalorder %s30, 1
      %p216 = por %p214, %p215
      %p217 = scmp.ne.s32.totalorder %s208, %s209
      %p218 = scmp.eq.s32.totalorder %s30, 0
      %p219 = por %p217, %p218
      %p220 = scmp.ne.s32.totalorder %s208, %s209
      %p221 = scmp.eq.s32.totalorder %s31, 1
      %p222 = por %p220, %p221
      %p224 = scmp.ne.s32.totalorder %s209, %s223
      %p225 = scmp.eq.s32.totalorder %s31, 0
      %p226 = por %p224, %p225
      %s228 = sadd.s32 %s227, 1
      %p231 = scmp.eq.s32.totalorder %s25, 1
      %p232 = scmp.ne.s32.totalorder %s227, %s229
      %p233 = scmp.eq.s32.totalorder %s25, 0
      %p234 = por %p232, %p233
      %p235 = scmp.ne.s32.totalorder %s227, %s229
      %p236 = scmp.eq.s32.totalorder %s30, 1
      %p237 = por %p235, %p236
      %p238 = scmp.ne.s32.totalorder %s229, %s230
      %p239 = scmp.eq.s32.totalorder %s30, 0
      %p240 = por %p238, %p239
      %p241 = scmp.ne.s32.totalorder %s229, %s230
      %p242 = scmp.eq.s32.totalorder %s31, 1
      %p243 = por %p241, %p242
      %p245 = scmp.ne.s32.totalorder %s230, %s244
      %p246 = scmp.eq.s32.totalorder %s31, 0
      %p247 = por %p245, %p246
      %s249 = sadd.s32 %s248, 1
      %p252 = scmp.eq.s32.totalorder %s25, 1
      %p253 = scmp.ne.s32.totalorder %s248, %s250
      %p254 = scmp.eq.s32.totalorder %s25, 0
      %p255 = por %p253, %p254
      %p256 = scmp.ne.s32.totalorder %s248, %s250
      %p257 = scmp.eq.s32.totalorder %s30, 1
      %p258 = por %p256, %p257
      %p259 = scmp.ne.s32.totalorder %s250, %s251
      %p260 = scmp.eq.s32.totalorder %s30, 0
      %p261 = por %p259, %p260
      %p262 = scmp.ne.s32.totalorder %s250, %s251
      %p263 = scmp.eq.s32.totalorder %s31, 1
      %p264 = por %p262, %p263
      %p266 = scmp.ne.s32.totalorder %s251, %s265
      %p267 = scmp.eq.s32.totalorder %s31, 0
      %p268 = por %p266, %p267
      %s269 = ssub.s32 %s25, %s32
      %p270 = scmp.eq.s32.totalorder %s269, 0
      %s272 = sadd.s32 %s271, 1
      %s273 = scalar_select %p270, %s271, %s272
      %p276 = pneg %p270
      %p277 = scmp.eq.s32.totalorder %s25, 1
      %p278 = por %p276, %p277
      %p279 = scmp.ne.s32.totalorder %s271, %s274
      %p280 = scmp.eq.s32.totalorder %s25, 0
      %p281 = por %p279, %p280
      %p282 = scmp.ne.s32.totalorder %s271, %s274
      %p283 = scmp.eq.s32.totalorder %s30, 1
      %p284 = por %p282, %p283
      %p285 = scmp.ne.s32.totalorder %s274, %s275
      %p286 = scmp.eq.s32.totalorder %s30, 0
      %p287 = por %p285, %p286
      %p288 = scmp.ne.s32.totalorder %s274, %s275
      %p289 = scmp.eq.s32.totalorder %s31, 1
      %p290 = por %p288, %p289
      %p292 = scmp.ne.s32.totalorder %s275, %s291
      %p293 = scmp.eq.s32.totalorder %s31, 0
      %p294 = por %p292, %p293
      %p295 = scmp.le.s32.totalorder 1, %s25
      %p296 = scmp.lt.s32.totalorder %s25, 3
      %p297 = pnand %p295, %p296
      %p298 = pneg %p297
      // Predicated region
      $region9: #{tpu_custom_call.1} parent=5 // pred_check
        _
      $region10: #{tpu_custom_call.1} parent=5 // pred_check_branch
        %300 = sbr.rel (%p297) target = $region12
      $region11: #{tpu_custom_call.1} parent=5 // pred_region
        %s301 = ssub.s32 %s25, 1
        // Predicated region
        $region13: #{tpu_custom_call.1} parent=11 // pred_check
          %p302 = pneg %p72
        $region14: #{tpu_custom_call.1} parent=11 // pred_check_branch
          %304 = sbr.rel (%p302) target = $region16
        $region15: #{tpu_custom_call.1} parent=11 // pred_region
          %s306 = ssub.s32 1024, 1024
          %307 = vsyncadd [#allocation6], %s306
          %s308 = sshll.u32 [#allocation5], 4
          %s309 = int_to_ptr.vmem [resolvable:$true] %s308
          %314 = dma.hbm_to_vmem [thread:$0]  %s1, 1024, %s309, [#allocation6], 64, 64, 4
        $region16: #{tpu_custom_call.1} parent=11 // pred_fallthru
          _
        // Predicated region
        $region17: #{tpu_custom_call.1} parent=11 // pred_check
          %p315 = pneg %p93
        $region18: #{tpu_custom_call.1} parent=11 // pred_check_branch
          %317 = sbr.rel (%p315) target = $region20
        $region19: #{tpu_custom_call.1} parent=11 // pred_region
          %s319 = ssub.s32 1024, 1024
          %320 = vsyncadd [#allocation6], %s319
          %s321 = sshll.u32 [#allocation7], 4
          %s322 = int_to_ptr.vmem [resolvable:$true] %s321
          %327 = dma.hbm_to_vmem [thread:$0]  %s2, 1024, %s322, [#allocation6], 64, 64, 4
        $region20: #{tpu_custom_call.1} parent=11 // pred_fallthru
          _
        // Predicated region
        $region21: #{tpu_custom_call.1} parent=11 // pred_check
          %p328 = pneg %p114
        $region22: #{tpu_custom_call.1} parent=11 // pred_check_branch
          %330 = sbr.rel (%p328) target = $region24
        $region23: #{tpu_custom_call.1} parent=11 // pred_region
          _
        $region24: #{tpu_custom_call.1} parent=11 // pred_fallthru
          _
        // Predicated region
        $region25: #{tpu_custom_call.1} parent=11 // pred_check
          %p331 = pneg %p135
        $region26: #{tpu_custom_call.1} parent=11 // pred_check_branch
          %333 = sbr.rel (%p331) target = $region28
        $region27: #{tpu_custom_call.1} parent=11 // pred_region
          _
        $region28: #{tpu_custom_call.1} parent=11 // pred_fallthru
          _
        // Predicated region
        $region29: #{tpu_custom_call.1} parent=11 // pred_check
          %p334 = pneg %p156
        $region30: #{tpu_custom_call.1} parent=11 // pred_check_branch
          %336 = sbr.rel (%p334) target = $region32
        $region31: #{tpu_custom_call.1} parent=11 // pred_region
          _
        $region32: #{tpu_custom_call.1} parent=11 // pred_fallthru
          _
        // Predicated region
        $region33: #{tpu_custom_call.1} parent=11 // pred_check
          %p337 = pneg %p177
        $region34: #{tpu_custom_call.1} parent=11 // pred_check_branch
          %339 = sbr.rel (%p337) target = $region36
        $region35: #{tpu_custom_call.1} parent=11 // pred_region
          %s341 = ssub.s32 256, 256
          %342 = vsyncadd [#allocation9], %s341
          %s343 = sshll.u32 [#allocation8], 4
          %s344 = int_to_ptr.vmem [resolvable:$true] %s343
          %349 = dma.hbm_to_vmem [thread:$0]  %s6, 256, %s344, [#allocation9], 128, 128, 8
        $region36: #{tpu_custom_call.1} parent=11 // pred_fallthru
          _
        // Predicated region
        $region37: #{tpu_custom_call.1} parent=11 // pred_check
          %p350 = pneg %p198
        $region38: #{tpu_custom_call.1} parent=11 // pred_check_branch
          %352 = sbr.rel (%p350) target = $region40
        $region39: #{tpu_custom_call.1} parent=11 // pred_region
          _
        $region40: #{tpu_custom_call.1} parent=11 // pred_fallthru
          _
        // Predicated region
        $region41: #{tpu_custom_call.1} parent=11 // pred_check
          %p353 = pneg %p219
        $region42: #{tpu_custom_call.1} parent=11 // pred_check_branch
          %355 = sbr.rel (%p353) target = $region44
        $region43: #{tpu_custom_call.1} parent=11 // pred_region
          _
        $region44: #{tpu_custom_call.1} parent=11 // pred_fallthru
          _
        // Predicated region
        $region45: #{tpu_custom_call.1} parent=11 // pred_check
          %p356 = pneg %p240
        $region46: #{tpu_custom_call.1} parent=11 // pred_check_branch
          %358 = sbr.rel (%p356) target = $region48
        $region47: #{tpu_custom_call.1} parent=11 // pred_region
          %s360 = ssub.s32 1024, 1024
          %361 = vsyncadd [#allocation9], %s360
          %s362 = sshll.u32 [#allocation10], 4
          %s363 = int_to_ptr.vmem [resolvable:$true] %s362
          %368 = dma.hbm_to_vmem [thread:$0]  %s9, 1024, %s363, [#allocation9], 64, 64, 4
        $region48: #{tpu_custom_call.1} parent=11 // pred_fallthru
          _
        // Predicated region
        $region49: #{tpu_custom_call.1} parent=11 // pred_check
          %p369 = pneg %p261
        $region50: #{tpu_custom_call.1} parent=11 // pred_check_branch
          %371 = sbr.rel (%p369) target = $region52
        $region51: #{tpu_custom_call.1} parent=11 // pred_region
          _
        $region52: #{tpu_custom_call.1} parent=11 // pred_fallthru
          _
      $region12: #{tpu_custom_call.1} parent=5 // pred_fallthru
        _
      %p372 = scmp.lt.s32.totalorder %s25, 2
      // Predicated region
      $region53: #{tpu_custom_call.1} parent=5 // pred_check
        %p373 = pneg %p372
      $region54: #{tpu_custom_call.1} parent=5 // pred_check_branch
        %375 = sbr.rel (%p373) target = $region56
      $region55: #{tpu_custom_call.1} parent=5 // pred_region
        // Predicated region
        $region57: #{tpu_custom_call.1} parent=55 // pred_check
          %p376 = pneg %p45
        $region58: #{tpu_custom_call.1} parent=55 // pred_check_branch
          %378 = sbr.rel (%p376) target = $region60
        $region59: #{tpu_custom_call.1} parent=55 // pred_region
          %s379 = sand.u32 %s35, 1
          %s380 = scalar_lea.sflag [#allocation3], %s379
          %s381 = sand.u32 %s35, 1
          %s382 = smul.addr %s381, 128
          %s383 = scalar_lea.vmem [#allocation2], %s382
          %s385 = ssub.s32 2048, 2048
          %386 = vsyncadd %s380, %s385
          %s387 = smul.addr %s25, 32
          %s388 = smul.addr %s387, 64
          %s389 = scalar_lea.hbm %s0, %s388
          %s390 = sshll.u32 %s383, 4
          %s391 = int_to_ptr.vmem [resolvable:$true] %s390
          %396 = dma.hbm_to_vmem [thread:$0]  %s389, 2048, %s391, %s380, 64, 64, 4
        $region60: #{tpu_custom_call.1} parent=55 // pred_fallthru
          _
      $region56: #{tpu_custom_call.1} parent=5 // pred_fallthru
        _
      %p397 = scmp.le.s32.totalorder 1, %s25
      %p398 = scmp.lt.s32.totalorder %s25, 3
      %p399 = pnand %p397, %p398
      %p400 = pneg %p399
      // Predicated region
      $region61: #{tpu_custom_call.1} parent=5 // pred_check
        _
      $region62: #{tpu_custom_call.1} parent=5 // pred_check_branch
        %402 = sbr.rel (%p399) target = $region64
      $region63: #{tpu_custom_call.1} parent=5 // pred_region
        %s403 = ssub.s32 %s25, 1
        %s404 = sand.u32 %s38, 1
        %s405 = scalar_lea.sflag [#allocation3], %s404
        %s406 = sand.u32 %s38, 1
        %s407 = smul.addr %s406, 128
        %s408 = scalar_lea.vmem [#allocation2], %s407
        // Predicated region
        $region65: #{tpu_custom_call.1} parent=63 // pred_check
          %p409 = pneg %p51
        $region66: #{tpu_custom_call.1} parent=63 // pred_check_branch
          %411 = sbr.rel (%p409) target = $region68
        $region67: #{tpu_custom_call.1} parent=63 // pred_region
          %412 = dma.done %s405, 2048
        $region68: #{tpu_custom_call.1} parent=63 // pred_fallthru
          _
        // Predicated region
        $region69: #{tpu_custom_call.1} parent=63 // pred_check
          %p413 = pneg %p72
        $region70: #{tpu_custom_call.1} parent=63 // pred_check_branch
          %415 = sbr.rel (%p413) target = $region72
        $region71: #{tpu_custom_call.1} parent=63 // pred_region
          %416 = dma.done [#allocation6], 1024
        $region72: #{tpu_custom_call.1} parent=63 // pred_fallthru
          _
        // Predicated region
        $region73: #{tpu_custom_call.1} parent=63 // pred_check
          %p417 = pneg %p93
        $region74: #{tpu_custom_call.1} parent=63 // pred_check_branch
          %419 = sbr.rel (%p417) target = $region76
        $region75: #{tpu_custom_call.1} parent=63 // pred_region
          %420 = dma.done [#allocation6], 1024
        $region76: #{tpu_custom_call.1} parent=63 // pred_fallthru
          _
        // Predicated region
        $region77: #{tpu_custom_call.1} parent=63 // pred_check
          %p421 = pneg %p177
        $region78: #{tpu_custom_call.1} parent=63 // pred_check_branch
          %423 = sbr.rel (%p421) target = $region80
        $region79: #{tpu_custom_call.1} parent=63 // pred_region
          %424 = dma.done [#allocation9], 256
        $region80: #{tpu_custom_call.1} parent=63 // pred_fallthru
          _
        // Predicated region
        $region81: #{tpu_custom_call.1} parent=63 // pred_check
          %p425 = pneg %p240
        $region82: #{tpu_custom_call.1} parent=63 // pred_check_branch
          %427 = sbr.rel (%p425) target = $region84
        $region83: #{tpu_custom_call.1} parent=63 // pred_region
          %428 = dma.done [#allocation9], 1024
        $region84: #{tpu_custom_call.1} parent=63 // pred_fallthru
          _
        %s429 = sand.u32 %s38, 1
        %s430 = scalar_lea.sflag [#allocation3], %s429
        %s431 = sand.u32 %s38, 1
        %s432 = smul.addr %s431, 128
        %s433 = scalar_lea.vmem [#allocation2], %s432
        %p434 = pneg %p51
        %p435 = pneg %p48
        %p436 = pneg %p72
        %p437 = pneg %p69
        %p438 = pneg %p93
        %p439 = pneg %p90
        %p440 = pneg %p114
        %p441 = pneg %p111
        %p442 = pneg %p135
        %p443 = pneg %p132
        %p444 = pneg %p156
        %p445 = pneg %p153
        %p446 = pneg %p177
        %p447 = pneg %p174
        %p448 = pneg %p198
        %p449 = pneg %p195
        %p450 = pneg %p219
        %p451 = pneg %p216
        %p452 = pneg %p240
        %p453 = pneg %p237
        %p454 = pneg %p261
        %p455 = pneg %p258
        %p456 = pneg %p287
        %p457 = pneg %p284
        %s458 = sand.u32 %s274, 1
        %s459 = scalar_lea.sflag [#allocation4], %s458
        %s460 = sand.u32 %s274, 1
        %s461 = smul.addr %s460, 256
        %s462 = scalar_lea.vmem [#allocation11], %s461
        %v464 = vld [vmem:[%s408] sm:$0xf]
        %v465 = vld [vmem:[%s408 + $0x4] sm:$0xf]
        %v466 = vld [vmem:[%s408 + $0x8] sm:$0xf]
        %v467 = vld [vmem:[%s408 + $0xc] sm:$0xf]
        %v468 = vld [vmem:[%s408 + $0x10] sm:$0xf]
        %v469 = vld [vmem:[%s408 + $0x14] sm:$0xf]
        %v470 = vld [vmem:[%s408 + $0x18] sm:$0xf]
        %v471 = vld [vmem:[%s408 + $0x1c] sm:$0xf]
        %v472 = vld [vmem:[%s408 + $0x20] sm:$0xf]
        %v473 = vld [vmem:[%s408 + $0x24] sm:$0xf]
        %v474 = vld [vmem:[%s408 + $0x28] sm:$0xf]
        %v475 = vld [vmem:[%s408 + $0x2c] sm:$0xf]
        %v476 = vld [vmem:[%s408 + $0x30] sm:$0xf]
        %v477 = vld [vmem:[%s408 + $0x34] sm:$0xf]
        %v478 = vld [vmem:[%s408 + $0x38] sm:$0xf]
        %v479 = vld [vmem:[%s408 + $0x3c] sm:$0xf]
        %v480 = vld [vmem:[%s408 + $0x40] sm:$0xf]
        %v481 = vld [vmem:[%s408 + $0x44] sm:$0xf]
        %v482 = vld [vmem:[%s408 + $0x48] sm:$0xf]
        %v483 = vld [vmem:[%s408 + $0x4c] sm:$0xf]
        %v484 = vld [vmem:[%s408 + $0x50] sm:$0xf]
        %v485 = vld [vmem:[%s408 + $0x54] sm:$0xf]
        %v486 = vld [vmem:[%s408 + $0x58] sm:$0xf]
        %v487 = vld [vmem:[%s408 + $0x5c] sm:$0xf]
        %v488 = vld [vmem:[%s408 + $0x60] sm:$0xf]
        %v489 = vld [vmem:[%s408 + $0x64] sm:$0xf]
        %v490 = vld [vmem:[%s408 + $0x68] sm:$0xf]
        %v491 = vld [vmem:[%s408 + $0x6c] sm:$0xf]
        %v492 = vld [vmem:[%s408 + $0x70] sm:$0xf]
        %v493 = vld [vmem:[%s408 + $0x74] sm:$0xf]
        %v494 = vld [vmem:[%s408 + $0x78] sm:$0xf]
        %v495 = vld [vmem:[%s408 + $0x7c] sm:$0xf]
        %v496 = vld [vmem:[#allocation5] sm:$0xf]
        %v497 = vld [vmem:[#allocation5 + $0x4] sm:$0xf]
        %v498 = vld [vmem:[#allocation5 + $0x8] sm:$0xf]
        %v499 = vld [vmem:[#allocation5 + $0xc] sm:$0xf]
        %v500 = vld [vmem:[#allocation5 + $0x10] sm:$0xf]
        %v501 = vld [vmem:[#allocation5 + $0x14] sm:$0xf]
        %v502 = vld [vmem:[#allocation5 + $0x18] sm:$0xf]
        %v503 = vld [vmem:[#allocation5 + $0x1c] sm:$0xf]
        %v504 = vld [vmem:[#allocation5 + $0x20] sm:$0xf]
        %v505 = vld [vmem:[#allocation5 + $0x24] sm:$0xf]
        %v506 = vld [vmem:[#allocation5 + $0x28] sm:$0xf]
        %v507 = vld [vmem:[#allocation5 + $0x2c] sm:$0xf]
        %v508 = vld [vmem:[#allocation5 + $0x30] sm:$0xf]
        %v509 = vld [vmem:[#allocation5 + $0x34] sm:$0xf]
        %v510 = vld [vmem:[#allocation5 + $0x38] sm:$0xf]
        %v511 = vld [vmem:[#allocation5 + $0x3c] sm:$0xf]
        %v512 = vld [vmem:[%s3] sm:$0x1]
        %v514 = vlaneseq
        %v515 = vshrl.u32 %v514, 7
        %v516 = vsub.s32 0, %v515
        %v517 = vrot.slane %v512, %v516
        %v551 = vunpack.c.l.b16 %v464
        %v552 = vunpack.c.l.b16 %v465
        %v553 = vunpack.c.l.b16 %v466
        %v554 = vunpack.c.l.b16 %v467
        %v555 = vunpack.c.l.b16 %v468
        %v556 = vunpack.c.l.b16 %v469
        %v557 = vunpack.c.l.b16 %v470
        %v558 = vunpack.c.l.b16 %v471
        %v559 = vunpack.c.l.b16 %v472
        %v560 = vunpack.c.l.b16 %v473
        %v561 = vunpack.c.l.b16 %v474
        %v562 = vunpack.c.l.b16 %v475
        %v563 = vunpack.c.l.b16 %v476
        %v564 = vunpack.c.l.b16 %v477
        %v565 = vunpack.c.l.b16 %v478
        %v566 = vunpack.c.l.b16 %v479
        %v567 = vunpack.c.l.b16 %v480
        %v568 = vunpack.c.l.b16 %v481
        %v569 = vunpack.c.l.b16 %v482
        %v570 = vunpack.c.l.b16 %v483
        %v571 = vunpack.c.l.b16 %v484
        %v572 = vunpack.c.l.b16 %v485
        %v573 = vunpack.c.l.b16 %v486
        %v574 = vunpack.c.l.b16 %v487
        %v575 = vunpack.c.l.b16 %v488
        %v576 = vunpack.c.l.b16 %v489
        %v577 = vunpack.c.l.b16 %v490
        %v578 = vunpack.c.l.b16 %v491
        %v579 = vunpack.c.l.b16 %v492
        %v580 = vunpack.c.l.b16 %v493
        %v581 = vunpack.c.l.b16 %v494
        %v582 = vunpack.c.l.b16 %v495
        %v583 = vpack.c.b16 %v552, %v551
        %v584 = vpack.c.b16 %v554, %v553
        %v585 = vpack.c.b16 %v556, %v555
        %v586 = vpack.c.b16 %v558, %v557
        %v587 = vpack.c.b16 %v560, %v559
        %v588 = vpack.c.b16 %v562, %v561
        %v589 = vpack.c.b16 %v564, %v563
        %v590 = vpack.c.b16 %v566, %v565
        %v591 = vpack.c.b16 %v568, %v567
        %v592 = vpack.c.b16 %v570, %v569
        %v593 = vpack.c.b16 %v572, %v571
        %v594 = vpack.c.b16 %v574, %v573
        %v595 = vpack.c.b16 %v576, %v575
        %v596 = vpack.c.b16 %v578, %v577
        %v597 = vpack.c.b16 %v580, %v579
        %v598 = vpack.c.b16 %v582, %v581
        %v631 = vunpack.c.l.b16 %v496
        %v632 = vunpack.c.l.b16 %v497
        %v633 = vunpack.c.l.b16 %v498
        %v634 = vunpack.c.l.b16 %v499
        %v635 = vunpack.c.l.b16 %v500
        %v636 = vunpack.c.l.b16 %v501
        %v637 = vunpack.c.l.b16 %v502
        %v638 = vunpack.c.l.b16 %v503
        %v639 = vunpack.c.l.b16 %v504
        %v640 = vunpack.c.l.b16 %v505
        %v641 = vunpack.c.l.b16 %v506
        %v642 = vunpack.c.l.b16 %v507
        %v643 = vunpack.c.l.b16 %v508
        %v644 = vunpack.c.l.b16 %v509
        %v645 = vunpack.c.l.b16 %v510
        %v646 = vunpack.c.l.b16 %v511
        %v647 = vpack.c.b16 %v632, %v631
        %v648 = vpack.c.b16 %v634, %v633
        %v649 = vpack.c.b16 %v636, %v635
        %v650 = vpack.c.b16 %v638, %v637
        %v651 = vpack.c.b16 %v640, %v639
        %v652 = vpack.c.b16 %v642, %v641
        %v653 = vpack.c.b16 %v644, %v643
        %v654 = vpack.c.b16 %v646, %v645
        %663 = vmatprep.subr.bf16.mxu0 0
        %664 = vmatpush1.bf16.msra.mxu0 %v647
        %665 = vmatprep.subr.bf16.mxu0 0
        %666 = vmatpush1.bf16.msra.mxu0 %v648
        %667 = vmatprep.subr.bf16.mxu0 0
        %668 = vmatpush1.bf16.msra.mxu0 %v649
        %669 = vmatprep.subr.bf16.mxu0 0
        %670 = vmatpush1.bf16.msra.mxu0 %v650
        %671 = vmatprep.subr.bf16.mxu0 0
        %672 = vmatpush1.bf16.msra.mxu0 %v651
        %673 = vmatprep.subr.bf16.mxu0 0
        %674 = vmatpush1.bf16.msra.mxu0 %v652
        %675 = vmatprep.subr.bf16.mxu0 0
        %676 = vmatpush1.bf16.msra.mxu0 %v653
        %677 = vmatprep.subr.bf16.mxu0 0
        %678 = vmatpush1.bf16.msra.mxu0 %v654
        %679 = vmatprep.subr.bf16.mxu0 0
        %680 = vmatpush1.bf16.msra.mxu0 0
        %681 = vmatprep.subr.bf16.mxu0 0
        %682 = vmatpush1.bf16.msra.mxu0 0
        %683 = vmatprep.subr.bf16.mxu0 0
        %684 = vmatpush1.bf16.msra.mxu0 0
        %685 = vmatprep.subr.bf16.mxu0 0
        %686 = vmatpush1.bf16.msra.mxu0 0
        %687 = vmatprep.subr.bf16.mxu0 0
        %688 = vmatpush1.bf16.msra.mxu0 0
        %689 = vmatprep.subr.bf16.mxu0 0
        %690 = vmatpush1.bf16.msra.mxu0 0
        %691 = vmatprep.subr.bf16.mxu0 0
        %692 = vmatpush1.bf16.msra.mxu0 0
        %693 = vmatprep.subr.bf16.mxu0 0
        %694 = vmatpush1.bf16.msra.mxu0 0
        %695 = vmatprep.mubr.bf16.mxu0 0
        %696 = vmatmul.mubr.bf16.gmra.mrb[0].mxu0 %v583
        %v697 = vpop.f32.mrb[0].mxu0
        %v698 = vadd.f32 %v517, %v697
        %v699 = vpop.f32.mrb[0].mxu0
        %v700 = vpop.f32.mrb[0].mxu0
        %v701 = vadd.f32 %v517, %v700
        %v702 = vpop.f32.mrb[0].mxu0
        %703 = vmatprep.mubr.bf16.mxu0 0
        %704 = vmatmul.mubr.bf16.gmra.mrb[0].mxu0 %v584
        %v705 = vpop.f32.mrb[0].mxu0
        %v706 = vadd.f32 %v517, %v705
        %v707 = vpop.f32.mrb[0].mxu0
        %v708 = vpop.f32.mrb[0].mxu0
        %v709 = vadd.f32 %v517, %v708
        %v710 = vpop.f32.mrb[0].mxu0
        %711 = vmatprep.mubr.bf16.mxu0 0
        %712 = vmatmul.mubr.bf16.gmra.mrb[0].mxu0 %v585
        %v713 = vpop.f32.mrb[0].mxu0
        %v714 = vadd.f32 %v517, %v713
        %v715 = vpop.f32.mrb[0].mxu0
        %v716 = vpop.f32.mrb[0].mxu0
        %v717 = vadd.f32 %v517, %v716
        %v718 = vpop.f32.mrb[0].mxu0
        %719 = vmatprep.mubr.bf16.mxu0 0
        %720 = vmatmul.mubr.bf16.gmra.mrb[0].mxu0 %v586
        %v721 = vpop.f32.mrb[0].mxu0
        %v722 = vadd.f32 %v517, %v721
        %v723 = vpop.f32.mrb[0].mxu0
        %v724 = vpop.f32.mrb[0].mxu0
        %v725 = vadd.f32 %v517, %v724
        %v726 = vpop.f32.mrb[0].mxu0
        %727 = vmatprep.mubr.bf16.mxu0 0
        %728 = vmatmul.mubr.bf16.gmra.mrb[0].mxu0 %v587
        %v729 = vpop.f32.mrb[0].mxu0
        %v730 = vadd.f32 %v517, %v729
        %v731 = vpop.f32.mrb[0].mxu0
        %v732 = vpop.f32.mrb[0].mxu0
        %v733 = vadd.f32 %v517, %v732
        %v734 = vpop.f32.mrb[0].mxu0
        %735 = vmatprep.mubr.bf16.mxu0 0
        %736 = vmatmul.mubr.bf16.gmra.mrb[0].mxu0 %v588
        %v737 = vpop.f32.mrb[0].mxu0
        %v738 = vadd.f32 %v517, %v737
        %v739 = vpop.f32.mrb[0].mxu0
        %v740 = vpop.f32.mrb[0].mxu0
        %v741 = vadd.f32 %v517, %v740
        %v742 = vpop.f32.mrb[0].mxu0
        %743 = vmatprep.mubr.bf16.mxu0 0
        %744 = vmatmul.mubr.bf16.gmra.mrb[0].mxu0 %v589
        %v745 = vpop.f32.mrb[0].mxu0
        %v746 = vadd.f32 %v517, %v745
        %v747 = vpop.f32.mrb[0].mxu0
        %v748 = vpop.f32.mrb[0].mxu0
        %v749 = vadd.f32 %v517, %v748
        %v750 = vpop.f32.mrb[0].mxu0
        %751 = vmatprep.mubr.bf16.mxu0 0
        %752 = vmatmul.mubr.bf16.gmra.mrb[0].mxu0 %v590
        %v753 = vpop.f32.mrb[0].mxu0
        %v754 = vadd.f32 %v517, %v753
        %v755 = vpop.f32.mrb[0].mxu0
        %v756 = vpop.f32.mrb[0].mxu0
        %v757 = vadd.f32 %v517, %v756
        %v758 = vpop.f32.mrb[0].mxu0
        %759 = vmatprep.mubr.bf16.mxu0 0
        %760 = vmatmul.mubr.bf16.gmra.mrb[0].mxu0 %v591
        %v761 = vpop.f32.mrb[0].mxu0
        %v762 = vadd.f32 %v517, %v761
        %v763 = vpop.f32.mrb[0].mxu0
        %v764 = vpop.f32.mrb[0].mxu0
        %v765 = vadd.f32 %v517, %v764
        %v766 = vpop.f32.mrb[0].mxu0
        %767 = vmatprep.mubr.bf16.mxu0 0
        %768 = vmatmul.mubr.bf16.gmra.mrb[0].mxu0 %v592
        %v769 = vpop.f32.mrb[0].mxu0
        %v770 = vadd.f32 %v517, %v769
        %v771 = vpop.f32.mrb[0].mxu0
        %v772 = vpop.f32.mrb[0].mxu0
        %v773 = vadd.f32 %v517, %v772
        %v774 = vpop.f32.mrb[0].mxu0
        %775 = vmatprep.mubr.bf16.mxu0 0
        %776 = vmatmul.mubr.bf16.gmra.mrb[0].mxu0 %v593
        %v777 = vpop.f32.mrb[0].mxu0
        %v778 = vadd.f32 %v517, %v777
        %v779 = vpop.f32.mrb[0].mxu0
        %v780 = vpop.f32.mrb[0].mxu0
        %v781 = vadd.f32 %v517, %v780
        %v782 = vpop.f32.mrb[0].mxu0
        %783 = vmatprep.mubr.bf16.mxu0 0
        %784 = vmatmul.mubr.bf16.gmra.mrb[0].mxu0 %v594
        %v785 = vpop.f32.mrb[0].mxu0
        %v786 = vadd.f32 %v517, %v785
        %v787 = vpop.f32.mrb[0].mxu0
        %v788 = vpop.f32.mrb[0].mxu0
        %v789 = vadd.f32 %v517, %v788
        %v790 = vpop.f32.mrb[0].mxu0
        %791 = vmatprep.mubr.bf16.mxu0 0
        %792 = vmatmul.mubr.bf16.gmra.mrb[0].mxu0 %v595
        %v793 = vpop.f32.mrb[0].mxu0
        %v794 = vadd.f32 %v517, %v793
        %v795 = vpop.f32.mrb[0].mxu0
        %v796 = vpop.f32.mrb[0].mxu0
        %v797 = vadd.f32 %v517, %v796
        %v798 = vpop.f32.mrb[0].mxu0
        %799 = vmatprep.mubr.bf16.mxu0 0
        %800 = vmatmul.mubr.bf16.gmra.mrb[0].mxu0 %v596
        %v801 = vpop.f32.mrb[0].mxu0
        %v802 = vadd.f32 %v517, %v801
        %v803 = vpop.f32.mrb[0].mxu0
        %v804 = vpop.f32.mrb[0].mxu0
        %v805 = vadd.f32 %v517, %v804
        %v806 = vpop.f32.mrb[0].mxu0
        %807 = vmatprep.mubr.bf16.mxu0 0
        %808 = vmatmul.mubr.bf16.gmra.mrb[0].mxu0 %v597
        %v809 = vpop.f32.mrb[0].mxu0
        %v810 = vadd.f32 %v517, %v809
        %v811 = vpop.f32.mrb[0].mxu0
        %v812 = vpop.f32.mrb[0].mxu0
        %v813 = vadd.f32 %v517, %v812
        %v814 = vpop.f32.mrb[0].mxu0
        %815 = vmatprep.mubr.bf16.mxu0 0
        %816 = vmatmul.mubr.bf16.gmra.mrb[0].mxu0 %v598
        %v817 = vpop.f32.mrb[0].mxu0
        %v818 = vadd.f32 %v517, %v817
        %v819 = vpop.f32.mrb[0].mxu0
        %v820 = vpop.f32.mrb[0].mxu0
        %v821 = vadd.f32 %v517, %v820
        %v822 = vpop.f32.mrb[0].mxu0
        %823 = vdwg.mxu0
        %v824 = vld [vmem:[#allocation7] sm:$0xf]
        %v825 = vld [vmem:[#allocation7 + $0x4] sm:$0xf]
        %v826 = vld [vmem:[#allocation7 + $0x8] sm:$0xf]
        %v827 = vld [vmem:[#allocation7 + $0xc] sm:$0xf]
        %v828 = vld [vmem:[#allocation7 + $0x10] sm:$0xf]
        %v829 = vld [vmem:[#allocation7 + $0x14] sm:$0xf]
        %v830 = vld [vmem:[#allocation7 + $0x18] sm:$0xf]
        %v831 = vld [vmem:[#allocation7 + $0x1c] sm:$0xf]
        %v832 = vld [vmem:[#allocation7 + $0x20] sm:$0xf]
        %v833 = vld [vmem:[#allocation7 + $0x24] sm:$0xf]
        %v834 = vld [vmem:[#allocation7 + $0x28] sm:$0xf]
        %v835 = vld [vmem:[#allocation7 + $0x2c] sm:$0xf]
        %v836 = vld [vmem:[#allocation7 + $0x30] sm:$0xf]
        %v837 = vld [vmem:[#allocation7 + $0x34] sm:$0xf]
        %v838 = vld [vmem:[#allocation7 + $0x38] sm:$0xf]
        %v839 = vld [vmem:[#allocation7 + $0x3c] sm:$0xf]
        %v840 = vld [vmem:[%s4] sm:$0x1]
        %v842 = vlaneseq
        %v843 = vshrl.u32 %v842, 7
        %v844 = vsub.s32 0, %v843
        %v845 = vrot.slane %v840, %v844
        %v863 = vunpack.c.l.b16 %v824
        %v864 = vunpack.c.l.b16 %v825
        %v865 = vunpack.c.l.b16 %v826
        %v866 = vunpack.c.l.b16 %v827
        %v867 = vunpack.c.l.b16 %v828
        %v868 = vunpack.c.l.b16 %v829
        %v869 = vunpack.c.l.b16 %v830
        %v870 = vunpack.c.l.b16 %v831
        %v871 = vunpack.c.l.b16 %v832
        %v872 = vunpack.c.l.b16 %v833
        %v873 = vunpack.c.l.b16 %v834
        %v874 = vunpack.c.l.b16 %v835
        %v875 = vunpack.c.l.b16 %v836
        %v876 = vunpack.c.l.b16 %v837
        %v877 = vunpack.c.l.b16 %v838
        %v878 = vunpack.c.l.b16 %v839
        %v879 = vpack.c.b16 %v864, %v863
        %v880 = vpack.c.b16 %v866, %v865
        %v881 = vpack.c.b16 %v868, %v867
        %v882 = vpack.c.b16 %v870, %v869
        %v883 = vpack.c.b16 %v872, %v871
        %v884 = vpack.c.b16 %v874, %v873
        %v885 = vpack.c.b16 %v876, %v875
        %v886 = vpack.c.b16 %v878, %v877
        %895 = vmatprep.subr.bf16.mxu0 0
        %896 = vmatpush1.bf16.msra.mxu0 %v879
        %897 = vmatprep.subr.bf16.mxu0 0
        %898 = vmatpush1.bf16.msra.mxu0 %v880
        %899 = vmatprep.subr.bf16.mxu0 0
        %900 = vmatpush1.bf16.msra.mxu0 %v881
        %901 = vmatprep.subr.bf16.mxu0 0
        %902 = vmatpush1.bf16.msra.mxu0 %v882
        %903 = vmatprep.subr.bf16.mxu0 0
        %904 = vmatpush1.bf16.msra.mxu0 %v883
        %905 = vmatprep.subr.bf16.mxu0 0
        %906 = vmatpush1.bf16.msra.mxu0 %v884
        %907 = vmatprep.subr.bf16.mxu0 0
        %908 = vmatpush1.bf16.msra.mxu0 %v885
        %909 = vmatprep.subr.bf16.mxu0 0
        %910 = vmatpush1.bf16.msra.mxu0 %v886
        %911 = vmatprep.subr.bf16.mxu0 0
        %912 = vmatpush1.bf16.msra.mxu0 0
        %913 = vmatprep.subr.bf16.mxu0 0
        %914 = vmatpush1.bf16.msra.mxu0 0
        %915 = vmatprep.subr.bf16.mxu0 0
        %916 = vmatpush1.bf16.msra.mxu0 0
        %917 = vmatprep.subr.bf16.mxu0 0
        %918 = vmatpush1.bf16.msra.mxu0 0
        %919 = vmatprep.subr.bf16.mxu0 0
        %920 = vmatpush1.bf16.msra.mxu0 0
        %921 = vmatprep.subr.bf16.mxu0 0
        %922 = vmatpush1.bf16.msra.mxu0 0
        %923 = vmatprep.subr.bf16.mxu0 0
        %924 = vmatpush1.bf16.msra.mxu0 0
        %925 = vmatprep.subr.bf16.mxu0 0
        %926 = vmatpush1.bf16.msra.mxu0 0
        %927 = vmatprep.mubr.bf16.mxu0 0
        %928 = vmatmul.mubr.bf16.gmra.mrb[0].mxu0 %v583
        %v929 = vpop.f32.mrb[0].mxu0
        %v930 = vadd.f32 %v845, %v929
        %v931 = vpop.f32.mrb[0].mxu0
        %v932 = vpop.f32.mrb[0].mxu0
        %v933 = vadd.f32 %v845, %v932
        %v934 = vpop.f32.mrb[0].mxu0
        %935 = vmatprep.mubr.bf16.mxu0 0
        %936 = vmatmul.mubr.bf16.gmra.mrb[0].mxu0 %v584
        %v937 = vpop.f32.mrb[0].mxu0
        %v938 = vadd.f32 %v845, %v937
        %v939 = vpop.f32.mrb[0].mxu0
        %v940 = vpop.f32.mrb[0].mxu0
        %v941 = vadd.f32 %v845, %v940
        %v942 = vpop.f32.mrb[0].mxu0
        %943 = vmatprep.mubr.bf16.mxu0 0
        %944 = vmatmul.mubr.bf16.gmra.mrb[0].mxu0 %v585
        %v945 = vpop.f32.mrb[0].mxu0
        %v946 = vadd.f32 %v845, %v945
        %v947 = vpop.f32.mrb[0].mxu0
        %v948 = vpop.f32.mrb[0].mxu0
        %v949 = vadd.f32 %v845, %v948
        %v950 = vpop.f32.mrb[0].mxu0
        %951 = vmatprep.mubr.bf16.mxu0 0
        %952 = vmatmul.mubr.bf16.gmra.mrb[0].mxu0 %v586
        %v953 = vpop.f32.mrb[0].mxu0
        %v954 = vadd.f32 %v845, %v953
        %v955 = vpop.f32.mrb[0].mxu0
        %v956 = vpop.f32.mrb[0].mxu0
        %v957 = vadd.f32 %v845, %v956
        %v958 = vpop.f32.mrb[0].mxu0
        %959 = vmatprep.mubr.bf16.mxu0 0
        %960 = vmatmul.mubr.bf16.gmra.mrb[0].mxu0 %v587
        %v961 = vpop.f32.mrb[0].mxu0
        %v962 = vadd.f32 %v845, %v961
        %v963 = vpop.f32.mrb[0].mxu0
        %v964 = vpop.f32.mrb[0].mxu0
        %v965 = vadd.f32 %v845, %v964
        %v966 = vpop.f32.mrb[0].mxu0
        %967 = vmatprep.mubr.bf16.mxu0 0
        %968 = vmatmul.mubr.bf16.gmra.mrb[0].mxu0 %v588
        %v969 = vpop.f32.mrb[0].mxu0
        %v970 = vadd.f32 %v845, %v969
        %v971 = vpop.f32.mrb[0].mxu0
        %v972 = vpop.f32.mrb[0].mxu0
        %v973 = vadd.f32 %v845, %v972
        %v974 = vpop.f32.mrb[0].mxu0
        %975 = vmatprep.mubr.bf16.mxu0 0
        %976 = vmatmul.mubr.bf16.gmra.mrb[0].mxu0 %v589
        %v977 = vpop.f32.mrb[0].mxu0
        %v978 = vadd.f32 %v845, %v977
        %v979 = vpop.f32.mrb[0].mxu0
        %v980 = vpop.f32.mrb[0].mxu0
        %v981 = vadd.f32 %v845, %v980
        %v982 = vpop.f32.mrb[0].mxu0
        %983 = vmatprep.mubr.bf16.mxu0 0
        %984 = vmatmul.mubr.bf16.gmra.mrb[0].mxu0 %v590
        %v985 = vpop.f32.mrb[0].mxu0
        %v986 = vadd.f32 %v845, %v985
        %v987 = vpop.f32.mrb[0].mxu0
        %v988 = vpop.f32.mrb[0].mxu0
        %v989 = vadd.f32 %v845, %v988
        %v990 = vpop.f32.mrb[0].mxu0
        %991 = vmatprep.mubr.bf16.mxu0 0
        %992 = vmatmul.mubr.bf16.gmra.mrb[0].mxu0 %v591
        %v993 = vpop.f32.mrb[0].mxu0
        %v994 = vadd.f32 %v845, %v993
        %v995 = vpop.f32.mrb[0].mxu0
        %v996 = vpop.f32.mrb[0].mxu0
        %v997 = vadd.f32 %v845, %v996
        %v998 = vpop.f32.mrb[0].mxu0
        %999 = vmatprep.mubr.bf16.mxu0 0
        %1000 = vmatmul.mubr.bf16.gmra.mrb[0].mxu0 %v592
        %v1001 = vpop.f32.mrb[0].mxu0
        %v1002 = vadd.f32 %v845, %v1001
        %v1003 = vpop.f32.mrb[0].mxu0
        %v1004 = vpop.f32.mrb[0].mxu0
        %v1005 = vadd.f32 %v845, %v1004
        %v1006 = vpop.f32.mrb[0].mxu0
        %1007 = vmatprep.mubr.bf16.mxu0 0
        %1008 = vmatmul.mubr.bf16.gmra.mrb[0].mxu0 %v593
        %v1009 = vpop.f32.mrb[0].mxu0
        %v1010 = vadd.f32 %v845, %v1009
        %v1011 = vpop.f32.mrb[0].mxu0
        %v1012 = vpop.f32.mrb[0].mxu0
        %v1013 = vadd.f32 %v845, %v1012
        %v1014 = vpop.f32.mrb[0].mxu0
        %1015 = vmatprep.mubr.bf16.mxu0 0
        %1016 = vmatmul.mubr.bf16.gmra.mrb[0].mxu0 %v594
        %v1017 = vpop.f32.mrb[0].mxu0
        %v1018 = vadd.f32 %v845, %v1017
        %v1019 = vpop.f32.mrb[0].mxu0
        %v1020 = vpop.f32.mrb[0].mxu0
        %v1021 = vadd.f32 %v845, %v1020
        %v1022 = vpop.f32.mrb[0].mxu0
        %1023 = vmatprep.mubr.bf16.mxu0 0
        %1024 = vmatmul.mubr.bf16.gmra.mrb[0].mxu0 %v595
        %v1025 = vpop.f32.mrb[0].mxu0
        %v1026 = vadd.f32 %v845, %v1025
        %v1027 = vpop.f32.mrb[0].mxu0
        %v1028 = vpop.f32.mrb[0].mxu0
        %v1029 = vadd.f32 %v845, %v1028
        %v1030 = vpop.f32.mrb[0].mxu0
        %1031 = vmatprep.mubr.bf16.mxu0 0
        %1032 = vmatmul.mubr.bf16.gmra.mrb[0].mxu0 %v596
        %v1033 = vpop.f32.mrb[0].mxu0
        %v1034 = vadd.f32 %v845, %v1033
        %v1035 = vpop.f32.mrb[0].mxu0
        %v1036 = vpop.f32.mrb[0].mxu0
        %v1037 = vadd.f32 %v845, %v1036
        %v1038 = vpop.f32.mrb[0].mxu0
        %1039 = vmatprep.mubr.bf16.mxu0 0
        %1040 = vmatmul.mubr.bf16.gmra.mrb[0].mxu0 %v597
        %v1041 = vpop.f32.mrb[0].mxu0
        %v1042 = vadd.f32 %v845, %v1041
        %v1043 = vpop.f32.mrb[0].mxu0
        %v1044 = vpop.f32.mrb[0].mxu0
        %v1045 = vadd.f32 %v845, %v1044
        %v1046 = vpop.f32.mrb[0].mxu0
        %1047 = vmatprep.mubr.bf16.mxu0 0
        %1048 = vmatmul.mubr.bf16.gmra.mrb[0].mxu0 %v598
        %v1049 = vpop.f32.mrb[0].mxu0
        %v1050 = vadd.f32 %v845, %v1049
        %v1051 = vpop.f32.mrb[0].mxu0
        %v1052 = vpop.f32.mrb[0].mxu0
        %v1053 = vadd.f32 %v845, %v1052
        %v1054 = vpop.f32.mrb[0].mxu0
        %1055 = vdwg.mxu0
        %v1056 = vld [vmem:[%s5] sm:$0xff]
        %v1057 = vld [vmem:[%s5 + $0x8] sm:$0x1]
        %v1058 = vld [vmem:[%s7] sm:$0x1]
        %vm1091 = vcmask 1040384
        %v1092 = vrot.slane %v698, 7
        %v1093 = vrot.slane %v701, 7
        %v1094 = vsel %vm1091, %v1092, %v1093
        %v1095 = vrot.slane %v706, 7
        %v1096 = vrot.slane %v709, 7
        %v1097 = vsel %vm1091, %v1095, %v1096
        %v1098 = vrot.slane %v714, 7
        %v1099 = vrot.slane %v717, 7
        %v1100 = vsel %vm1091, %v1098, %v1099
        %v1101 = vrot.slane %v722, 7
        %v1102 = vrot.slane %v725, 7
        %v1103 = vsel %vm1091, %v1101, %v1102
        %v1104 = vrot.slane %v730, 7
        %v1105 = vrot.slane %v733, 7
        %v1106 = vsel %vm1091, %v1104, %v1105
        %v1107 = vrot.slane %v738, 7
        %v1108 = vrot.slane %v741, 7
        %v1109 = vsel %vm1091, %v1107, %v1108
        %v1110 = vrot.slane %v746, 7
        %v1111 = vrot.slane %v749, 7
        %v1112 = vsel %vm1091, %v1110, %v1111
        %v1113 = vrot.slane %v754, 7
        %v1114 = vrot.slane %v757, 7
        %v1115 = vsel %vm1091, %v1113, %v1114
        %v1116 = vrot.slane %v762, 7
        %v1117 = vrot.slane %v765, 7
        %v1118 = vsel %vm1091, %v1116, %v1117
        %v1119 = vrot.slane %v770, 7
        %v1120 = vrot.slane %v773, 7
        %v1121 = vsel %vm1091, %v1119, %v1120
        %v1122 = vrot.slane %v778, 7
        %v1123 = vrot.slane %v781, 7
        %v1124 = vsel %vm1091, %v1122, %v1123
        %v1125 = vrot.slane %v786, 7
        %v1126 = vrot.slane %v789, 7
        %v1127 = vsel %vm1091, %v1125, %v1126
        %v1128 = vrot.slane %v794, 7
        %v1129 = vrot.slane %v797, 7
        %v1130 = vsel %vm1091, %v1128, %v1129
        %v1131 = vrot.slane %v802, 7
        %v1132 = vrot.slane %v805, 7
        %v1133 = vsel %vm1091, %v1131, %v1132
        %v1134 = vrot.slane %v810, 7
        %v1135 = vrot.slane %v813, 7
        %v1136 = vsel %vm1091, %v1134, %v1135
        %v1137 = vrot.slane %v818, 7
        %v1138 = vrot.slane %v821, 7
        %v1139 = vsel %vm1091, %v1137, %v1138
        %v1172 = vsel %vm1091, 0.0, %v1092
        %v1173 = vsel %vm1091, 0.0, %v1095
        %v1174 = vsel %vm1091, 0.0, %v1098
        %v1175 = vsel %vm1091, 0.0, %v1101
        %v1176 = vsel %vm1091, 0.0, %v1104
        %v1177 = vsel %vm1091, 0.0, %v1107
        %v1178 = vsel %vm1091, 0.0, %v1110
        %v1179 = vsel %vm1091, 0.0, %v1113
        %v1180 = vsel %vm1091, 0.0, %v1116
        %v1181 = vsel %vm1091, 0.0, %v1119
        %v1182 = vsel %vm1091, 0.0, %v1122
        %v1183 = vsel %vm1091, 0.0, %v1125
        %v1184 = vsel %vm1091, 0.0, %v1128
        %v1185 = vsel %vm1091, 0.0, %v1131
        %v1186 = vsel %vm1091, 0.0, %v1134
        %v1187 = vsel %vm1091, 0.0, %v1137
        %vm1188 = vcmask 1046528
        %v1189 = vrot.slane %v698, 1
        %v1190 = vrot.slane %v701, 1
        %v1191 = vsel %vm1188, %v1189, %v1190
        %v1192 = vrot.slane %v706, 1
        %v1193 = vrot.slane %v709, 1
        %v1194 = vsel %vm1188, %v1192, %v1193
        %v1195 = vrot.slane %v714, 1
        %v1196 = vrot.slane %v717, 1
        %v1197 = vsel %vm1188, %v1195, %v1196
        %v1198 = vrot.slane %v722, 1
        %v1199 = vrot.slane %v725, 1
        %v1200 = vsel %vm1188, %v1198, %v1199
        %v1201 = vrot.slane %v730, 1
        %v1202 = vrot.slane %v733, 1
        %v1203 = vsel %vm1188, %v1201, %v1202
        %v1204 = vrot.slane %v738, 1
        %v1205 = vrot.slane %v741, 1
        %v1206 = vsel %vm1188, %v1204, %v1205
        %v1207 = vrot.slane %v746, 1
        %v1208 = vrot.slane %v749, 1
        %v1209 = vsel %vm1188, %v1207, %v1208
        %v1210 = vrot.slane %v754, 1
        %v1211 = vrot.slane %v757, 1
        %v1212 = vsel %vm1188, %v1210, %v1211
        %v1213 = vrot.slane %v762, 1
        %v1214 = vrot.slane %v765, 1
        %v1215 = vsel %vm1188, %v1213, %v1214
        %v1216 = vrot.slane %v770, 1
        %v1217 = vrot.slane %v773, 1
        %v1218 = vsel %vm1188, %v1216, %v1217
        %v1219 = vrot.slane %v778, 1
        %v1220 = vrot.slane %v781, 1
        %v1221 = vsel %vm1188, %v1219, %v1220
        %v1222 = vrot.slane %v786, 1
        %v1223 = vrot.slane %v789, 1
        %v1224 = vsel %vm1188, %v1222, %v1223
        %v1225 = vrot.slane %v794, 1
        %v1226 = vrot.slane %v797, 1
        %v1227 = vsel %vm1188, %v1225, %v1226
        %v1228 = vrot.slane %v802, 1
        %v1229 = vrot.slane %v805, 1
        %v1230 = vsel %vm1188, %v1228, %v1229
        %v1231 = vrot.slane %v810, 1
        %v1232 = vrot.slane %v813, 1
        %v1233 = vsel %vm1188, %v1231, %v1232
        %v1234 = vrot.slane %v818, 1
        %v1235 = vrot.slane %v821, 1
        %v1236 = vsel %vm1188, %v1234, %v1235
        %v1269 = vsel %vm1188, %v1190, 0.0
        %v1270 = vsel %vm1188, %v1193, 0.0
        %v1271 = vsel %vm1188, %v1196, 0.0
        %v1272 = vsel %vm1188, %v1199, 0.0
        %v1273 = vsel %vm1188, %v1202, 0.0
        %v1274 = vsel %vm1188, %v1205, 0.0
        %v1275 = vsel %vm1188, %v1208, 0.0
        %v1276 = vsel %vm1188, %v1211, 0.0
        %v1277 = vsel %vm1188, %v1214, 0.0
        %v1278 = vsel %vm1188, %v1217, 0.0
        %v1279 = vsel %vm1188, %v1220, 0.0
        %v1280 = vsel %vm1188, %v1223, 0.0
        %v1281 = vsel %vm1188, %v1226, 0.0
        %v1282 = vsel %vm1188, %v1229, 0.0
        %v1283 = vsel %vm1188, %v1232, 0.0
        %v1284 = vsel %vm1188, %v1235, 0.0
        %v1285 = vlaneseq
        %v1286 = vshrl.u32 %v1285, 7
        %v1287 = vsub.s32 0, %v1286
        %v1288 = vrot.slane %v1056, %v1287
        %v1289 = vmul.f32 %v1172, %v1288
        %v1290 = vmul.f32 %v1094, %v1288
        %v1291 = vmul.f32 %v1173, %v1288
        %v1292 = vmul.f32 %v1097, %v1288
        %v1293 = vmul.f32 %v1174, %v1288
        %v1294 = vmul.f32 %v1100, %v1288
        %v1295 = vmul.f32 %v1175, %v1288
        %v1296 = vmul.f32 %v1103, %v1288
        %v1297 = vmul.f32 %v1176, %v1288
        %v1298 = vmul.f32 %v1106, %v1288
        %v1299 = vmul.f32 %v1177, %v1288
        %v1300 = vmul.f32 %v1109, %v1288
        %v1301 = vmul.f32 %v1178, %v1288
        %v1302 = vmul.f32 %v1112, %v1288
        %v1303 = vmul.f32 %v1179, %v1288
        %v1304 = vmul.f32 %v1115, %v1288
        %v1305 = vmul.f32 %v1180, %v1288
        %v1306 = vmul.f32 %v1118, %v1288
        %v1307 = vmul.f32 %v1181, %v1288
        %v1308 = vmul.f32 %v1121, %v1288
        %v1309 = vmul.f32 %v1182, %v1288
        %v1310 = vmul.f32 %v1124, %v1288
        %v1311 = vmul.f32 %v1183, %v1288
        %v1312 = vmul.f32 %v1127, %v1288
        %v1313 = vmul.f32 %v1184, %v1288
        %v1314 = vmul.f32 %v1130, %v1288
        %v1315 = vmul.f32 %v1185, %v1288
        %v1316 = vmul.f32 %v1133, %v1288
        %v1317 = vmul.f32 %v1186, %v1288
        %v1318 = vmul.f32 %v1136, %v1288
        %v1319 = vlaneseq
        %v1320 = vshrl.u32 %v1319, 7
        %v1321 = vsub.s32 1, %v1320
        %v1322 = vrot.slane %v1056, %v1321
        %v1323 = vmul.f32 %v698, %v1322
        %v1324 = vmul.f32 %v701, %v1322
        %v1325 = vmul.f32 %v706, %v1322
        %v1326 = vmul.f32 %v709, %v1322
        %v1327 = vmul.f32 %v714, %v1322
        %v1328 = vmul.f32 %v717, %v1322
        %v1329 = vmul.f32 %v722, %v1322
        %v1330 = vmul.f32 %v725, %v1322
        %v1331 = vmul.f32 %v730, %v1322
        %v1332 = vmul.f32 %v733, %v1322
        %v1333 = vmul.f32 %v738, %v1322
        %v1334 = vmul.f32 %v741, %v1322
        %v1335 = vmul.f32 %v746, %v1322
        %v1336 = vmul.f32 %v749, %v1322
        %v1337 = vmul.f32 %v754, %v1322
        %v1338 = vmul.f32 %v757, %v1322
        %v1339 = vmul.f32 %v762, %v1322
        %v1340 = vmul.f32 %v765, %v1322
        %v1341 = vmul.f32 %v770, %v1322
        %v1342 = vmul.f32 %v773, %v1322
        %v1343 = vmul.f32 %v778, %v1322
        %v1344 = vmul.f32 %v781, %v1322
        %v1345 = vmul.f32 %v786, %v1322
        %v1346 = vmul.f32 %v789, %v1322
        %v1347 = vmul.f32 %v794, %v1322
        %v1348 = vmul.f32 %v797, %v1322
        %v1349 = vmul.f32 %v802, %v1322
        %v1350 = vmul.f32 %v805, %v1322
        %v1351 = vmul.f32 %v810, %v1322
        %v1352 = vmul.f32 %v813, %v1322
        %v1353 = vadd.f32 %v1289, %v1323
        %v1354 = vadd.f32 %v1290, %v1324
        %v1355 = vadd.f32 %v1291, %v1325
        %v1356 = vadd.f32 %v1292, %v1326
        %v1357 = vadd.f32 %v1293, %v1327
        %v1358 = vadd.f32 %v1294, %v1328
        %v1359 = vadd.f32 %v1295, %v1329
        %v1360 = vadd.f32 %v1296, %v1330
        %v1361 = vadd.f32 %v1297, %v1331
        %v1362 = vadd.f32 %v1298, %v1332
        %v1363 = vadd.f32 %v1299, %v1333
        %v1364 = vadd.f32 %v1300, %v1334
        %v1365 = vadd.f32 %v1301, %v1335
        %v1366 = vadd.f32 %v1302, %v1336
        %v1367 = vadd.f32 %v1303, %v1337
        %v1368 = vadd.f32 %v1304, %v1338
        %v1369 = vadd.f32 %v1305, %v1339
        %v1370 = vadd.f32 %v1306, %v1340
        %v1371 = vadd.f32 %v1307, %v1341
        %v1372 = vadd.f32 %v1308, %v1342
        %v1373 = vadd.f32 %v1309, %v1343
        %v1374 = vadd.f32 %v1310, %v1344
        %v1375 = vadd.f32 %v1311, %v1345
        %v1376 = vadd.f32 %v1312, %v1346
        %v1377 = vadd.f32 %v1313, %v1347
        %v1378 = vadd.f32 %v1314, %v1348
        %v1379 = vadd.f32 %v1315, %v1349
        %v1380 = vadd.f32 %v1316, %v1350
        %v1381 = vadd.f32 %v1317, %v1351
        %v1382 = vadd.f32 %v1318, %v1352
        %v1383 = vlaneseq
        %v1384 = vshrl.u32 %v1383, 7
        %v1385 = vsub.s32 2, %v1384
        %v1386 = vrot.slane %v1056, %v1385
        %v1387 = vmul.f32 %v1191, %v1386
        %v1388 = vmul.f32 %v1269, %v1386
        %v1389 = vmul.f32 %v1194, %v1386
        %v1390 = vmul.f32 %v1270, %v1386
        %v1391 = vmul.f32 %v1197, %v1386
        %v1392 = vmul.f32 %v1271, %v1386
        %v1393 = vmul.f32 %v1200, %v1386
        %v1394 = vmul.f32 %v1272, %v1386
        %v1395 = vmul.f32 %v1203, %v1386
        %v1396 = vmul.f32 %v1273, %v1386
        %v1397 = vmul.f32 %v1206, %v1386
        %v1398 = vmul.f32 %v1274, %v1386
        %v1399 = vmul.f32 %v1209, %v1386
        %v1400 = vmul.f32 %v1275, %v1386
        %v1401 = vmul.f32 %v1212, %v1386
        %v1402 = vmul.f32 %v1276, %v1386
        %v1403 = vmul.f32 %v1215, %v1386
        %v1404 = vmul.f32 %v1277, %v1386
        %v1405 = vmul.f32 %v1218, %v1386
        %v1406 = vmul.f32 %v1278, %v1386
        %v1407 = vmul.f32 %v1221, %v1386
        %v1408 = vmul.f32 %v1279, %v1386
        %v1409 = vmul.f32 %v1224, %v1386
        %v1410 = vmul.f32 %v1280, %v1386
        %v1411 = vmul.f32 %v1227, %v1386
        %v1412 = vmul.f32 %v1281, %v1386
        %v1413 = vmul.f32 %v1230, %v1386
        %v1414 = vmul.f32 %v1282, %v1386
        %v1415 = vmul.f32 %v1233, %v1386
        %v1416 = vmul.f32 %v1283, %v1386
        %v1417 = vadd.f32 %v1353, %v1387
        %v1418 = vadd.f32 %v1354, %v1388
        %v1419 = vadd.f32 %v1355, %v1389
        %v1420 = vadd.f32 %v1356, %v1390
        %v1421 = vadd.f32 %v1357, %v1391
        %v1422 = vadd.f32 %v1358, %v1392
        %v1423 = vadd.f32 %v1359, %v1393
        %v1424 = vadd.f32 %v1360, %v1394
        %v1425 = vadd.f32 %v1361, %v1395
        %v1426 = vadd.f32 %v1362, %v1396
        %v1427 = vadd.f32 %v1363, %v1397
        %v1428 = vadd.f32 %v1364, %v1398
        %v1429 = vadd.f32 %v1365, %v1399
        %v1430 = vadd.f32 %v1366, %v1400
        %v1431 = vadd.f32 %v1367, %v1401
        %v1432 = vadd.f32 %v1368, %v1402
        %v1433 = vadd.f32 %v1369, %v1403
        %v1434 = vadd.f32 %v1370, %v1404
        %v1435 = vadd.f32 %v1371, %v1405
        %v1436 = vadd.f32 %v1372, %v1406
        %v1437 = vadd.f32 %v1373, %v1407
        %v1438 = vadd.f32 %v1374, %v1408
        %v1439 = vadd.f32 %v1375, %v1409
        %v1440 = vadd.f32 %v1376, %v1410
        %v1441 = vadd.f32 %v1377, %v1411
        %v1442 = vadd.f32 %v1378, %v1412
        %v1443 = vadd.f32 %v1379, %v1413
        %v1444 = vadd.f32 %v1380, %v1414
        %v1445 = vadd.f32 %v1381, %v1415
        %v1446 = vadd.f32 %v1382, %v1416
        %v1447 = vlaneseq
        %v1448 = vshrl.u32 %v1447, 7
        %v1449 = vsub.s32 3, %v1448
        %v1450 = vrot.slane %v1056, %v1449
        %v1451 = vmul.f32 %v1172, %v1450
        %v1452 = vmul.f32 %v1094, %v1450
        %v1453 = vmul.f32 %v1173, %v1450
        %v1454 = vmul.f32 %v1097, %v1450
        %v1455 = vmul.f32 %v1174, %v1450
        %v1456 = vmul.f32 %v1100, %v1450
        %v1457 = vmul.f32 %v1175, %v1450
        %v1458 = vmul.f32 %v1103, %v1450
        %v1459 = vmul.f32 %v1176, %v1450
        %v1460 = vmul.f32 %v1106, %v1450
        %v1461 = vmul.f32 %v1177, %v1450
        %v1462 = vmul.f32 %v1109, %v1450
        %v1463 = vmul.f32 %v1178, %v1450
        %v1464 = vmul.f32 %v1112, %v1450
        %v1465 = vmul.f32 %v1179, %v1450
        %v1466 = vmul.f32 %v1115, %v1450
        %v1467 = vmul.f32 %v1180, %v1450
        %v1468 = vmul.f32 %v1118, %v1450
        %v1469 = vmul.f32 %v1181, %v1450
        %v1470 = vmul.f32 %v1121, %v1450
        %v1471 = vmul.f32 %v1182, %v1450
        %v1472 = vmul.f32 %v1124, %v1450
        %v1473 = vmul.f32 %v1183, %v1450
        %v1474 = vmul.f32 %v1127, %v1450
        %v1475 = vmul.f32 %v1184, %v1450
        %v1476 = vmul.f32 %v1130, %v1450
        %v1477 = vmul.f32 %v1185, %v1450
        %v1478 = vmul.f32 %v1133, %v1450
        %v1479 = vmul.f32 %v1186, %v1450
        %v1480 = vmul.f32 %v1136, %v1450
        %v1481 = vmul.f32 %v1187, %v1450
        %v1482 = vmul.f32 %v1139, %v1450
        %v1483 = vlaneseq
        %v1484 = vshrl.u32 %v1483, 7
        %v1485 = vsub.s32 4, %v1484
        %v1486 = vrot.slane %v1056, %v1485
        %v1487 = vmul.f32 %v698, %v1486
        %v1488 = vmul.f32 %v701, %v1486
        %v1489 = vmul.f32 %v706, %v1486
        %v1490 = vmul.f32 %v709, %v1486
        %v1491 = vmul.f32 %v714, %v1486
        %v1492 = vmul.f32 %v717, %v1486
        %v1493 = vmul.f32 %v722, %v1486
        %v1494 = vmul.f32 %v725, %v1486
        %v1495 = vmul.f32 %v730, %v1486
        %v1496 = vmul.f32 %v733, %v1486
        %v1497 = vmul.f32 %v738, %v1486
        %v1498 = vmul.f32 %v741, %v1486
        %v1499 = vmul.f32 %v746, %v1486
        %v1500 = vmul.f32 %v749, %v1486
        %v1501 = vmul.f32 %v754, %v1486
        %v1502 = vmul.f32 %v757, %v1486
        %v1503 = vmul.f32 %v762, %v1486
        %v1504 = vmul.f32 %v765, %v1486
        %v1505 = vmul.f32 %v770, %v1486
        %v1506 = vmul.f32 %v773, %v1486
        %v1507 = vmul.f32 %v778, %v1486
        %v1508 = vmul.f32 %v781, %v1486
        %v1509 = vmul.f32 %v786, %v1486
        %v1510 = vmul.f32 %v789, %v1486
        %v1511 = vmul.f32 %v794, %v1486
        %v1512 = vmul.f32 %v797, %v1486
        %v1513 = vmul.f32 %v802, %v1486
        %v1514 = vmul.f32 %v805, %v1486
        %v1515 = vmul.f32 %v810, %v1486
        %v1516 = vmul.f32 %v813, %v1486
        %v1517 = vmul.f32 %v818, %v1486
        %v1518 = vmul.f32 %v821, %v1486
        %v1519 = vadd.f32 %v1451, %v1487
        %v1520 = vadd.f32 %v1452, %v1488
        %v1521 = vadd.f32 %v1453, %v1489
        %v1522 = vadd.f32 %v1454, %v1490
        %v1523 = vadd.f32 %v1455, %v1491
        %v1524 = vadd.f32 %v1456, %v1492
        %v1525 = vadd.f32 %v1457, %v1493
        %v1526 = vadd.f32 %v1458, %v1494
        %v1527 = vadd.f32 %v1459, %v1495
        %v1528 = vadd.f32 %v1460, %v1496
        %v1529 = vadd.f32 %v1461, %v1497
        %v1530 = vadd.f32 %v1462, %v1498
        %v1531 = vadd.f32 %v1463, %v1499
        %v1532 = vadd.f32 %v1464, %v1500
        %v1533 = vadd.f32 %v1465, %v1501
        %v1534 = vadd.f32 %v1466, %v1502
        %v1535 = vadd.f32 %v1467, %v1503
        %v1536 = vadd.f32 %v1468, %v1504
        %v1537 = vadd.f32 %v1469, %v1505
        %v1538 = vadd.f32 %v1470, %v1506
        %v1539 = vadd.f32 %v1471, %v1507
        %v1540 = vadd.f32 %v1472, %v1508
        %v1541 = vadd.f32 %v1473, %v1509
        %v1542 = vadd.f32 %v1474, %v1510
        %v1543 = vadd.f32 %v1475, %v1511
        %v1544 = vadd.f32 %v1476, %v1512
        %v1545 = vadd.f32 %v1477, %v1513
        %v1546 = vadd.f32 %v1478, %v1514
        %v1547 = vadd.f32 %v1479, %v1515
        %v1548 = vadd.f32 %v1480, %v1516
        %v1549 = vadd.f32 %v1481, %v1517
        %v1550 = vadd.f32 %v1482, %v1518
        %v1551 = vlaneseq
        %v1552 = vshrl.u32 %v1551, 7
        %v1553 = vsub.s32 5, %v1552
        %v1554 = vrot.slane %v1056, %v1553
        %v1555 = vmul.f32 %v1191, %v1554
        %v1556 = vmul.f32 %v1269, %v1554
        %v1557 = vmul.f32 %v1194, %v1554
        %v1558 = vmul.f32 %v1270, %v1554
        %v1559 = vmul.f32 %v1197, %v1554
        %v1560 = vmul.f32 %v1271, %v1554
        %v1561 = vmul.f32 %v1200, %v1554
        %v1562 = vmul.f32 %v1272, %v1554
        %v1563 = vmul.f32 %v1203, %v1554
        %v1564 = vmul.f32 %v1273, %v1554
        %v1565 = vmul.f32 %v1206, %v1554
        %v1566 = vmul.f32 %v1274, %v1554
        %v1567 = vmul.f32 %v1209, %v1554
        %v1568 = vmul.f32 %v1275, %v1554
        %v1569 = vmul.f32 %v1212, %v1554
        %v1570 = vmul.f32 %v1276, %v1554
        %v1571 = vmul.f32 %v1215, %v1554
        %v1572 = vmul.f32 %v1277, %v1554
        %v1573 = vmul.f32 %v1218, %v1554
        %v1574 = vmul.f32 %v1278, %v1554
        %v1575 = vmul.f32 %v1221, %v1554
        %v1576 = vmul.f32 %v1279, %v1554
        %v1577 = vmul.f32 %v1224, %v1554
        %v1578 = vmul.f32 %v1280, %v1554
        %v1579 = vmul.f32 %v1227, %v1554
        %v1580 = vmul.f32 %v1281, %v1554
        %v1581 = vmul.f32 %v1230, %v1554
        %v1582 = vmul.f32 %v1282, %v1554
        %v1583 = vmul.f32 %v1233, %v1554
        %v1584 = vmul.f32 %v1283, %v1554
        %v1585 = vmul.f32 %v1236, %v1554
        %v1586 = vmul.f32 %v1284, %v1554
        %v1587 = vadd.f32 %v1519, %v1555
        %v1588 = vadd.f32 %v1520, %v1556
        %v1589 = vadd.f32 %v1521, %v1557
        %v1590 = vadd.f32 %v1522, %v1558
        %v1591 = vadd.f32 %v1523, %v1559
        %v1592 = vadd.f32 %v1524, %v1560
        %v1593 = vadd.f32 %v1525, %v1561
        %v1594 = vadd.f32 %v1526, %v1562
        %v1595 = vadd.f32 %v1527, %v1563
        %v1596 = vadd.f32 %v1528, %v1564
        %v1597 = vadd.f32 %v1529, %v1565
        %v1598 = vadd.f32 %v1530, %v1566
        %v1599 = vadd.f32 %v1531, %v1567
        %v1600 = vadd.f32 %v1532, %v1568
        %v1601 = vadd.f32 %v1533, %v1569
        %v1602 = vadd.f32 %v1534, %v1570
        %v1603 = vadd.f32 %v1535, %v1571
        %v1604 = vadd.f32 %v1536, %v1572
        %v1605 = vadd.f32 %v1537, %v1573
        %v1606 = vadd.f32 %v1538, %v1574
        %v1607 = vadd.f32 %v1539, %v1575
        %v1608 = vadd.f32 %v1540, %v1576
        %v1609 = vadd.f32 %v1541, %v1577
        %v1610 = vadd.f32 %v1542, %v1578
        %v1611 = vadd.f32 %v1543, %v1579
        %v1612 = vadd.f32 %v1544, %v1580
        %v1613 = vadd.f32 %v1545, %v1581
        %v1614 = vadd.f32 %v1546, %v1582
        %v1615 = vadd.f32 %v1547, %v1583
        %v1616 = vadd.f32 %v1548, %v1584
        %v1617 = vadd.f32 %v1549, %v1585
        %v1618 = vadd.f32 %v1550, %v1586
        %v1619 = vlaneseq
        %v1620 = vshrl.u32 %v1619, 7
        %v1621 = vsub.s32 6, %v1620
        %v1622 = vrot.slane %v1056, %v1621
        %v1623 = vmul.f32 %v1173, %v1622
        %v1624 = vmul.f32 %v1097, %v1622
        %v1625 = vmul.f32 %v1174, %v1622
        %v1626 = vmul.f32 %v1100, %v1622
        %v1627 = vmul.f32 %v1175, %v1622
        %v1628 = vmul.f32 %v1103, %v1622
        %v1629 = vmul.f32 %v1176, %v1622
        %v1630 = vmul.f32 %v1106, %v1622
        %v1631 = vmul.f32 %v1177, %v1622
        %v1632 = vmul.f32 %v1109, %v1622
        %v1633 = vmul.f32 %v1178, %v1622
        %v1634 = vmul.f32 %v1112, %v1622
        %v1635 = vmul.f32 %v1179, %v1622
        %v1636 = vmul.f32 %v1115, %v1622
        %v1637 = vmul.f32 %v1180, %v1622
        %v1638 = vmul.f32 %v1118, %v1622
        %v1639 = vmul.f32 %v1181, %v1622
        %v1640 = vmul.f32 %v1121, %v1622
        %v1641 = vmul.f32 %v1182, %v1622
        %v1642 = vmul.f32 %v1124, %v1622
        %v1643 = vmul.f32 %v1183, %v1622
        %v1644 = vmul.f32 %v1127, %v1622
        %v1645 = vmul.f32 %v1184, %v1622
        %v1646 = vmul.f32 %v1130, %v1622
        %v1647 = vmul.f32 %v1185, %v1622
        %v1648 = vmul.f32 %v1133, %v1622
        %v1649 = vmul.f32 %v1186, %v1622
        %v1650 = vmul.f32 %v1136, %v1622
        %v1651 = vmul.f32 %v1187, %v1622
        %v1652 = vmul.f32 %v1139, %v1622
        %v1653 = vlaneseq
        %v1654 = vshrl.u32 %v1653, 7
        %v1655 = vsub.s32 7, %v1654
        %v1656 = vrot.slane %v1056, %v1655
        %v1657 = vmul.f32 %v706, %v1656
        %v1658 = vmul.f32 %v709, %v1656
        %v1659 = vmul.f32 %v714, %v1656
        %v1660 = vmul.f32 %v717, %v1656
        %v1661 = vmul.f32 %v722, %v1656
        %v1662 = vmul.f32 %v725, %v1656
        %v1663 = vmul.f32 %v730, %v1656
        %v1664 = vmul.f32 %v733, %v1656
        %v1665 = vmul.f32 %v738, %v1656
        %v1666 = vmul.f32 %v741, %v1656
        %v1667 = vmul.f32 %v746, %v1656
        %v1668 = vmul.f32 %v749, %v1656
        %v1669 = vmul.f32 %v754, %v1656
        %v1670 = vmul.f32 %v757, %v1656
        %v1671 = vmul.f32 %v762, %v1656
        %v1672 = vmul.f32 %v765, %v1656
        %v1673 = vmul.f32 %v770, %v1656
        %v1674 = vmul.f32 %v773, %v1656
        %v1675 = vmul.f32 %v778, %v1656
        %v1676 = vmul.f32 %v781, %v1656
        %v1677 = vmul.f32 %v786, %v1656
        %v1678 = vmul.f32 %v789, %v1656
        %v1679 = vmul.f32 %v794, %v1656
        %v1680 = vmul.f32 %v797, %v1656
        %v1681 = vmul.f32 %v802, %v1656
        %v1682 = vmul.f32 %v805, %v1656
        %v1683 = vmul.f32 %v810, %v1656
        %v1684 = vmul.f32 %v813, %v1656
        %v1685 = vmul.f32 %v818, %v1656
        %v1686 = vmul.f32 %v821, %v1656
        %v1687 = vadd.f32 %v1623, %v1657
        %v1688 = vadd.f32 %v1624, %v1658
        %v1689 = vadd.f32 %v1625, %v1659
        %v1690 = vadd.f32 %v1626, %v1660
        %v1691 = vadd.f32 %v1627, %v1661
        %v1692 = vadd.f32 %v1628, %v1662
        %v1693 = vadd.f32 %v1629, %v1663
        %v1694 = vadd.f32 %v1630, %v1664
        %v1695 = vadd.f32 %v1631, %v1665
        %v1696 = vadd.f32 %v1632, %v1666
        %v1697 = vadd.f32 %v1633, %v1667
        %v1698 = vadd.f32 %v1634, %v1668
        %v1699 = vadd.f32 %v1635, %v1669
        %v1700 = vadd.f32 %v1636, %v1670
        %v1701 = vadd.f32 %v1637, %v1671
        %v1702 = vadd.f32 %v1638, %v1672
        %v1703 = vadd.f32 %v1639, %v1673
        %v1704 = vadd.f32 %v1640, %v1674
        %v1705 = vadd.f32 %v1641, %v1675
        %v1706 = vadd.f32 %v1642, %v1676
        %v1707 = vadd.f32 %v1643, %v1677
        %v1708 = vadd.f32 %v1644, %v1678
        %v1709 = vadd.f32 %v1645, %v1679
        %v1710 = vadd.f32 %v1646, %v1680
        %v1711 = vadd.f32 %v1647, %v1681
        %v1712 = vadd.f32 %v1648, %v1682
        %v1713 = vadd.f32 %v1649, %v1683
        %v1714 = vadd.f32 %v1650, %v1684
        %v1715 = vadd.f32 %v1651, %v1685
        %v1716 = vadd.f32 %v1652, %v1686
        %v1717 = vlaneseq
        %v1718 = vshrl.u32 %v1717, 7
        %v1719 = vsub.s32 0, %v1718
        %v1720 = vrot.slane %v1057, %v1719
        %v1721 = vmul.f32 %v1194, %v1720
        %v1722 = vmul.f32 %v1270, %v1720
        %v1723 = vmul.f32 %v1197, %v1720
        %v1724 = vmul.f32 %v1271, %v1720
        %v1725 = vmul.f32 %v1200, %v1720
        %v1726 = vmul.f32 %v1272, %v1720
        %v1727 = vmul.f32 %v1203, %v1720
        %v1728 = vmul.f32 %v1273, %v1720
        %v1729 = vmul.f32 %v1206, %v1720
        %v1730 = vmul.f32 %v1274, %v1720
        %v1731 = vmul.f32 %v1209, %v1720
        %v1732 = vmul.f32 %v1275, %v1720
        %v1733 = vmul.f32 %v1212, %v1720
        %v1734 = vmul.f32 %v1276, %v1720
        %v1735 = vmul.f32 %v1215, %v1720
        %v1736 = vmul.f32 %v1277, %v1720
        %v1737 = vmul.f32 %v1218, %v1720
        %v1738 = vmul.f32 %v1278, %v1720
        %v1739 = vmul.f32 %v1221, %v1720
        %v1740 = vmul.f32 %v1279, %v1720
        %v1741 = vmul.f32 %v1224, %v1720
        %v1742 = vmul.f32 %v1280, %v1720
        %v1743 = vmul.f32 %v1227, %v1720
        %v1744 = vmul.f32 %v1281, %v1720
        %v1745 = vmul.f32 %v1230, %v1720
        %v1746 = vmul.f32 %v1282, %v1720
        %v1747 = vmul.f32 %v1233, %v1720
        %v1748 = vmul.f32 %v1283, %v1720
        %v1749 = vmul.f32 %v1236, %v1720
        %v1750 = vmul.f32 %v1284, %v1720
        %v1751 = vadd.f32 %v1687, %v1721
        %v1752 = vadd.f32 %v1688, %v1722
        %v1753 = vadd.f32 %v1689, %v1723
        %v1754 = vadd.f32 %v1690, %v1724
        %v1755 = vadd.f32 %v1691, %v1725
        %v1756 = vadd.f32 %v1692, %v1726
        %v1757 = vadd.f32 %v1693, %v1727
        %v1758 = vadd.f32 %v1694, %v1728
        %v1759 = vadd.f32 %v1695, %v1729
        %v1760 = vadd.f32 %v1696, %v1730
        %v1761 = vadd.f32 %v1697, %v1731
        %v1762 = vadd.f32 %v1698, %v1732
        %v1763 = vadd.f32 %v1699, %v1733
        %v1764 = vadd.f32 %v1700, %v1734
        %v1765 = vadd.f32 %v1701, %v1735
        %v1766 = vadd.f32 %v1702, %v1736
        %v1767 = vadd.f32 %v1703, %v1737
        %v1768 = vadd.f32 %v1704, %v1738
        %v1769 = vadd.f32 %v1705, %v1739
        %v1770 = vadd.f32 %v1706, %v1740
        %v1771 = vadd.f32 %v1707, %v1741
        %v1772 = vadd.f32 %v1708, %v1742
        %v1773 = vadd.f32 %v1709, %v1743
        %v1774 = vadd.f32 %v1710, %v1744
        %v1775 = vadd.f32 %v1711, %v1745
        %v1776 = vadd.f32 %v1712, %v1746
        %v1777 = vadd.f32 %v1713, %v1747
        %v1778 = vadd.f32 %v1714, %v1748
        %v1779 = vadd.f32 %v1715, %v1749
        %v1780 = vadd.f32 %v1716, %v1750
        %v1782 = vlaneseq
        %v1783 = vshrl.u32 %v1782, 7
        %v1784 = vsub.s32 0, %v1783
        %v1785 = vrot.slane %v1058, %v1784
        %v1787 = vadd.f32 %v1587, %v1785
        %v1788 = vadd.f32 %v1588, %v1785
        %v1789 = vadd.f32 %v1589, %v1785
        %v1790 = vadd.f32 %v1590, %v1785
        %v1791 = vadd.f32 %v1591, %v1785
        %v1792 = vadd.f32 %v1592, %v1785
        %v1793 = vadd.f32 %v1593, %v1785
        %v1794 = vadd.f32 %v1594, %v1785
        %v1795 = vadd.f32 %v1595, %v1785
        %v1796 = vadd.f32 %v1596, %v1785
        %v1797 = vadd.f32 %v1597, %v1785
        %v1798 = vadd.f32 %v1598, %v1785
        %v1799 = vadd.f32 %v1599, %v1785
        %v1800 = vadd.f32 %v1600, %v1785
        %v1801 = vadd.f32 %v1601, %v1785
        %v1802 = vadd.f32 %v1602, %v1785
        %v1803 = vadd.f32 %v1603, %v1785
        %v1804 = vadd.f32 %v1604, %v1785
        %v1805 = vadd.f32 %v1605, %v1785
        %v1806 = vadd.f32 %v1606, %v1785
        %v1807 = vadd.f32 %v1607, %v1785
        %v1808 = vadd.f32 %v1608, %v1785
        %v1809 = vadd.f32 %v1609, %v1785
        %v1810 = vadd.f32 %v1610, %v1785
        %v1811 = vadd.f32 %v1611, %v1785
        %v1812 = vadd.f32 %v1612, %v1785
        %v1813 = vadd.f32 %v1613, %v1785
        %v1814 = vadd.f32 %v1614, %v1785
        %v1815 = vadd.f32 %v1615, %v1785
        %v1816 = vadd.f32 %v1616, %v1785
        %v1817 = vadd.f32 %v1617, %v1785
        %v1818 = vadd.f32 %v1618, %v1785
        %v1819 = vadd.f32 %v1787, 0.0
        %v1820 = vadd.f32 %v1788, 0.0
        %v1821 = vadd.f32 %v1789, %v1417
        %v1822 = vadd.f32 %v1790, %v1418
        %v1823 = vadd.f32 %v1791, %v1419
        %v1824 = vadd.f32 %v1792, %v1420
        %v1825 = vadd.f32 %v1793, %v1421
        %v1826 = vadd.f32 %v1794, %v1422
        %v1827 = vadd.f32 %v1795, %v1423
        %v1828 = vadd.f32 %v1796, %v1424
        %v1829 = vadd.f32 %v1797, %v1425
        %v1830 = vadd.f32 %v1798, %v1426
        %v1831 = vadd.f32 %v1799, %v1427
        %v1832 = vadd.f32 %v1800, %v1428
        %v1833 = vadd.f32 %v1801, %v1429
        %v1834 = vadd.f32 %v1802, %v1430
        %v1835 = vadd.f32 %v1803, %v1431
        %v1836 = vadd.f32 %v1804, %v1432
        %v1837 = vadd.f32 %v1805, %v1433
        %v1838 = vadd.f32 %v1806, %v1434
        %v1839 = vadd.f32 %v1807, %v1435
        %v1840 = vadd.f32 %v1808, %v1436
        %v1841 = vadd.f32 %v1809, %v1437
        %v1842 = vadd.f32 %v1810, %v1438
        %v1843 = vadd.f32 %v1811, %v1439
        %v1844 = vadd.f32 %v1812, %v1440
        %v1845 = vadd.f32 %v1813, %v1441
        %v1846 = vadd.f32 %v1814, %v1442
        %v1847 = vadd.f32 %v1815, %v1443
        %v1848 = vadd.f32 %v1816, %v1444
        %v1849 = vadd.f32 %v1817, %v1445
        %v1850 = vadd.f32 %v1818, %v1446
        %v1851 = vadd.f32 %v1819, %v1751
        %v1852 = vadd.f32 %v1820, %v1752
        %v1853 = vadd.f32 %v1821, %v1753
        %v1854 = vadd.f32 %v1822, %v1754
        %v1855 = vadd.f32 %v1823, %v1755
        %v1856 = vadd.f32 %v1824, %v1756
        %v1857 = vadd.f32 %v1825, %v1757
        %v1858 = vadd.f32 %v1826, %v1758
        %v1859 = vadd.f32 %v1827, %v1759
        %v1860 = vadd.f32 %v1828, %v1760
        %v1861 = vadd.f32 %v1829, %v1761
        %v1862 = vadd.f32 %v1830, %v1762
        %v1863 = vadd.f32 %v1831, %v1763
        %v1864 = vadd.f32 %v1832, %v1764
        %v1865 = vadd.f32 %v1833, %v1765
        %v1866 = vadd.f32 %v1834, %v1766
        %v1867 = vadd.f32 %v1835, %v1767
        %v1868 = vadd.f32 %v1836, %v1768
        %v1869 = vadd.f32 %v1837, %v1769
        %v1870 = vadd.f32 %v1838, %v1770
        %v1871 = vadd.f32 %v1839, %v1771
        %v1872 = vadd.f32 %v1840, %v1772
        %v1873 = vadd.f32 %v1841, %v1773
        %v1874 = vadd.f32 %v1842, %v1774
        %v1875 = vadd.f32 %v1843, %v1775
        %v1876 = vadd.f32 %v1844, %v1776
        %v1877 = vadd.f32 %v1845, %v1777
        %v1878 = vadd.f32 %v1846, %v1778
        %v1879 = vadd.f32 %v1847, %v1779
        %v1880 = vadd.f32 %v1848, %v1780
        %v1881 = vadd.f32 %v1849, 0.0
        %v1882 = vadd.f32 %v1850, 0.0
        %v1883 = vld [vmem:[#allocation8] sm:$0xff]
        %v1884 = vld [vmem:[#allocation8 + $0x8] sm:$0x1]
        %v1885 = vld [vmem:[%s8] sm:$0x1]
        %v1918 = vrot.slane %v930, 7
        %v1919 = vrot.slane %v933, 7
        %v1920 = vsel %vm1091, %v1918, %v1919
        %v1921 = vrot.slane %v938, 7
        %v1922 = vrot.slane %v941, 7
        %v1923 = vsel %vm1091, %v1921, %v1922
        %v1924 = vrot.slane %v946, 7
        %v1925 = vrot.slane %v949, 7
        %v1926 = vsel %vm1091, %v1924, %v1925
        %v1927 = vrot.slane %v954, 7
        %v1928 = vrot.slane %v957, 7
        %v1929 = vsel %vm1091, %v1927, %v1928
        %v1930 = vrot.slane %v962, 7
        %v1931 = vrot.slane %v965, 7
        %v1932 = vsel %vm1091, %v1930, %v1931
        %v1933 = vrot.slane %v970, 7
        %v1934 = vrot.slane %v973, 7
        %v1935 = vsel %vm1091, %v1933, %v1934
        %v1936 = vrot.slane %v978, 7
        %v1937 = vrot.slane %v981, 7
        %v1938 = vsel %vm1091, %v1936, %v1937
        %v1939 = vrot.slane %v986, 7
        %v1940 = vrot.slane %v989, 7
        %v1941 = vsel %vm1091, %v1939, %v1940
        %v1942 = vrot.slane %v994, 7
        %v1943 = vrot.slane %v997, 7
        %v1944 = vsel %vm1091, %v1942, %v1943
        %v1945 = vrot.slane %v1002, 7
        %v1946 = vrot.slane %v1005, 7
        %v1947 = vsel %vm1091, %v1945, %v1946
        %v1948 = vrot.slane %v1010, 7
        %v1949 = vrot.slane %v1013, 7
        %v1950 = vsel %vm1091, %v1948, %v1949
        %v1951 = vrot.slane %v1018, 7
        %v1952 = vrot.slane %v1021, 7
        %v1953 = vsel %vm1091, %v1951, %v1952
        %v1954 = vrot.slane %v1026, 7
        %v1955 = vrot.slane %v1029, 7
        %v1956 = vsel %vm1091, %v1954, %v1955
        %v1957 = vrot.slane %v1034, 7
        %v1958 = vrot.slane %v1037, 7
        %v1959 = vsel %vm1091, %v1957, %v1958
        %v1960 = vrot.slane %v1042, 7
        %v1961 = vrot.slane %v1045, 7
        %v1962 = vsel %vm1091, %v1960, %v1961
        %v1963 = vrot.slane %v1050, 7
        %v1964 = vrot.slane %v1053, 7
        %v1965 = vsel %vm1091, %v1963, %v1964
        %v1998 = vsel %vm1091, 0.0, %v1918
        %v1999 = vsel %vm1091, 0.0, %v1921
        %v2000 = vsel %vm1091, 0.0, %v1924
        %v2001 = vsel %vm1091, 0.0, %v1927
        %v2002 = vsel %vm1091, 0.0, %v1930
        %v2003 = vsel %vm1091, 0.0, %v1933
        %v2004 = vsel %vm1091, 0.0, %v1936
        %v2005 = vsel %vm1091, 0.0, %v1939
        %v2006 = vsel %vm1091, 0.0, %v1942
        %v2007 = vsel %vm1091, 0.0, %v1945
        %v2008 = vsel %vm1091, 0.0, %v1948
        %v2009 = vsel %vm1091, 0.0, %v1951
        %v2010 = vsel %vm1091, 0.0, %v1954
        %v2011 = vsel %vm1091, 0.0, %v1957
        %v2012 = vsel %vm1091, 0.0, %v1960
        %v2013 = vsel %vm1091, 0.0, %v1963
        %v2014 = vrot.slane %v930, 1
        %v2015 = vrot.slane %v933, 1
        %v2016 = vsel %vm1188, %v2014, %v2015
        %v2017 = vrot.slane %v938, 1
        %v2018 = vrot.slane %v941, 1
        %v2019 = vsel %vm1188, %v2017, %v2018
        %v2020 = vrot.slane %v946, 1
        %v2021 = vrot.slane %v949, 1
        %v2022 = vsel %vm1188, %v2020, %v2021
        %v2023 = vrot.slane %v954, 1
        %v2024 = vrot.slane %v957, 1
        %v2025 = vsel %vm1188, %v2023, %v2024
        %v2026 = vrot.slane %v962, 1
        %v2027 = vrot.slane %v965, 1
        %v2028 = vsel %vm1188, %v2026, %v2027
        %v2029 = vrot.slane %v970, 1
        %v2030 = vrot.slane %v973, 1
        %v2031 = vsel %vm1188, %v2029, %v2030
        %v2032 = vrot.slane %v978, 1
        %v2033 = vrot.slane %v981, 1
        %v2034 = vsel %vm1188, %v2032, %v2033
        %v2035 = vrot.slane %v986, 1
        %v2036 = vrot.slane %v989, 1
        %v2037 = vsel %vm1188, %v2035, %v2036
        %v2038 = vrot.slane %v994, 1
        %v2039 = vrot.slane %v997, 1
        %v2040 = vsel %vm1188, %v2038, %v2039
        %v2041 = vrot.slane %v1002, 1
        %v2042 = vrot.slane %v1005, 1
        %v2043 = vsel %vm1188, %v2041, %v2042
        %v2044 = vrot.slane %v1010, 1
        %v2045 = vrot.slane %v1013, 1
        %v2046 = vsel %vm1188, %v2044, %v2045
        %v2047 = vrot.slane %v1018, 1
        %v2048 = vrot.slane %v1021, 1
        %v2049 = vsel %vm1188, %v2047, %v2048
        %v2050 = vrot.slane %v1026, 1
        %v2051 = vrot.slane %v1029, 1
        %v2052 = vsel %vm1188, %v2050, %v2051
        %v2053 = vrot.slane %v1034, 1
        %v2054 = vrot.slane %v1037, 1
        %v2055 = vsel %vm1188, %v2053, %v2054
        %v2056 = vrot.slane %v1042, 1
        %v2057 = vrot.slane %v1045, 1
        %v2058 = vsel %vm1188, %v2056, %v2057
        %v2059 = vrot.slane %v1050, 1
        %v2060 = vrot.slane %v1053, 1
        %v2061 = vsel %vm1188, %v2059, %v2060
        %v2094 = vsel %vm1188, %v2015, 0.0
        %v2095 = vsel %vm1188, %v2018, 0.0
        %v2096 = vsel %vm1188, %v2021, 0.0
        %v2097 = vsel %vm1188, %v2024, 0.0
        %v2098 = vsel %vm1188, %v2027, 0.0
        %v2099 = vsel %vm1188, %v2030, 0.0
        %v2100 = vsel %vm1188, %v2033, 0.0
        %v2101 = vsel %vm1188, %v2036, 0.0
        %v2102 = vsel %vm1188, %v2039, 0.0
        %v2103 = vsel %vm1188, %v2042, 0.0
        %v2104 = vsel %vm1188, %v2045, 0.0
        %v2105 = vsel %vm1188, %v2048, 0.0
        %v2106 = vsel %vm1188, %v2051, 0.0
        %v2107 = vsel %vm1188, %v2054, 0.0
        %v2108 = vsel %vm1188, %v2057, 0.0
        %v2109 = vsel %vm1188, %v2060, 0.0
        %v2110 = vlaneseq
        %v2111 = vshrl.u32 %v2110, 7
        %v2112 = vsub.s32 0, %v2111
        %v2113 = vrot.slane %v1883, %v2112
        %v2114 = vmul.f32 %v1998, %v2113
        %v2115 = vmul.f32 %v1920, %v2113
        %v2116 = vmul.f32 %v1999, %v2113
        %v2117 = vmul.f32 %v1923, %v2113
        %v2118 = vmul.f32 %v2000, %v2113
        %v2119 = vmul.f32 %v1926, %v2113
        %v2120 = vmul.f32 %v2001, %v2113
        %v2121 = vmul.f32 %v1929, %v2113
        %v2122 = vmul.f32 %v2002, %v2113
        %v2123 = vmul.f32 %v1932, %v2113
        %v2124 = vmul.f32 %v2003, %v2113
        %v2125 = vmul.f32 %v1935, %v2113
        %v2126 = vmul.f32 %v2004, %v2113
        %v2127 = vmul.f32 %v1938, %v2113
        %v2128 = vmul.f32 %v2005, %v2113
        %v2129 = vmul.f32 %v1941, %v2113
        %v2130 = vmul.f32 %v2006, %v2113
        %v2131 = vmul.f32 %v1944, %v2113
        %v2132 = vmul.f32 %v2007, %v2113
        %v2133 = vmul.f32 %v1947, %v2113
        %v2134 = vmul.f32 %v2008, %v2113
        %v2135 = vmul.f32 %v1950, %v2113
        %v2136 = vmul.f32 %v2009, %v2113
        %v2137 = vmul.f32 %v1953, %v2113
        %v2138 = vmul.f32 %v2010, %v2113
        %v2139 = vmul.f32 %v1956, %v2113
        %v2140 = vmul.f32 %v2011, %v2113
        %v2141 = vmul.f32 %v1959, %v2113
        %v2142 = vmul.f32 %v2012, %v2113
        %v2143 = vmul.f32 %v1962, %v2113
        %v2144 = vlaneseq
        %v2145 = vshrl.u32 %v2144, 7
        %v2146 = vsub.s32 1, %v2145
        %v2147 = vrot.slane %v1883, %v2146
        %v2148 = vmul.f32 %v930, %v2147
        %v2149 = vmul.f32 %v933, %v2147
        %v2150 = vmul.f32 %v938, %v2147
        %v2151 = vmul.f32 %v941, %v2147
        %v2152 = vmul.f32 %v946, %v2147
        %v2153 = vmul.f32 %v949, %v2147
        %v2154 = vmul.f32 %v954, %v2147
        %v2155 = vmul.f32 %v957, %v2147
        %v2156 = vmul.f32 %v962, %v2147
        %v2157 = vmul.f32 %v965, %v2147
        %v2158 = vmul.f32 %v970, %v2147
        %v2159 = vmul.f32 %v973, %v2147
        %v2160 = vmul.f32 %v978, %v2147
        %v2161 = vmul.f32 %v981, %v2147
        %v2162 = vmul.f32 %v986, %v2147
        %v2163 = vmul.f32 %v989, %v2147
        %v2164 = vmul.f32 %v994, %v2147
        %v2165 = vmul.f32 %v997, %v2147
        %v2166 = vmul.f32 %v1002, %v2147
        %v2167 = vmul.f32 %v1005, %v2147
        %v2168 = vmul.f32 %v1010, %v2147
        %v2169 = vmul.f32 %v1013, %v2147
        %v2170 = vmul.f32 %v1018, %v2147
        %v2171 = vmul.f32 %v1021, %v2147
        %v2172 = vmul.f32 %v1026, %v2147
        %v2173 = vmul.f32 %v1029, %v2147
        %v2174 = vmul.f32 %v1034, %v2147
        %v2175 = vmul.f32 %v1037, %v2147
        %v2176 = vmul.f32 %v1042, %v2147
        %v2177 = vmul.f32 %v1045, %v2147
        %v2178 = vadd.f32 %v2114, %v2148
        %v2179 = vadd.f32 %v2115, %v2149
        %v2180 = vadd.f32 %v2116, %v2150
        %v2181 = vadd.f32 %v2117, %v2151
        %v2182 = vadd.f32 %v2118, %v2152
        %v2183 = vadd.f32 %v2119, %v2153
        %v2184 = vadd.f32 %v2120, %v2154
        %v2185 = vadd.f32 %v2121, %v2155
        %v2186 = vadd.f32 %v2122, %v2156
        %v2187 = vadd.f32 %v2123, %v2157
        %v2188 = vadd.f32 %v2124, %v2158
        %v2189 = vadd.f32 %v2125, %v2159
        %v2190 = vadd.f32 %v2126, %v2160
        %v2191 = vadd.f32 %v2127, %v2161
        %v2192 = vadd.f32 %v2128, %v2162
        %v2193 = vadd.f32 %v2129, %v2163
        %v2194 = vadd.f32 %v2130, %v2164
        %v2195 = vadd.f32 %v2131, %v2165
        %v2196 = vadd.f32 %v2132, %v2166
        %v2197 = vadd.f32 %v2133, %v2167
        %v2198 = vadd.f32 %v2134, %v2168
        %v2199 = vadd.f32 %v2135, %v2169
        %v2200 = vadd.f32 %v2136, %v2170
        %v2201 = vadd.f32 %v2137, %v2171
        %v2202 = vadd.f32 %v2138, %v2172
        %v2203 = vadd.f32 %v2139, %v2173
        %v2204 = vadd.f32 %v2140, %v2174
        %v2205 = vadd.f32 %v2141, %v2175
        %v2206 = vadd.f32 %v2142, %v2176
        %v2207 = vadd.f32 %v2143, %v2177
        %v2208 = vlaneseq
        %v2209 = vshrl.u32 %v2208, 7
        %v2210 = vsub.s32 2, %v2209
        %v2211 = vrot.slane %v1883, %v2210
        %v2212 = vmul.f32 %v2016, %v2211
        %v2213 = vmul.f32 %v2094, %v2211
        %v2214 = vmul.f32 %v2019, %v2211
        %v2215 = vmul.f32 %v2095, %v2211
        %v2216 = vmul.f32 %v2022, %v2211
        %v2217 = vmul.f32 %v2096, %v2211
        %v2218 = vmul.f32 %v2025, %v2211
        %v2219 = vmul.f32 %v2097, %v2211
        %v2220 = vmul.f32 %v2028, %v2211
        %v2221 = vmul.f32 %v2098, %v2211
        %v2222 = vmul.f32 %v2031, %v2211
        %v2223 = vmul.f32 %v2099, %v2211
        %v2224 = vmul.f32 %v2034, %v2211
        %v2225 = vmul.f32 %v2100, %v2211
        %v2226 = vmul.f32 %v2037, %v2211
        %v2227 = vmul.f32 %v2101, %v2211
        %v2228 = vmul.f32 %v2040, %v2211
        %v2229 = vmul.f32 %v2102, %v2211
        %v2230 = vmul.f32 %v2043, %v2211
        %v2231 = vmul.f32 %v2103, %v2211
        %v2232 = vmul.f32 %v2046, %v2211
        %v2233 = vmul.f32 %v2104, %v2211
        %v2234 = vmul.f32 %v2049, %v2211
        %v2235 = vmul.f32 %v2105, %v2211
        %v2236 = vmul.f32 %v2052, %v2211
        %v2237 = vmul.f32 %v2106, %v2211
        %v2238 = vmul.f32 %v2055, %v2211
        %v2239 = vmul.f32 %v2107, %v2211
        %v2240 = vmul.f32 %v2058, %v2211
        %v2241 = vmul.f32 %v2108, %v2211
        %v2242 = vadd.f32 %v2178, %v2212
        %v2243 = vadd.f32 %v2179, %v2213
        %v2244 = vadd.f32 %v2180, %v2214
        %v2245 = vadd.f32 %v2181, %v2215
        %v2246 = vadd.f32 %v2182, %v2216
        %v2247 = vadd.f32 %v2183, %v2217
        %v2248 = vadd.f32 %v2184, %v2218
        %v2249 = vadd.f32 %v2185, %v2219
        %v2250 = vadd.f32 %v2186, %v2220
        %v2251 = vadd.f32 %v2187, %v2221
        %v2252 = vadd.f32 %v2188, %v2222
        %v2253 = vadd.f32 %v2189, %v2223
        %v2254 = vadd.f32 %v2190, %v2224
        %v2255 = vadd.f32 %v2191, %v2225
        %v2256 = vadd.f32 %v2192, %v2226
        %v2257 = vadd.f32 %v2193, %v2227
        %v2258 = vadd.f32 %v2194, %v2228
        %v2259 = vadd.f32 %v2195, %v2229
        %v2260 = vadd.f32 %v2196, %v2230
        %v2261 = vadd.f32 %v2197, %v2231
        %v2262 = vadd.f32 %v2198, %v2232
        %v2263 = vadd.f32 %v2199, %v2233
        %v2264 = vadd.f32 %v2200, %v2234
        %v2265 = vadd.f32 %v2201, %v2235
        %v2266 = vadd.f32 %v2202, %v2236
        %v2267 = vadd.f32 %v2203, %v2237
        %v2268 = vadd.f32 %v2204, %v2238
        %v2269 = vadd.f32 %v2205, %v2239
        %v2270 = vadd.f32 %v2206, %v2240
        %v2271 = vadd.f32 %v2207, %v2241
        %v2272 = vlaneseq
        %v2273 = vshrl.u32 %v2272, 7
        %v2274 = vsub.s32 3, %v2273
        %v2275 = vrot.slane %v1883, %v2274
        %v2276 = vmul.f32 %v1998, %v2275
        %v2277 = vmul.f32 %v1920, %v2275
        %v2278 = vmul.f32 %v1999, %v2275
        %v2279 = vmul.f32 %v1923, %v2275
        %v2280 = vmul.f32 %v2000, %v2275
        %v2281 = vmul.f32 %v1926, %v2275
        %v2282 = vmul.f32 %v2001, %v2275
        %v2283 = vmul.f32 %v1929, %v2275
        %v2284 = vmul.f32 %v2002, %v2275
        %v2285 = vmul.f32 %v1932, %v2275
        %v2286 = vmul.f32 %v2003, %v2275
        %v2287 = vmul.f32 %v1935, %v2275
        %v2288 = vmul.f32 %v2004, %v2275
        %v2289 = vmul.f32 %v1938, %v2275
        %v2290 = vmul.f32 %v2005, %v2275
        %v2291 = vmul.f32 %v1941, %v2275
        %v2292 = vmul.f32 %v2006, %v2275
        %v2293 = vmul.f32 %v1944, %v2275
        %v2294 = vmul.f32 %v2007, %v2275
        %v2295 = vmul.f32 %v1947, %v2275
        %v2296 = vmul.f32 %v2008, %v2275
        %v2297 = vmul.f32 %v1950, %v2275
        %v2298 = vmul.f32 %v2009, %v2275
        %v2299 = vmul.f32 %v1953, %v2275
        %v2300 = vmul.f32 %v2010, %v2275
        %v2301 = vmul.f32 %v1956, %v2275
        %v2302 = vmul.f32 %v2011, %v2275
        %v2303 = vmul.f32 %v1959, %v2275
        %v2304 = vmul.f32 %v2012, %v2275
        %v2305 = vmul.f32 %v1962, %v2275
        %v2306 = vmul.f32 %v2013, %v2275
        %v2307 = vmul.f32 %v1965, %v2275
        %v2308 = vlaneseq
        %v2309 = vshrl.u32 %v2308, 7
        %v2310 = vsub.s32 4, %v2309
        %v2311 = vrot.slane %v1883, %v2310
        %v2312 = vmul.f32 %v930, %v2311
        %v2313 = vmul.f32 %v933, %v2311
        %v2314 = vmul.f32 %v938, %v2311
        %v2315 = vmul.f32 %v941, %v2311
        %v2316 = vmul.f32 %v946, %v2311
        %v2317 = vmul.f32 %v949, %v2311
        %v2318 = vmul.f32 %v954, %v2311
        %v2319 = vmul.f32 %v957, %v2311
        %v2320 = vmul.f32 %v962, %v2311
        %v2321 = vmul.f32 %v965, %v2311
        %v2322 = vmul.f32 %v970, %v2311
        %v2323 = vmul.f32 %v973, %v2311
        %v2324 = vmul.f32 %v978, %v2311
        %v2325 = vmul.f32 %v981, %v2311
        %v2326 = vmul.f32 %v986, %v2311
        %v2327 = vmul.f32 %v989, %v2311
        %v2328 = vmul.f32 %v994, %v2311
        %v2329 = vmul.f32 %v997, %v2311
        %v2330 = vmul.f32 %v1002, %v2311
        %v2331 = vmul.f32 %v1005, %v2311
        %v2332 = vmul.f32 %v1010, %v2311
        %v2333 = vmul.f32 %v1013, %v2311
        %v2334 = vmul.f32 %v1018, %v2311
        %v2335 = vmul.f32 %v1021, %v2311
        %v2336 = vmul.f32 %v1026, %v2311
        %v2337 = vmul.f32 %v1029, %v2311
        %v2338 = vmul.f32 %v1034, %v2311
        %v2339 = vmul.f32 %v1037, %v2311
        %v2340 = vmul.f32 %v1042, %v2311
        %v2341 = vmul.f32 %v1045, %v2311
        %v2342 = vmul.f32 %v1050, %v2311
        %v2343 = vmul.f32 %v1053, %v2311
        %v2344 = vadd.f32 %v2276, %v2312
        %v2345 = vadd.f32 %v2277, %v2313
        %v2346 = vadd.f32 %v2278, %v2314
        %v2347 = vadd.f32 %v2279, %v2315
        %v2348 = vadd.f32 %v2280, %v2316
        %v2349 = vadd.f32 %v2281, %v2317
        %v2350 = vadd.f32 %v2282, %v2318
        %v2351 = vadd.f32 %v2283, %v2319
        %v2352 = vadd.f32 %v2284, %v2320
        %v2353 = vadd.f32 %v2285, %v2321
        %v2354 = vadd.f32 %v2286, %v2322
        %v2355 = vadd.f32 %v2287, %v2323
        %v2356 = vadd.f32 %v2288, %v2324
        %v2357 = vadd.f32 %v2289, %v2325
        %v2358 = vadd.f32 %v2290, %v2326
        %v2359 = vadd.f32 %v2291, %v2327
        %v2360 = vadd.f32 %v2292, %v2328
        %v2361 = vadd.f32 %v2293, %v2329
        %v2362 = vadd.f32 %v2294, %v2330
        %v2363 = vadd.f32 %v2295, %v2331
        %v2364 = vadd.f32 %v2296, %v2332
        %v2365 = vadd.f32 %v2297, %v2333
        %v2366 = vadd.f32 %v2298, %v2334
        %v2367 = vadd.f32 %v2299, %v2335
        %v2368 = vadd.f32 %v2300, %v2336
        %v2369 = vadd.f32 %v2301, %v2337
        %v2370 = vadd.f32 %v2302, %v2338
        %v2371 = vadd.f32 %v2303, %v2339
        %v2372 = vadd.f32 %v2304, %v2340
        %v2373 = vadd.f32 %v2305, %v2341
        %v2374 = vadd.f32 %v2306, %v2342
        %v2375 = vadd.f32 %v2307, %v2343
        %v2376 = vlaneseq
        %v2377 = vshrl.u32 %v2376, 7
        %v2378 = vsub.s32 5, %v2377
        %v2379 = vrot.slane %v1883, %v2378
        %v2380 = vmul.f32 %v2016, %v2379
        %v2381 = vmul.f32 %v2094, %v2379
        %v2382 = vmul.f32 %v2019, %v2379
        %v2383 = vmul.f32 %v2095, %v2379
        %v2384 = vmul.f32 %v2022, %v2379
        %v2385 = vmul.f32 %v2096, %v2379
        %v2386 = vmul.f32 %v2025, %v2379
        %v2387 = vmul.f32 %v2097, %v2379
        %v2388 = vmul.f32 %v2028, %v2379
        %v2389 = vmul.f32 %v2098, %v2379
        %v2390 = vmul.f32 %v2031, %v2379
        %v2391 = vmul.f32 %v2099, %v2379
        %v2392 = vmul.f32 %v2034, %v2379
        %v2393 = vmul.f32 %v2100, %v2379
        %v2394 = vmul.f32 %v2037, %v2379
        %v2395 = vmul.f32 %v2101, %v2379
        %v2396 = vmul.f32 %v2040, %v2379
        %v2397 = vmul.f32 %v2102, %v2379
        %v2398 = vmul.f32 %v2043, %v2379
        %v2399 = vmul.f32 %v2103, %v2379
        %v2400 = vmul.f32 %v2046, %v2379
        %v2401 = vmul.f32 %v2104, %v2379
        %v2402 = vmul.f32 %v2049, %v2379
        %v2403 = vmul.f32 %v2105, %v2379
        %v2404 = vmul.f32 %v2052, %v2379
        %v2405 = vmul.f32 %v2106, %v2379
        %v2406 = vmul.f32 %v2055, %v2379
        %v2407 = vmul.f32 %v2107, %v2379
        %v2408 = vmul.f32 %v2058, %v2379
        %v2409 = vmul.f32 %v2108, %v2379
        %v2410 = vmul.f32 %v2061, %v2379
        %v2411 = vmul.f32 %v2109, %v2379
        %v2412 = vadd.f32 %v2344, %v2380
        %v2413 = vadd.f32 %v2345, %v2381
        %v2414 = vadd.f32 %v2346, %v2382
        %v2415 = vadd.f32 %v2347, %v2383
        %v2416 = vadd.f32 %v2348, %v2384
        %v2417 = vadd.f32 %v2349, %v2385
        %v2418 = vadd.f32 %v2350, %v2386
        %v2419 = vadd.f32 %v2351, %v2387
        %v2420 = vadd.f32 %v2352, %v2388
        %v2421 = vadd.f32 %v2353, %v2389
        %v2422 = vadd.f32 %v2354, %v2390
        %v2423 = vadd.f32 %v2355, %v2391
        %v2424 = vadd.f32 %v2356, %v2392
        %v2425 = vadd.f32 %v2357, %v2393
        %v2426 = vadd.f32 %v2358, %v2394
        %v2427 = vadd.f32 %v2359, %v2395
        %v2428 = vadd.f32 %v2360, %v2396
        %v2429 = vadd.f32 %v2361, %v2397
        %v2430 = vadd.f32 %v2362, %v2398
        %v2431 = vadd.f32 %v2363, %v2399
        %v2432 = vadd.f32 %v2364, %v2400
        %v2433 = vadd.f32 %v2365, %v2401
        %v2434 = vadd.f32 %v2366, %v2402
        %v2435 = vadd.f32 %v2367, %v2403
        %v2436 = vadd.f32 %v2368, %v2404
        %v2437 = vadd.f32 %v2369, %v2405
        %v2438 = vadd.f32 %v2370, %v2406
        %v2439 = vadd.f32 %v2371, %v2407
        %v2440 = vadd.f32 %v2372, %v2408
        %v2441 = vadd.f32 %v2373, %v2409
        %v2442 = vadd.f32 %v2374, %v2410
        %v2443 = vadd.f32 %v2375, %v2411
        %v2444 = vlaneseq
        %v2445 = vshrl.u32 %v2444, 7
        %v2446 = vsub.s32 6, %v2445
        %v2447 = vrot.slane %v1883, %v2446
        %v2448 = vmul.f32 %v1999, %v2447
        %v2449 = vmul.f32 %v1923, %v2447
        %v2450 = vmul.f32 %v2000, %v2447
        %v2451 = vmul.f32 %v1926, %v2447
        %v2452 = vmul.f32 %v2001, %v2447
        %v2453 = vmul.f32 %v1929, %v2447
        %v2454 = vmul.f32 %v2002, %v2447
        %v2455 = vmul.f32 %v1932, %v2447
        %v2456 = vmul.f32 %v2003, %v2447
        %v2457 = vmul.f32 %v1935, %v2447
        %v2458 = vmul.f32 %v2004, %v2447
        %v2459 = vmul.f32 %v1938, %v2447
        %v2460 = vmul.f32 %v2005, %v2447
        %v2461 = vmul.f32 %v1941, %v2447
        %v2462 = vmul.f32 %v2006, %v2447
        %v2463 = vmul.f32 %v1944, %v2447
        %v2464 = vmul.f32 %v2007, %v2447
        %v2465 = vmul.f32 %v1947, %v2447
        %v2466 = vmul.f32 %v2008, %v2447
        %v2467 = vmul.f32 %v1950, %v2447
        %v2468 = vmul.f32 %v2009, %v2447
        %v2469 = vmul.f32 %v1953, %v2447
        %v2470 = vmul.f32 %v2010, %v2447
        %v2471 = vmul.f32 %v1956, %v2447
        %v2472 = vmul.f32 %v2011, %v2447
        %v2473 = vmul.f32 %v1959, %v2447
        %v2474 = vmul.f32 %v2012, %v2447
        %v2475 = vmul.f32 %v1962, %v2447
        %v2476 = vmul.f32 %v2013, %v2447
        %v2477 = vmul.f32 %v1965, %v2447
        %v2478 = vlaneseq
        %v2479 = vshrl.u32 %v2478, 7
        %v2480 = vsub.s32 7, %v2479
        %v2481 = vrot.slane %v1883, %v2480
        %v2482 = vmul.f32 %v938, %v2481
        %v2483 = vmul.f32 %v941, %v2481
        %v2484 = vmul.f32 %v946, %v2481
        %v2485 = vmul.f32 %v949, %v2481
        %v2486 = vmul.f32 %v954, %v2481
        %v2487 = vmul.f32 %v957, %v2481
        %v2488 = vmul.f32 %v962, %v2481
        %v2489 = vmul.f32 %v965, %v2481
        %v2490 = vmul.f32 %v970, %v2481
        %v2491 = vmul.f32 %v973, %v2481
        %v2492 = vmul.f32 %v978, %v2481
        %v2493 = vmul.f32 %v981, %v2481
        %v2494 = vmul.f32 %v986, %v2481
        %v2495 = vmul.f32 %v989, %v2481
        %v2496 = vmul.f32 %v994, %v2481
        %v2497 = vmul.f32 %v997, %v2481
        %v2498 = vmul.f32 %v1002, %v2481
        %v2499 = vmul.f32 %v1005, %v2481
        %v2500 = vmul.f32 %v1010, %v2481
        %v2501 = vmul.f32 %v1013, %v2481
        %v2502 = vmul.f32 %v1018, %v2481
        %v2503 = vmul.f32 %v1021, %v2481
        %v2504 = vmul.f32 %v1026, %v2481
        %v2505 = vmul.f32 %v1029, %v2481
        %v2506 = vmul.f32 %v1034, %v2481
        %v2507 = vmul.f32 %v1037, %v2481
        %v2508 = vmul.f32 %v1042, %v2481
        %v2509 = vmul.f32 %v1045, %v2481
        %v2510 = vmul.f32 %v1050, %v2481
        %v2511 = vmul.f32 %v1053, %v2481
        %v2512 = vadd.f32 %v2448, %v2482
        %v2513 = vadd.f32 %v2449, %v2483
        %v2514 = vadd.f32 %v2450, %v2484
        %v2515 = vadd.f32 %v2451, %v2485
        %v2516 = vadd.f32 %v2452, %v2486
        %v2517 = vadd.f32 %v2453, %v2487
        %v2518 = vadd.f32 %v2454, %v2488
        %v2519 = vadd.f32 %v2455, %v2489
        %v2520 = vadd.f32 %v2456, %v2490
        %v2521 = vadd.f32 %v2457, %v2491
        %v2522 = vadd.f32 %v2458, %v2492
        %v2523 = vadd.f32 %v2459, %v2493
        %v2524 = vadd.f32 %v2460, %v2494
        %v2525 = vadd.f32 %v2461, %v2495
        %v2526 = vadd.f32 %v2462, %v2496
        %v2527 = vadd.f32 %v2463, %v2497
        %v2528 = vadd.f32 %v2464, %v2498
        %v2529 = vadd.f32 %v2465, %v2499
        %v2530 = vadd.f32 %v2466, %v2500
        %v2531 = vadd.f32 %v2467, %v2501
        %v2532 = vadd.f32 %v2468, %v2502
        %v2533 = vadd.f32 %v2469, %v2503
        %v2534 = vadd.f32 %v2470, %v2504
        %v2535 = vadd.f32 %v2471, %v2505
        %v2536 = vadd.f32 %v2472, %v2506
        %v2537 = vadd.f32 %v2473, %v2507
        %v2538 = vadd.f32 %v2474, %v2508
        %v2539 = vadd.f32 %v2475, %v2509
        %v2540 = vadd.f32 %v2476, %v2510
        %v2541 = vadd.f32 %v2477, %v2511
        %v2542 = vlaneseq
        %v2543 = vshrl.u32 %v2542, 7
        %v2544 = vsub.s32 0, %v2543
        %v2545 = vrot.slane %v1884, %v2544
        %v2546 = vmul.f32 %v2019, %v2545
        %v2547 = vmul.f32 %v2095, %v2545
        %v2548 = vmul.f32 %v2022, %v2545
        %v2549 = vmul.f32 %v2096, %v2545
        %v2550 = vmul.f32 %v2025, %v2545
        %v2551 = vmul.f32 %v2097, %v2545
        %v2552 = vmul.f32 %v2028, %v2545
        %v2553 = vmul.f32 %v2098, %v2545
        %v2554 = vmul.f32 %v2031, %v2545
        %v2555 = vmul.f32 %v2099, %v2545
        %v2556 = vmul.f32 %v2034, %v2545
        %v2557 = vmul.f32 %v2100, %v2545
        %v2558 = vmul.f32 %v2037, %v2545
        %v2559 = vmul.f32 %v2101, %v2545
        %v2560 = vmul.f32 %v2040, %v2545
        %v2561 = vmul.f32 %v2102, %v2545
        %v2562 = vmul.f32 %v2043, %v2545
        %v2563 = vmul.f32 %v2103, %v2545
        %v2564 = vmul.f32 %v2046, %v2545
        %v2565 = vmul.f32 %v2104, %v2545
        %v2566 = vmul.f32 %v2049, %v2545
        %v2567 = vmul.f32 %v2105, %v2545
        %v2568 = vmul.f32 %v2052, %v2545
        %v2569 = vmul.f32 %v2106, %v2545
        %v2570 = vmul.f32 %v2055, %v2545
        %v2571 = vmul.f32 %v2107, %v2545
        %v2572 = vmul.f32 %v2058, %v2545
        %v2573 = vmul.f32 %v2108, %v2545
        %v2574 = vmul.f32 %v2061, %v2545
        %v2575 = vmul.f32 %v2109, %v2545
        %v2576 = vadd.f32 %v2512, %v2546
        %v2577 = vadd.f32 %v2513, %v2547
        %v2578 = vadd.f32 %v2514, %v2548
        %v2579 = vadd.f32 %v2515, %v2549
        %v2580 = vadd.f32 %v2516, %v2550
        %v2581 = vadd.f32 %v2517, %v2551
        %v2582 = vadd.f32 %v2518, %v2552
        %v2583 = vadd.f32 %v2519, %v2553
        %v2584 = vadd.f32 %v2520, %v2554
        %v2585 = vadd.f32 %v2521, %v2555
        %v2586 = vadd.f32 %v2522, %v2556
        %v2587 = vadd.f32 %v2523, %v2557
        %v2588 = vadd.f32 %v2524, %v2558
        %v2589 = vadd.f32 %v2525, %v2559
        %v2590 = vadd.f32 %v2526, %v2560
        %v2591 = vadd.f32 %v2527, %v2561
        %v2592 = vadd.f32 %v2528, %v2562
        %v2593 = vadd.f32 %v2529, %v2563
        %v2594 = vadd.f32 %v2530, %v2564
        %v2595 = vadd.f32 %v2531, %v2565
        %v2596 = vadd.f32 %v2532, %v2566
        %v2597 = vadd.f32 %v2533, %v2567
        %v2598 = vadd.f32 %v2534, %v2568
        %v2599 = vadd.f32 %v2535, %v2569
        %v2600 = vadd.f32 %v2536, %v2570
        %v2601 = vadd.f32 %v2537, %v2571
        %v2602 = vadd.f32 %v2538, %v2572
        %v2603 = vadd.f32 %v2539, %v2573
        %v2604 = vadd.f32 %v2540, %v2574
        %v2605 = vadd.f32 %v2541, %v2575
        %v2607 = vlaneseq
        %v2608 = vshrl.u32 %v2607, 7
        %v2609 = vsub.s32 0, %v2608
        %v2610 = vrot.slane %v1885, %v2609
        %v2612 = vadd.f32 %v2412, %v2610
        %v2613 = vadd.f32 %v2413, %v2610
        %v2614 = vadd.f32 %v2414, %v2610
        %v2615 = vadd.f32 %v2415, %v2610
        %v2616 = vadd.f32 %v2416, %v2610
        %v2617 = vadd.f32 %v2417, %v2610
        %v2618 = vadd.f32 %v2418, %v2610
        %v2619 = vadd.f32 %v2419, %v2610
        %v2620 = vadd.f32 %v2420, %v2610
        %v2621 = vadd.f32 %v2421, %v2610
        %v2622 = vadd.f32 %v2422, %v2610
        %v2623 = vadd.f32 %v2423, %v2610
        %v2624 = vadd.f32 %v2424, %v2610
        %v2625 = vadd.f32 %v2425, %v2610
        %v2626 = vadd.f32 %v2426, %v2610
        %v2627 = vadd.f32 %v2427, %v2610
        %v2628 = vadd.f32 %v2428, %v2610
        %v2629 = vadd.f32 %v2429, %v2610
        %v2630 = vadd.f32 %v2430, %v2610
        %v2631 = vadd.f32 %v2431, %v2610
        %v2632 = vadd.f32 %v2432, %v2610
        %v2633 = vadd.f32 %v2433, %v2610
        %v2634 = vadd.f32 %v2434, %v2610
        %v2635 = vadd.f32 %v2435, %v2610
        %v2636 = vadd.f32 %v2436, %v2610
        %v2637 = vadd.f32 %v2437, %v2610
        %v2638 = vadd.f32 %v2438, %v2610
        %v2639 = vadd.f32 %v2439, %v2610
        %v2640 = vadd.f32 %v2440, %v2610
        %v2641 = vadd.f32 %v2441, %v2610
        %v2642 = vadd.f32 %v2442, %v2610
        %v2643 = vadd.f32 %v2443, %v2610
        %v2644 = vadd.f32 %v2612, 0.0
        %v2645 = vadd.f32 %v2613, 0.0
        %v2646 = vadd.f32 %v2614, %v2242
        %v2647 = vadd.f32 %v2615, %v2243
        %v2648 = vadd.f32 %v2616, %v2244
        %v2649 = vadd.f32 %v2617, %v2245
        %v2650 = vadd.f32 %v2618, %v2246
        %v2651 = vadd.f32 %v2619, %v2247
        %v2652 = vadd.f32 %v2620, %v2248
        %v2653 = vadd.f32 %v2621, %v2249
        %v2654 = vadd.f32 %v2622, %v2250
        %v2655 = vadd.f32 %v2623, %v2251
        %v2656 = vadd.f32 %v2624, %v2252
        %v2657 = vadd.f32 %v2625, %v2253
        %v2658 = vadd.f32 %v2626, %v2254
        %v2659 = vadd.f32 %v2627, %v2255
        %v2660 = vadd.f32 %v2628, %v2256
        %v2661 = vadd.f32 %v2629, %v2257
        %v2662 = vadd.f32 %v2630, %v2258
        %v2663 = vadd.f32 %v2631, %v2259
        %v2664 = vadd.f32 %v2632, %v2260
        %v2665 = vadd.f32 %v2633, %v2261
        %v2666 = vadd.f32 %v2634, %v2262
        %v2667 = vadd.f32 %v2635, %v2263
        %v2668 = vadd.f32 %v2636, %v2264
        %v2669 = vadd.f32 %v2637, %v2265
        %v2670 = vadd.f32 %v2638, %v2266
        %v2671 = vadd.f32 %v2639, %v2267
        %v2672 = vadd.f32 %v2640, %v2268
        %v2673 = vadd.f32 %v2641, %v2269
        %v2674 = vadd.f32 %v2642, %v2270
        %v2675 = vadd.f32 %v2643, %v2271
        %v2676 = vadd.f32 %v2644, %v2576
        %v2677 = vadd.f32 %v2645, %v2577
        %v2678 = vadd.f32 %v2646, %v2578
        %v2679 = vadd.f32 %v2647, %v2579
        %v2680 = vadd.f32 %v2648, %v2580
        %v2681 = vadd.f32 %v2649, %v2581
        %v2682 = vadd.f32 %v2650, %v2582
        %v2683 = vadd.f32 %v2651, %v2583
        %v2684 = vadd.f32 %v2652, %v2584
        %v2685 = vadd.f32 %v2653, %v2585
        %v2686 = vadd.f32 %v2654, %v2586
        %v2687 = vadd.f32 %v2655, %v2587
        %v2688 = vadd.f32 %v2656, %v2588
        %v2689 = vadd.f32 %v2657, %v2589
        %v2690 = vadd.f32 %v2658, %v2590
        %v2691 = vadd.f32 %v2659, %v2591
        %v2692 = vadd.f32 %v2660, %v2592
        %v2693 = vadd.f32 %v2661, %v2593
        %v2694 = vadd.f32 %v2662, %v2594
        %v2695 = vadd.f32 %v2663, %v2595
        %v2696 = vadd.f32 %v2664, %v2596
        %v2697 = vadd.f32 %v2665, %v2597
        %v2698 = vadd.f32 %v2666, %v2598
        %v2699 = vadd.f32 %v2667, %v2599
        %v2700 = vadd.f32 %v2668, %v2600
        %v2701 = vadd.f32 %v2669, %v2601
        %v2702 = vadd.f32 %v2670, %v2602
        %v2703 = vadd.f32 %v2671, %v2603
        %v2704 = vadd.f32 %v2672, %v2604
        %v2705 = vadd.f32 %v2673, %v2605
        %v2706 = vadd.f32 %v2674, 0.0
        %v2707 = vadd.f32 %v2675, 0.0
        %v2708 = vxor.u32 %v1851, 2147483648
        %v2709 = vxor.u32 %v1852, 2147483648
        %v2710 = vxor.u32 %v1853, 2147483648
        %v2711 = vxor.u32 %v1854, 2147483648
        %v2712 = vxor.u32 %v1855, 2147483648
        %v2713 = vxor.u32 %v1856, 2147483648
        %v2714 = vxor.u32 %v1857, 2147483648
        %v2715 = vxor.u32 %v1858, 2147483648
        %v2716 = vxor.u32 %v1859, 2147483648
        %v2717 = vxor.u32 %v1860, 2147483648
        %v2718 = vxor.u32 %v1861, 2147483648
        %v2719 = vxor.u32 %v1862, 2147483648
        %v2720 = vxor.u32 %v1863, 2147483648
        %v2721 = vxor.u32 %v1864, 2147483648
        %v2722 = vxor.u32 %v1865, 2147483648
        %v2723 = vxor.u32 %v1866, 2147483648
        %v2724 = vxor.u32 %v1867, 2147483648
        %v2725 = vxor.u32 %v1868, 2147483648
        %v2726 = vxor.u32 %v1869, 2147483648
        %v2727 = vxor.u32 %v1870, 2147483648
        %v2728 = vxor.u32 %v1871, 2147483648
        %v2729 = vxor.u32 %v1872, 2147483648
        %v2730 = vxor.u32 %v1873, 2147483648
        %v2731 = vxor.u32 %v1874, 2147483648
        %v2732 = vxor.u32 %v1875, 2147483648
        %v2733 = vxor.u32 %v1876, 2147483648
        %v2734 = vxor.u32 %v1877, 2147483648
        %v2735 = vxor.u32 %v1878, 2147483648
        %v2736 = vxor.u32 %v1879, 2147483648
        %v2737 = vxor.u32 %v1880, 2147483648
        %v2738 = vxor.u32 %v1881, 2147483648
        %v2739 = vxor.u32 %v1882, 2147483648
        %v2740 = vmul.f32 %v2708, 1.442695
        %v2741 = vpow.pop %v2740
        %v2742 = vmul.f32 %v2709, 1.442695
        %v2743 = vpow.pop %v2742
        %v2744 = vmul.f32 %v2710, 1.442695
        %v2745 = vpow.pop %v2744
        %v2746 = vmul.f32 %v2711, 1.442695
        %v2747 = vpow.pop %v2746
        %v2748 = vmul.f32 %v2712, 1.442695
        %v2749 = vpow.pop %v2748
        %v2750 = vmul.f32 %v2713, 1.442695
        %v2751 = vpow.pop %v2750
        %v2752 = vmul.f32 %v2714, 1.442695
        %v2753 = vpow.pop %v2752
        %v2754 = vmul.f32 %v2715, 1.442695
        %v2755 = vpow.pop %v2754
        %v2756 = vmul.f32 %v2716, 1.442695
        %v2757 = vpow.pop %v2756
        %v2758 = vmul.f32 %v2717, 1.442695
        %v2759 = vpow.pop %v2758
        %v2760 = vmul.f32 %v2718, 1.442695
        %v2761 = vpow.pop %v2760
        %v2762 = vmul.f32 %v2719, 1.442695
        %v2763 = vpow.pop %v2762
        %v2764 = vmul.f32 %v2720, 1.442695
        %v2765 = vpow.pop %v2764
        %v2766 = vmul.f32 %v2721, 1.442695
        %v2767 = vpow.pop %v2766
        %v2768 = vmul.f32 %v2722, 1.442695
        %v2769 = vpow.pop %v2768
        %v2770 = vmul.f32 %v2723, 1.442695
        %v2771 = vpow.pop %v2770
        %v2772 = vmul.f32 %v2724, 1.442695
        %v2773 = vpow.pop %v2772
        %v2774 = vmul.f32 %v2725, 1.442695
        %v2775 = vpow.pop %v2774
        %v2776 = vmul.f32 %v2726, 1.442695
        %v2777 = vpow.pop %v2776
        %v2778 = vmul.f32 %v2727, 1.442695
        %v2779 = vpow.pop %v2778
        %v2780 = vmul.f32 %v2728, 1.442695
        %v2781 = vpow.pop %v2780
        %v2782 = vmul.f32 %v2729, 1.442695
        %v2783 = vpow.pop %v2782
        %v2784 = vmul.f32 %v2730, 1.442695
        %v2785 = vpow.pop %v2784
        %v2786 = vmul.f32 %v2731, 1.442695
        %v2787 = vpow.pop %v2786
        %v2788 = vmul.f32 %v2732, 1.442695
        %v2789 = vpow.pop %v2788
        %v2790 = vmul.f32 %v2733, 1.442695
        %v2791 = vpow.pop %v2790
        %v2792 = vmul.f32 %v2734, 1.442695
        %v2793 = vpow.pop %v2792
        %v2794 = vmul.f32 %v2735, 1.442695
        %v2795 = vpow.pop %v2794
        %v2796 = vmul.f32 %v2736, 1.442695
        %v2797 = vpow.pop %v2796
        %v2798 = vmul.f32 %v2737, 1.442695
        %v2799 = vpow.pop %v2798
        %v2800 = vmul.f32 %v2738, 1.442695
        %v2801 = vpow.pop %v2800
        %v2802 = vmul.f32 %v2739, 1.442695
        %v2803 = vpow.pop %v2802
        %v2804 = vadd.f32 %v2741, 1.0
        %v2805 = vadd.f32 %v2743, 1.0
        %v2806 = vadd.f32 %v2745, 1.0
        %v2807 = vadd.f32 %v2747, 1.0
        %v2808 = vadd.f32 %v2749, 1.0
        %v2809 = vadd.f32 %v2751, 1.0
        %v2810 = vadd.f32 %v2753, 1.0
        %v2811 = vadd.f32 %v2755, 1.0
        %v2812 = vadd.f32 %v2757, 1.0
        %v2813 = vadd.f32 %v2759, 1.0
        %v2814 = vadd.f32 %v2761, 1.0
        %v2815 = vadd.f32 %v2763, 1.0
        %v2816 = vadd.f32 %v2765, 1.0
        %v2817 = vadd.f32 %v2767, 1.0
        %v2818 = vadd.f32 %v2769, 1.0
        %v2819 = vadd.f32 %v2771, 1.0
        %v2820 = vadd.f32 %v2773, 1.0
        %v2821 = vadd.f32 %v2775, 1.0
        %v2822 = vadd.f32 %v2777, 1.0
        %v2823 = vadd.f32 %v2779, 1.0
        %v2824 = vadd.f32 %v2781, 1.0
        %v2825 = vadd.f32 %v2783, 1.0
        %v2826 = vadd.f32 %v2785, 1.0
        %v2827 = vadd.f32 %v2787, 1.0
        %v2828 = vadd.f32 %v2789, 1.0
        %v2829 = vadd.f32 %v2791, 1.0
        %v2830 = vadd.f32 %v2793, 1.0
        %v2831 = vadd.f32 %v2795, 1.0
        %v2832 = vadd.f32 %v2797, 1.0
        %v2833 = vadd.f32 %v2799, 1.0
        %v2834 = vadd.f32 %v2801, 1.0
        %v2835 = vadd.f32 %v2803, 1.0
        %v2836 = vrcp.pop %v2804
        %v2837 = vmul.f32 1.0, %v2836
        %v2838 = vrcp.pop %v2805
        %v2839 = vmul.f32 1.0, %v2838
        %v2840 = vrcp.pop %v2806
        %v2841 = vmul.f32 1.0, %v2840
        %v2842 = vrcp.pop %v2807
        %v2843 = vmul.f32 1.0, %v2842
        %v2844 = vrcp.pop %v2808
        %v2845 = vmul.f32 1.0, %v2844
        %v2846 = vrcp.pop %v2809
        %v2847 = vmul.f32 1.0, %v2846
        %v2848 = vrcp.pop %v2810
        %v2849 = vmul.f32 1.0, %v2848
        %v2850 = vrcp.pop %v2811
        %v2851 = vmul.f32 1.0, %v2850
        %v2852 = vrcp.pop %v2812
        %v2853 = vmul.f32 1.0, %v2852
        %v2854 = vrcp.pop %v2813
        %v2855 = vmul.f32 1.0, %v2854
        %v2856 = vrcp.pop %v2814
        %v2857 = vmul.f32 1.0, %v2856
        %v2858 = vrcp.pop %v2815
        %v2859 = vmul.f32 1.0, %v2858
        %v2860 = vrcp.pop %v2816
        %v2861 = vmul.f32 1.0, %v2860
        %v2862 = vrcp.pop %v2817
        %v2863 = vmul.f32 1.0, %v2862
        %v2864 = vrcp.pop %v2818
        %v2865 = vmul.f32 1.0, %v2864
        %v2866 = vrcp.pop %v2819
        %v2867 = vmul.f32 1.0, %v2866
        %v2868 = vrcp.pop %v2820
        %v2869 = vmul.f32 1.0, %v2868
        %v2870 = vrcp.pop %v2821
        %v2871 = vmul.f32 1.0, %v2870
        %v2872 = vrcp.pop %v2822
        %v2873 = vmul.f32 1.0, %v2872
        %v2874 = vrcp.pop %v2823
        %v2875 = vmul.f32 1.0, %v2874
        %v2876 = vrcp.pop %v2824
        %v2877 = vmul.f32 1.0, %v2876
        %v2878 = vrcp.pop %v2825
        %v2879 = vmul.f32 1.0, %v2878
        %v2880 = vrcp.pop %v2826
        %v2881 = vmul.f32 1.0, %v2880
        %v2882 = vrcp.pop %v2827
        %v2883 = vmul.f32 1.0, %v2882
        %v2884 = vrcp.pop %v2828
        %v2885 = vmul.f32 1.0, %v2884
        %v2886 = vrcp.pop %v2829
        %v2887 = vmul.f32 1.0, %v2886
        %v2888 = vrcp.pop %v2830
        %v2889 = vmul.f32 1.0, %v2888
        %v2890 = vrcp.pop %v2831
        %v2891 = vmul.f32 1.0, %v2890
        %v2892 = vrcp.pop %v2832
        %v2893 = vmul.f32 1.0, %v2892
        %v2894 = vrcp.pop %v2833
        %v2895 = vmul.f32 1.0, %v2894
        %v2896 = vrcp.pop %v2834
        %v2897 = vmul.f32 1.0, %v2896
        %v2898 = vrcp.pop %v2835
        %v2899 = vmul.f32 1.0, %v2898
        %v2900 = vmul.f32 %v1851, %v2837
        %v2901 = vmul.f32 %v1852, %v2839
        %v2902 = vmul.f32 %v1853, %v2841
        %v2903 = vmul.f32 %v1854, %v2843
        %v2904 = vmul.f32 %v1855, %v2845
        %v2905 = vmul.f32 %v1856, %v2847
        %v2906 = vmul.f32 %v1857, %v2849
        %v2907 = vmul.f32 %v1858, %v2851
        %v2908 = vmul.f32 %v1859, %v2853
        %v2909 = vmul.f32 %v1860, %v2855
        %v2910 = vmul.f32 %v1861, %v2857
        %v2911 = vmul.f32 %v1862, %v2859
        %v2912 = vmul.f32 %v1863, %v2861
        %v2913 = vmul.f32 %v1864, %v2863
        %v2914 = vmul.f32 %v1865, %v2865
        %v2915 = vmul.f32 %v1866, %v2867
        %v2916 = vmul.f32 %v1867, %v2869
        %v2917 = vmul.f32 %v1868, %v2871
        %v2918 = vmul.f32 %v1869, %v2873
        %v2919 = vmul.f32 %v1870, %v2875
        %v2920 = vmul.f32 %v1871, %v2877
        %v2921 = vmul.f32 %v1872, %v2879
        %v2922 = vmul.f32 %v1873, %v2881
        %v2923 = vmul.f32 %v1874, %v2883
        %v2924 = vmul.f32 %v1875, %v2885
        %v2925 = vmul.f32 %v1876, %v2887
        %v2926 = vmul.f32 %v1877, %v2889
        %v2927 = vmul.f32 %v1878, %v2891
        %v2928 = vmul.f32 %v1879, %v2893
        %v2929 = vmul.f32 %v1880, %v2895
        %v2930 = vmul.f32 %v1881, %v2897
        %v2931 = vmul.f32 %v1882, %v2899
        %v2932 = vmul.f32 %v2900, %v2676
        %v2933 = vmul.f32 %v2901, %v2677
        %v2934 = vmul.f32 %v2902, %v2678
        %v2935 = vmul.f32 %v2903, %v2679
        %v2936 = vmul.f32 %v2904, %v2680
        %v2937 = vmul.f32 %v2905, %v2681
        %v2938 = vmul.f32 %v2906, %v2682
        %v2939 = vmul.f32 %v2907, %v2683
        %v2940 = vmul.f32 %v2908, %v2684
        %v2941 = vmul.f32 %v2909, %v2685
        %v2942 = vmul.f32 %v2910, %v2686
        %v2943 = vmul.f32 %v2911, %v2687
        %v2944 = vmul.f32 %v2912, %v2688
        %v2945 = vmul.f32 %v2913, %v2689
        %v2946 = vmul.f32 %v2914, %v2690
        %v2947 = vmul.f32 %v2915, %v2691
        %v2948 = vmul.f32 %v2916, %v2692
        %v2949 = vmul.f32 %v2917, %v2693
        %v2950 = vmul.f32 %v2918, %v2694
        %v2951 = vmul.f32 %v2919, %v2695
        %v2952 = vmul.f32 %v2920, %v2696
        %v2953 = vmul.f32 %v2921, %v2697
        %v2954 = vmul.f32 %v2922, %v2698
        %v2955 = vmul.f32 %v2923, %v2699
        %v2956 = vmul.f32 %v2924, %v2700
        %v2957 = vmul.f32 %v2925, %v2701
        %v2958 = vmul.f32 %v2926, %v2702
        %v2959 = vmul.f32 %v2927, %v2703
        %v2960 = vmul.f32 %v2928, %v2704
        %v2961 = vmul.f32 %v2929, %v2705
        %v2962 = vmul.f32 %v2930, %v2706
        %v2963 = vmul.f32 %v2931, %v2707
        %v2964 = vpack.c.bf16 %v2933, %v2932
        %v2965 = vpack.c.bf16 %v2935, %v2934
        %v2966 = vpack.c.bf16 %v2937, %v2936
        %v2967 = vpack.c.bf16 %v2939, %v2938
        %v2968 = vpack.c.bf16 %v2941, %v2940
        %v2969 = vpack.c.bf16 %v2943, %v2942
        %v2970 = vpack.c.bf16 %v2945, %v2944
        %v2971 = vpack.c.bf16 %v2947, %v2946
        %v2972 = vpack.c.bf16 %v2949, %v2948
        %v2973 = vpack.c.bf16 %v2951, %v2950
        %v2974 = vpack.c.bf16 %v2953, %v2952
        %v2975 = vpack.c.bf16 %v2955, %v2954
        %v2976 = vpack.c.bf16 %v2957, %v2956
        %v2977 = vpack.c.bf16 %v2959, %v2958
        %v2978 = vpack.c.bf16 %v2961, %v2960
        %v2979 = vpack.c.bf16 %v2963, %v2962
        %v2980 = vld [vmem:[#allocation10] sm:$0xf]
        %v2981 = vld [vmem:[#allocation10 + $0x4] sm:$0xf]
        %v2982 = vld [vmem:[#allocation10 + $0x8] sm:$0xf]
        %v2983 = vld [vmem:[#allocation10 + $0xc] sm:$0xf]
        %v2984 = vld [vmem:[#allocation10 + $0x10] sm:$0xf]
        %v2985 = vld [vmem:[#allocation10 + $0x14] sm:$0xf]
        %v2986 = vld [vmem:[#allocation10 + $0x18] sm:$0xf]
        %v2987 = vld [vmem:[#allocation10 + $0x1c] sm:$0xf]
        %v2988 = vld [vmem:[#allocation10 + $0x20] sm:$0xf]
        %v2989 = vld [vmem:[#allocation10 + $0x24] sm:$0xf]
        %v2990 = vld [vmem:[#allocation10 + $0x28] sm:$0xf]
        %v2991 = vld [vmem:[#allocation10 + $0x2c] sm:$0xf]
        %v2992 = vld [vmem:[#allocation10 + $0x30] sm:$0xf]
        %v2993 = vld [vmem:[#allocation10 + $0x34] sm:$0xf]
        %v2994 = vld [vmem:[#allocation10 + $0x38] sm:$0xf]
        %v2995 = vld [vmem:[#allocation10 + $0x3c] sm:$0xf]
        %v2996 = vld [vmem:[%s10] sm:$0x1]
        %v2998 = vlaneseq
        %v2999 = vshrl.u32 %v2998, 7
        %v3000 = vsub.s32 0, %v2999
        %v3001 = vrot.slane %v2996, %v3000
        %v3019 = vunpack.c.l.b16 %v2980
        %v3020 = vunpack.c.l.b16 %v2981
        %v3021 = vunpack.c.l.b16 %v2982
        %v3022 = vunpack.c.l.b16 %v2983
        %v3023 = vunpack.c.l.b16 %v2984
        %v3024 = vunpack.c.l.b16 %v2985
        %v3025 = vunpack.c.l.b16 %v2986
        %v3026 = vunpack.c.l.b16 %v2987
        %v3027 = vunpack.c.l.b16 %v2988
        %v3028 = vunpack.c.l.b16 %v2989
        %v3029 = vunpack.c.l.b16 %v2990
        %v3030 = vunpack.c.l.b16 %v2991
        %v3031 = vunpack.c.l.b16 %v2992
        %v3032 = vunpack.c.l.b16 %v2993
        %v3033 = vunpack.c.l.b16 %v2994
        %v3034 = vunpack.c.l.b16 %v2995
        %v3035 = vpack.c.b16 %v3020, %v3019
        %v3036 = vpack.c.b16 %v3022, %v3021
        %v3037 = vpack.c.b16 %v3024, %v3023
        %v3038 = vpack.c.b16 %v3026, %v3025
        %v3039 = vpack.c.b16 %v3028, %v3027
        %v3040 = vpack.c.b16 %v3030, %v3029
        %v3041 = vpack.c.b16 %v3032, %v3031
        %v3042 = vpack.c.b16 %v3034, %v3033
        %3051 = vmatprep.subr.bf16.mxu0 0
        %3052 = vmatpush1.bf16.msra.mxu0 %v3035
        %3053 = vmatprep.subr.bf16.mxu0 0
        %3054 = vmatpush1.bf16.msra.mxu0 %v3036
        %3055 = vmatprep.subr.bf16.mxu0 0
        %3056 = vmatpush1.bf16.msra.mxu0 %v3037
        %3057 = vmatprep.subr.bf16.mxu0 0
        %3058 = vmatpush1.bf16.msra.mxu0 %v3038
        %3059 = vmatprep.subr.bf16.mxu0 0
        %3060 = vmatpush1.bf16.msra.mxu0 %v3039
        %3061 = vmatprep.subr.bf16.mxu0 0
        %3062 = vmatpush1.bf16.msra.mxu0 %v3040
        %3063 = vmatprep.subr.bf16.mxu0 0
        %3064 = vmatpush1.bf16.msra.mxu0 %v3041
        %3065 = vmatprep.subr.bf16.mxu0 0
        %3066 = vmatpush1.bf16.msra.mxu0 %v3042
        %3067 = vmatprep.subr.bf16.mxu0 0
        %3068 = vmatpush1.bf16.msra.mxu0 0
        %3069 = vmatprep.subr.bf16.mxu0 0
        %3070 = vmatpush1.bf16.msra.mxu0 0
        %3071 = vmatprep.subr.bf16.mxu0 0
        %3072 = vmatpush1.bf16.msra.mxu0 0
        %3073 = vmatprep.subr.bf16.mxu0 0
        %3074 = vmatpush1.bf16.msra.mxu0 0
        %3075 = vmatprep.subr.bf16.mxu0 0
        %3076 = vmatpush1.bf16.msra.mxu0 0
        %3077 = vmatprep.subr.bf16.mxu0 0
        %3078 = vmatpush1.bf16.msra.mxu0 0
        %3079 = vmatprep.subr.bf16.mxu0 0
        %3080 = vmatpush1.bf16.msra.mxu0 0
        %3081 = vmatprep.subr.bf16.mxu0 0
        %3082 = vmatpush1.bf16.msra.mxu0 0
        %3083 = vmatprep.mubr.bf16.mxu0 0
        %3084 = vmatmul.mubr.bf16.gmra.mrb[0].mxu0 %v2964
        %v3085 = vpop.f32.mrb[0].mxu0
        %v3086 = vadd.f32 %v3001, %v3085
        %v3087 = vpop.f32.mrb[0].mxu0
        %v3088 = vpop.f32.mrb[0].mxu0
        %v3089 = vadd.f32 %v3001, %v3088
        %v3090 = vpop.f32.mrb[0].mxu0
        %3091 = vmatprep.mubr.bf16.mxu0 0
        %3092 = vmatmul.mubr.bf16.gmra.mrb[0].mxu0 %v2965
        %v3093 = vpop.f32.mrb[0].mxu0
        %v3094 = vadd.f32 %v3001, %v3093
        %v3095 = vpop.f32.mrb[0].mxu0
        %v3096 = vpop.f32.mrb[0].mxu0
        %v3097 = vadd.f32 %v3001, %v3096
        %v3098 = vpop.f32.mrb[0].mxu0
        %3099 = vmatprep.mubr.bf16.mxu0 0
        %3100 = vmatmul.mubr.bf16.gmra.mrb[0].mxu0 %v2966
        %v3101 = vpop.f32.mrb[0].mxu0
        %v3102 = vadd.f32 %v3001, %v3101
        %v3103 = vpop.f32.mrb[0].mxu0
        %v3104 = vpop.f32.mrb[0].mxu0
        %v3105 = vadd.f32 %v3001, %v3104
        %v3106 = vpop.f32.mrb[0].mxu0
        %3107 = vmatprep.mubr.bf16.mxu0 0
        %3108 = vmatmul.mubr.bf16.gmra.mrb[0].mxu0 %v2967
        %v3109 = vpop.f32.mrb[0].mxu0
        %v3110 = vadd.f32 %v3001, %v3109
        %v3111 = vpop.f32.mrb[0].mxu0
        %v3112 = vpop.f32.mrb[0].mxu0
        %v3113 = vadd.f32 %v3001, %v3112
        %v3114 = vpop.f32.mrb[0].mxu0
        %3115 = vmatprep.mubr.bf16.mxu0 0
        %3116 = vmatmul.mubr.bf16.gmra.mrb[0].mxu0 %v2968
        %v3117 = vpop.f32.mrb[0].mxu0
        %v3118 = vadd.f32 %v3001, %v3117
        %v3119 = vpop.f32.mrb[0].mxu0
        %v3120 = vpop.f32.mrb[0].mxu0
        %v3121 = vadd.f32 %v3001, %v3120
        %v3122 = vpop.f32.mrb[0].mxu0
        %3123 = vmatprep.mubr.bf16.mxu0 0
        %3124 = vmatmul.mubr.bf16.gmra.mrb[0].mxu0 %v2969
        %v3125 = vpop.f32.mrb[0].mxu0
        %v3126 = vadd.f32 %v3001, %v3125
        %v3127 = vpop.f32.mrb[0].mxu0
        %v3128 = vpop.f32.mrb[0].mxu0
        %v3129 = vadd.f32 %v3001, %v3128
        %v3130 = vpop.f32.mrb[0].mxu0
        %3131 = vmatprep.mubr.bf16.mxu0 0
        %3132 = vmatmul.mubr.bf16.gmra.mrb[0].mxu0 %v2970
        %v3133 = vpop.f32.mrb[0].mxu0
        %v3134 = vadd.f32 %v3001, %v3133
        %v3135 = vpop.f32.mrb[0].mxu0
        %v3136 = vpop.f32.mrb[0].mxu0
        %v3137 = vadd.f32 %v3001, %v3136
        %v3138 = vpop.f32.mrb[0].mxu0
        %3139 = vmatprep.mubr.bf16.mxu0 0
        %3140 = vmatmul.mubr.bf16.gmra.mrb[0].mxu0 %v2971
        %v3141 = vpop.f32.mrb[0].mxu0
        %v3142 = vadd.f32 %v3001, %v3141
        %v3143 = vpop.f32.mrb[0].mxu0
        %v3144 = vpop.f32.mrb[0].mxu0
        %v3145 = vadd.f32 %v3001, %v3144
        %v3146 = vpop.f32.mrb[0].mxu0
        %3147 = vmatprep.mubr.bf16.mxu0 0
        %3148 = vmatmul.mubr.bf16.gmra.mrb[0].mxu0 %v2972
        %v3149 = vpop.f32.mrb[0].mxu0
        %v3150 = vadd.f32 %v3001, %v3149
        %v3151 = vpop.f32.mrb[0].mxu0
        %v3152 = vpop.f32.mrb[0].mxu0
        %v3153 = vadd.f32 %v3001, %v3152
        %v3154 = vpop.f32.mrb[0].mxu0
        %3155 = vmatprep.mubr.bf16.mxu0 0
        %3156 = vmatmul.mubr.bf16.gmra.mrb[0].mxu0 %v2973
        %v3157 = vpop.f32.mrb[0].mxu0
        %v3158 = vadd.f32 %v3001, %v3157
        %v3159 = vpop.f32.mrb[0].mxu0
        %v3160 = vpop.f32.mrb[0].mxu0
        %v3161 = vadd.f32 %v3001, %v3160
        %v3162 = vpop.f32.mrb[0].mxu0
        %3163 = vmatprep.mubr.bf16.mxu0 0
        %3164 = vmatmul.mubr.bf16.gmra.mrb[0].mxu0 %v2974
        %v3165 = vpop.f32.mrb[0].mxu0
        %v3166 = vadd.f32 %v3001, %v3165
        %v3167 = vpop.f32.mrb[0].mxu0
        %v3168 = vpop.f32.mrb[0].mxu0
        %v3169 = vadd.f32 %v3001, %v3168
        %v3170 = vpop.f32.mrb[0].mxu0
        %3171 = vmatprep.mubr.bf16.mxu0 0
        %3172 = vmatmul.mubr.bf16.gmra.mrb[0].mxu0 %v2975
        %v3173 = vpop.f32.mrb[0].mxu0
        %v3174 = vadd.f32 %v3001, %v3173
        %v3175 = vpop.f32.mrb[0].mxu0
        %v3176 = vpop.f32.mrb[0].mxu0
        %v3177 = vadd.f32 %v3001, %v3176
        %v3178 = vpop.f32.mrb[0].mxu0
        %3179 = vmatprep.mubr.bf16.mxu0 0
        %3180 = vmatmul.mubr.bf16.gmra.mrb[0].mxu0 %v2976
        %v3181 = vpop.f32.mrb[0].mxu0
        %v3182 = vadd.f32 %v3001, %v3181
        %v3183 = vpop.f32.mrb[0].mxu0
        %v3184 = vpop.f32.mrb[0].mxu0
        %v3185 = vadd.f32 %v3001, %v3184
        %v3186 = vpop.f32.mrb[0].mxu0
        %3187 = vmatprep.mubr.bf16.mxu0 0
        %3188 = vmatmul.mubr.bf16.gmra.mrb[0].mxu0 %v2977
        %v3189 = vpop.f32.mrb[0].mxu0
        %v3190 = vadd.f32 %v3001, %v3189
        %v3191 = vpop.f32.mrb[0].mxu0
        %v3192 = vpop.f32.mrb[0].mxu0
        %v3193 = vadd.f32 %v3001, %v3192
        %v3194 = vpop.f32.mrb[0].mxu0
        %3195 = vmatprep.mubr.bf16.mxu0 0
        %3196 = vmatmul.mubr.bf16.gmra.mrb[0].mxu0 %v2978
        %v3197 = vpop.f32.mrb[0].mxu0
        %v3198 = vadd.f32 %v3001, %v3197
        %v3199 = vpop.f32.mrb[0].mxu0
        %v3200 = vpop.f32.mrb[0].mxu0
        %v3201 = vadd.f32 %v3001, %v3200
        %v3202 = vpop.f32.mrb[0].mxu0
        %3203 = vmatprep.mubr.bf16.mxu0 0
        %3204 = vmatmul.mubr.bf16.gmra.mrb[0].mxu0 %v2979
        %v3205 = vpop.f32.mrb[0].mxu0
        %v3206 = vadd.f32 %v3001, %v3205
        %v3207 = vpop.f32.mrb[0].mxu0
        %v3208 = vpop.f32.mrb[0].mxu0
        %v3209 = vadd.f32 %v3001, %v3208
        %v3210 = vpop.f32.mrb[0].mxu0
        %3211 = vdwg.mxu0
        %3212 = vst [vmem:[%s462] sm:$0xff] %v3086
        %3213 = vst [vmem:[%s462 + $0x8] sm:$0xff] %v3089
        %3214 = vst [vmem:[%s462 + $0x10] sm:$0xff] %v3094
        %3215 = vst [vmem:[%s462 + $0x18] sm:$0xff] %v3097
        %3216 = vst [vmem:[%s462 + $0x20] sm:$0xff] %v3102
        %3217 = vst [vmem:[%s462 + $0x28] sm:$0xff] %v3105
        %3218 = vst [vmem:[%s462 + $0x30] sm:$0xff] %v3110
        %3219 = vst [vmem:[%s462 + $0x38] sm:$0xff] %v3113
        %3220 = vst [vmem:[%s462 + $0x40] sm:$0xff] %v3118
        %3221 = vst [vmem:[%s462 + $0x48] sm:$0xff] %v3121
        %3222 = vst [vmem:[%s462 + $0x50] sm:$0xff] %v3126
        %3223 = vst [vmem:[%s462 + $0x58] sm:$0xff] %v3129
        %3224 = vst [vmem:[%s462 + $0x60] sm:$0xff] %v3134
        %3225 = vst [vmem:[%s462 + $0x68] sm:$0xff] %v3137
        %3226 = vst [vmem:[%s462 + $0x70] sm:$0xff] %v3142
        %3227 = vst [vmem:[%s462 + $0x78] sm:$0xff] %v3145
        %3228 = vst [vmem:[%s462 + $0x80] sm:$0xff] %v3150
        %3229 = vst [vmem:[%s462 + $0x88] sm:$0xff] %v3153
        %3230 = vst [vmem:[%s462 + $0x90] sm:$0xff] %v3158
        %3231 = vst [vmem:[%s462 + $0x98] sm:$0xff] %v3161
        %3232 = vst [vmem:[%s462 + $0xa0] sm:$0xff] %v3166
        %3233 = vst [vmem:[%s462 + $0xa8] sm:$0xff] %v3169
        %3234 = vst [vmem:[%s462 + $0xb0] sm:$0xff] %v3174
        %3235 = vst [vmem:[%s462 + $0xb8] sm:$0xff] %v3177
        %3236 = vst [vmem:[%s462 + $0xc0] sm:$0xff] %v3182
        %3237 = vst [vmem:[%s462 + $0xc8] sm:$0xff] %v3185
        %3238 = vst [vmem:[%s462 + $0xd0] sm:$0xff] %v3190
        %3239 = vst [vmem:[%s462 + $0xd8] sm:$0xff] %v3193
        %3240 = vst [vmem:[%s462 + $0xe0] sm:$0xff] %v3198
        %3241 = vst [vmem:[%s462 + $0xe8] sm:$0xff] %v3201
        %3242 = vst [vmem:[%s462 + $0xf0] sm:$0xff] %v3206
        %3243 = vst [vmem:[%s462 + $0xf8] sm:$0xff] %v3209
        %s3244 = sand.u32 %s274, 1
        %s3245 = scalar_lea.sflag [#allocation4], %s3244
        %s3246 = sand.u32 %s274, 1
        %s3247 = smul.addr %s3246, 256
        %s3248 = scalar_lea.vmem [#allocation11], %s3247
        // Predicated region
        $region85: #{tpu_custom_call.1} parent=63 // pred_check
          %p3249 = pneg %p284
        $region86: #{tpu_custom_call.1} parent=63 // pred_check_branch
          %3251 = sbr.rel (%p3249) target = $region88
        $region87: #{tpu_custom_call.1} parent=63 // pred_region
          %s3253 = ssub.s32 4096, 4096
          %3254 = vsyncadd %s3245, %s3253
          %s3255 = smul.addr %s30, 32
          %s3256 = smul.addr %s3255, 128
          %s3257 = scalar_lea.hbm %s11, %s3256
          %s3258 = sshll.u32 %s3248, 4
          %s3259 = int_to_ptr.vmem [resolvable:$true] %s3258
          %3264 = dma.vmem_to_hbm [thread:$0]  %s3259, 4096, %s3257, %s3245, 128, 128, 8
        $region88: #{tpu_custom_call.1} parent=63 // pred_fallthru
          _
      $region64: #{tpu_custom_call.1} parent=5 // pred_fallthru
        _
      %p3265 = scmp.le.s32.totalorder 2, %s25
      // Predicated region
      $region89: #{tpu_custom_call.1} parent=5 // pred_check
        %p3266 = pneg %p3265
      $region90: #{tpu_custom_call.1} parent=5 // pred_check_branch
        %3268 = sbr.rel (%p3266) target = $region92
      $region91: #{tpu_custom_call.1} parent=5 // pred_region
        %s3269 = ssub.s32 %s25, 2
        // Predicated region
        $region93: #{tpu_custom_call.1} parent=91 // pred_check
          %p3270 = pneg %p290
        $region94: #{tpu_custom_call.1} parent=91 // pred_check_branch
          %3272 = sbr.rel (%p3270) target = $region96
        $region95: #{tpu_custom_call.1} parent=91 // pred_region
          %s3273 = sand.u32 %s275, 1
          %s3274 = scalar_lea.sflag [#allocation4], %s3273
          %s3275 = sand.u32 %s275, 1
          %s3276 = smul.addr %s3275, 256
          %s3277 = scalar_lea.vmem [#allocation11], %s3276
          %3278 = dma.done %s3274, 4096
        $region96: #{tpu_custom_call.1} parent=91 // pred_fallthru
          _
      $region92: #{tpu_custom_call.1} parent=5 // pred_fallthru
        _
    $region6: #{tpu_custom_call.1} parent=1 // loop_footer
      %s29 = sadd.s32 1, %s25
    $region7: #{tpu_custom_call.1} parent=1 // loop_footer_branch
      %24 = sbr.rel target = $region3
    $region8: #{tpu_custom_call.1} parent=1 // loop_exit
      _
    %3279 = vsyncpa [#allocation3], 1
    %s3280 = scalar_lea.sflag [#allocation3], 1
    %3281 = vsyncpa %s3280, 1
    %3282 = vsyncpa [#allocation6], 1
    %3283 = vsyncpa [#allocation9], 1
    %3284 = vsyncpa [#allocation4], 1
    %s3285 = scalar_lea.sflag [#allocation4], 1
    %3286 = vsyncpa %s3285, 1

</llo_original>
